<compile_context>
chip_gen: v7x
topology: tpu7x:2x2x1
jax: 0.10.0
libtpu: 0.0.40
codegen_flags: <defaults>
</compile_context>

<pallas_src>
import numpy as np
import jax
import jax.numpy as jnp
from jax import lax
from jax.experimental import pallas as pl
from jax.experimental.pallas import tpu as pltpu

# ------------------------------- model constants ------------------------------
C_IN = 38          # input_dim
C_PAD = 128        # lane-aligned padded input channels
OUT_CH = 64        # out_ch per conv branch
HID1 = OUT_CH          # 64
HID2 = OUT_CH // 2     # 32
OUTPUT_DIM = 8
DILATION = 2
CONV_SPECS = [(3, 2), (7, 6), (12, 11), (18, 17)]   # (kernel_size, padding) per branch
P_MAX = max(p for _, p in CONV_SPECS)               # 17

# distinct dilated-tap offsets into the (P_MAX-padded) input, shared by all branches
_offs = set()
for _K, _P in CONV_SPECS:
    for _k in range(_K):
        _offs.add((P_MAX - _P) + DILATION * _k)
TAP_OFFSETS = tuple(sorted(_offs))                  # 25 static offsets


# ----------------------------- Pallas kernel ---------------------------------
def multiconv_kernel(x_ref, wtaps_ref, cb_ref, w1_ref, b1_ref,
                     w2_ref, b2_ref, w3_ref, b3_ref, out_ref):
    L = out_ref.shape[1]
    C4 = wtaps_ref.shape[-1]          # 4 * OUT_CH = 256
    neg = jnp.float32(0.01)           # LeakyReLU default slope

    def leaky(v):
        return jnp.where(v >= 0, v, neg * v)

    xb = x_ref[0]                     # (L_pad, C_PAD), whole padded sample in vregs

    # fused dilated convs: one lane-aligned matmul per distinct tap offset,
    # accumulating directly into the concatenated 256-wide feature layout.
    acc = jnp.zeros((L, C4), jnp.float32)
    for j, off in enumerate(TAP_OFFSETS):           # static unrolled loop
        x_slab = xb[off:off + L, :]                 # (L, C_PAD), static slice
        acc = acc + jnp.dot(x_slab, wtaps_ref[j],
                            preferred_element_type=jnp.float32)

    h = leaky(acc + cb_ref[...])                                       # conv bias + LeakyReLU
    h = leaky(jnp.dot(h, w1_ref[...],
                      preferred_element_type=jnp.float32) + b1_ref[...])   # Linear 256->64 + LeakyReLU
    h = jnp.dot(h, w2_ref[...],
                preferred_element_type=jnp.float32) + b2_ref[...]          # Linear 64->32
    h = leaky(h)                                                            # self.activation
    h = jnp.dot(h, w3_ref[...],
                preferred_element_type=jnp.float32) + b3_ref[...]          # Linear 32->8
    out_ref[0] = jax.nn.sigmoid(h).astype(out_ref.dtype)


# ------------------------------- wrapper ---------------------------------------
def multiconv_forward(x, params):
    """x: (B, L, C_IN) float32 (same layout as the PyTorch module input). Returns (B, L, 8)."""
    B, L, C = x.shape
    assert C == C_IN
    L_pad = L + 2 * P_MAX

    # zero-pad length (max conv padding) and channels (lane alignment 38 -> 128)
    x_pad = jnp.pad(x, ((0, 0), (P_MAX, P_MAX), (0, C_PAD - C_IN)))

    # Build fused per-offset tap weights: (n_offsets, C_PAD, 4*OUT_CH).
    wt = np.zeros((len(TAP_OFFSETS), C_PAD, 4 * OUT_CH), np.float32)
    for i, (K, P) in enumerate(CONV_SPECS):
        w = np.asarray(params[f"conv{i}"]["w"])     # (OUT_CH, C_IN, K)
        for k in range(K):
            off = (P_MAX - P) + DILATION * k
            j = TAP_OFFSETS.index(off)
            wt[j, :C_IN, i * OUT_CH:(i + 1) * OUT_CH] = w[:, :, k].T
    w_taps = jnp.asarray(wt)

    cb = jnp.concatenate([params[f"conv{i}"]["b"] for i in range(4)]
                         ).reshape(1, 4 * OUT_CH)                    # (1, 256)
    w1, b1 = params["lin1"]["w_t"], params["lin1"]["b"]              # (256,64), (1,64)
    w2, b2 = params["lin2"]["w_t"], params["lin2"]["b"]              # (64,32),  (1,32)
    w3, b3 = params["lin3"]["w_t"], params["lin3"]["b"]              # (32,8),   (1,8)

    def full_spec(arr):
        nd = arr.ndim
        return pl.BlockSpec(arr.shape, lambda b, nd=nd: (0,) * nd)

    in_specs = [pl.BlockSpec((1, L_pad, C_PAD), lambda b: (b, 0, 0))] + \
               [full_spec(a) for a in (w_taps, cb, w1, b1, w2, b2, w3, b3)]

    out = pl.pallas_call(
        multiconv_kernel,
        out_shape=jax.ShapeDtypeStruct((B, L, OUTPUT_DIM), jnp.float32),
        grid_spec=pltpu.PrefetchScalarGridSpec(
            num_scalar_prefetch=0,
            grid=(B,),
            in_specs=in_specs,
            out_specs=pl.BlockSpec((1, L, OUTPUT_DIM), lambda b: (b, 0, 0)),
            scratch_shapes=[],
        ),
        compiler_params=pltpu.CompilerParams(
            dimension_semantics=("parallel",)),      # batch samples are independent
    )(x_pad, w_taps, cb, w1, b1, w2, b2, w3, b3)
    return out


# ---------------------------- parameter init ----------------------------------
def init_params(key):
    params = {}
    for i, (K, P) in enumerate(CONV_SPECS):
        key, kw, kb = jax.random.split(key, 3)
        bound = 1.0 / float(np.sqrt(C_IN * K))
        params[f"conv{i}"] = dict(
            w=jax.random.uniform(kw, (OUT_CH, C_IN, K), jnp.float32, -bound, bound),
            b=jax.random.uniform(kb, (OUT_CH,), jnp.float32, -bound, bound))

    def lin(k, din, dout):
        k1, k2 = jax.random.split(k)
        bound = 1.0 / float(np.sqrt(din))
        return dict(w_t=jax.random.uniform(k1, (din, dout), jnp.float32, -bound, bound),
                    b=jax.random.uniform(k2, (1, dout), jnp.float32, -bound, bound))

    key, k1, k2, k3 = jax.random.split(key, 4)
    params["lin1"] = lin(k1, 4 * OUT_CH, HID1)
    params["lin2"] = lin(k2, HID1, HID2)
    params["lin3"] = lin(k3, HID2, OUTPUT_DIM)
    return params


# ------------------------- pure-JAX reference ---------------------------------
def multiconv_reference(x, params):
    neg = 0.01

    def leaky(v):
        return jnp.where(v >= 0, v, neg * v)

    xt = jnp.transpose(x, (0, 2, 1))                     # (B, C_IN, L)
    feats = []
    for i, (K, P) in enumerate(CONV_SPECS):
        w = params[f"conv{i}"]["w"]
        b = params[f"conv{i}"]["b"]
        y = lax.conv_general_dilated(
            xt, w, window_strides=(1,), padding=[(P, P)],
            rhs_dilation=(DILATION,),
            dimension_numbers=("NCH", "OIH", "NCH"),
            precision=lax.Precision.HIGHEST)
        y = y + b[None, :, None]
        feats.append(leaky(y))
    cat = jnp.concatenate(feats, axis=1)                 # (B, 256, L)
    f = jnp.transpose(cat, (0, 2, 1))                    # (B, L, 256)
    h = leaky(jnp.matmul(f, params["lin1"]["w_t"],
                         precision=lax.Precision.HIGHEST) + params["lin1"]["b"])
    h = jnp.matmul(h, params["lin2"]["w_t"],
                   precision=lax.Precision.HIGHEST) + params["lin2"]["b"]
    h = leaky(h)
    out = jax.nn.sigmoid(jnp.matmul(h, params["lin3"]["w_t"],
                                    precision=lax.Precision.HIGHEST) + params["lin3"]["b"])
    return out


# ----------------------------------- main --------------------------------------
if __name__ == "__main__":
    key = jax.random.PRNGKey(0)
    key, pkey, xkey = jax.random.split(key, 3)
    params = init_params(pkey)

    B, L = 2, 16
    x = jax.random.normal(xkey, (B, L, C_IN), jnp.float32)

    out = multiconv_forward(x, params)
    out = jax.block_until_ready(out)

    ref = multiconv_reference(x, params)
    assert out.shape == (B, L, OUTPUT_DIM), out.shape
    max_err = jnp.max(jnp.abs(out - ref))
    assert jnp.allclose(out, ref, atol=5e-4, rtol=5e-4), f"max abs err {max_err}"

    print("KERNEL_OK")
</pallas_src>

<mosaic_0001>
module attributes {stable_mosaic.version = 11 : i64} {
  func.func @multiconv_kernel(%arg0: i32, %arg1: memref<1x50x128xf32, #tpu.memory_space<vmem>>, %arg2: memref<25x128x256xf32, #tpu.memory_space<vmem>>, %arg3: memref<1x256xf32, #tpu.memory_space<vmem>>, %arg4: memref<256x64xf32, #tpu.memory_space<vmem>>, %arg5: memref<1x64xf32, #tpu.memory_space<vmem>>, %arg6: memref<64x32xf32, #tpu.memory_space<vmem>>, %arg7: memref<1x32xf32, #tpu.memory_space<vmem>>, %arg8: memref<32x8xf32, #tpu.memory_space<vmem>>, %arg9: memref<1x8xf32, #tpu.memory_space<vmem>>, %arg10: memref<1x16x8xf32, #tpu.memory_space<vmem>>) attributes {dimension_semantics = [#tpu.dimension_semantics<parallel>], iteration_bounds = array<i64: 2>, scalar_prefetch = 0 : i64, scratch_operands = 0 : i64, tpu.core_type = #tpu.core_type<tc>, window_params = [{transform_indices = @transform_0, window_bounds = array<i64: 1, 50, 128>}, {pipeline_mode = #tpu.pipeline_mode<synchronous>, transform_indices = @transform_1, window_bounds = array<i64: 25, 128, 256>}, {pipeline_mode = #tpu.pipeline_mode<synchronous>, transform_indices = @transform_2, window_bounds = array<i64: 1, 256>}, {pipeline_mode = #tpu.pipeline_mode<synchronous>, transform_indices = @transform_3, window_bounds = array<i64: 256, 64>}, {pipeline_mode = #tpu.pipeline_mode<synchronous>, transform_indices = @transform_4, window_bounds = array<i64: 1, 64>}, {pipeline_mode = #tpu.pipeline_mode<synchronous>, transform_indices = @transform_5, window_bounds = array<i64: 64, 32>}, {pipeline_mode = #tpu.pipeline_mode<synchronous>, transform_indices = @transform_6, window_bounds = array<i64: 1, 32>}, {pipeline_mode = #tpu.pipeline_mode<synchronous>, transform_indices = @transform_7, window_bounds = array<i64: 32, 8>}, {pipeline_mode = #tpu.pipeline_mode<synchronous>, transform_indices = @transform_8, window_bounds = array<i64: 1, 8>}, {transform_indices = @transform_9, window_bounds = array<i64: 1, 16, 8>}]} {
    %c0 = arith.constant 0 : index
    %c0_0 = arith.constant 0 : index
    %c0_1 = arith.constant 0 : index
    %0 = vector.load %arg1[%c0, %c0_0, %c0_1] : memref<1x50x128xf32, #tpu.memory_space<vmem>>, vector<1x50x128xf32>
    %1 = vector.shape_cast %0 : vector<1x50x128xf32> to vector<50x128xf32>
    %cst = arith.constant 0.000000e+00 : f32
    %2 = vector.broadcast %cst : f32 to vector<16x256xf32>
    %3 = vector.extract_strided_slice %1 {offsets = [0, 0], sizes = [16, 128], strides = [1, 1]} : vector<50x128xf32> to vector<16x128xf32>
    %c0_2 = arith.constant 0 : index
    %c0_3 = arith.constant 0 : index
    %c0_4 = arith.constant 0 : index
    %4 = vector.load %arg2[%c0_2, %c0_3, %c0_4] : memref<25x128x256xf32, #tpu.memory_space<vmem>>, vector<1x128x256xf32>
    %5 = vector.shape_cast %4 : vector<1x128x256xf32> to vector<128x256xf32>
    %cst_5 = arith.constant dense<0.000000e+00> : vector<16x256xf32>
    %6 = tpu.matmul %3, %5, %cst_5 {dimension_numbers = #tpu.dot_dimension_numbers<[1], [0], [0], [1], [0, 0, 1, 1], [], []>} : vector<16x128xf32>, vector<128x256xf32>, vector<16x256xf32> -> vector<16x256xf32>
    %7 = arith.addf %2, %6 : vector<16x256xf32>
    %8 = vector.extract_strided_slice %1 {offsets = [2, 0], sizes = [16, 128], strides = [1, 1]} : vector<50x128xf32> to vector<16x128xf32>
    %c1 = arith.constant 1 : index
    %c0_6 = arith.constant 0 : index
    %c0_7 = arith.constant 0 : index
    %9 = vector.load %arg2[%c1, %c0_6, %c0_7] : memref<25x128x256xf32, #tpu.memory_space<vmem>>, vector<1x128x256xf32>
    %10 = vector.shape_cast %9 : vector<1x128x256xf32> to vector<128x256xf32>
    %cst_8 = arith.constant dense<0.000000e+00> : vector<16x256xf32>
    %11 = tpu.matmul %8, %10, %cst_8 {dimension_numbers = #tpu.dot_dimension_numbers<[1], [0], [0], [1], [0, 0, 1, 1], [], []>} : vector<16x128xf32>, vector<128x256xf32>, vector<16x256xf32> -> vector<16x256xf32>
    %12 = arith.addf %7, %11 : vector<16x256xf32>
    %13 = vector.extract_strided_slice %1 {offsets = [4, 0], sizes = [16, 128], strides = [1, 1]} : vector<50x128xf32> to vector<16x128xf32>
    %c2 = arith.constant 2 : index
    %c0_9 = arith.constant 0 : index
    %c0_10 = arith.constant 0 : index
    %14 = vector.load %arg2[%c2, %c0_9, %c0_10] : memref<25x128x256xf32, #tpu.memory_space<vmem>>, vector<1x128x256xf32>
    %15 = vector.shape_cast %14 : vector<1x128x256xf32> to vector<128x256xf32>
    %cst_11 = arith.constant dense<0.000000e+00> : vector<16x256xf32>
    %16 = tpu.matmul %13, %15, %cst_11 {dimension_numbers = #tpu.dot_dimension_numbers<[1], [0], [0], [1], [0, 0, 1, 1], [], []>} : vector<16x128xf32>, vector<128x256xf32>, vector<16x256xf32> -> vector<16x256xf32>
    %17 = arith.addf %12, %16 : vector<16x256xf32>
    %18 = vector.extract_strided_slice %1 {offsets = [6, 0], sizes = [16, 128], strides = [1, 1]} : vector<50x128xf32> to vector<16x128xf32>
    %c3 = arith.constant 3 : index
    %c0_12 = arith.constant 0 : index
    %c0_13 = arith.constant 0 : index
    %19 = vector.load %arg2[%c3, %c0_12, %c0_13] : memref<25x128x256xf32, #tpu.memory_space<vmem>>, vector<1x128x256xf32>
    %20 = vector.shape_cast %19 : vector<1x128x256xf32> to vector<128x256xf32>
    %cst_14 = arith.constant dense<0.000000e+00> : vector<16x256xf32>
    %21 = tpu.matmul %18, %20, %cst_14 {dimension_numbers = #tpu.dot_dimension_numbers<[1], [0], [0], [1], [0, 0, 1, 1], [], []>} : vector<16x128xf32>, vector<128x256xf32>, vector<16x256xf32> -> vector<16x256xf32>
    %22 = arith.addf %17, %21 : vector<16x256xf32>
    %23 = vector.extract_strided_slice %1 {offsets = [8, 0], sizes = [16, 128], strides = [1, 1]} : vector<50x128xf32> to vector<16x128xf32>
    %c4 = arith.constant 4 : index
    %c0_15 = arith.constant 0 : index
    %c0_16 = arith.constant 0 : index
    %24 = vector.load %arg2[%c4, %c0_15, %c0_16] : memref<25x128x256xf32, #tpu.memory_space<vmem>>, vector<1x128x256xf32>
    %25 = vector.shape_cast %24 : vector<1x128x256xf32> to vector<128x256xf32>
    %cst_17 = arith.constant dense<0.000000e+00> : vector<16x256xf32>
    %26 = tpu.matmul %23, %25, %cst_17 {dimension_numbers = #tpu.dot_dimension_numbers<[1], [0], [0], [1], [0, 0, 1, 1], [], []>} : vector<16x128xf32>, vector<128x256xf32>, vector<16x256xf32> -> vector<16x256xf32>
    %27 = arith.addf %22, %26 : vector<16x256xf32>
    %28 = vector.extract_strided_slice %1 {offsets = [10, 0], sizes = [16, 128], strides = [1, 1]} : vector<50x128xf32> to vector<16x128xf32>
    %c5 = arith.constant 5 : index
    %c0_18 = arith.constant 0 : index
    %c0_19 = arith.constant 0 : index
    %29 = vector.load %arg2[%c5, %c0_18, %c0_19] : memref<25x128x256xf32, #tpu.memory_space<vmem>>, vector<1x128x256xf32>
    %30 = vector.shape_cast %29 : vector<1x128x256xf32> to vector<128x256xf32>
    %cst_20 = arith.constant dense<0.000000e+00> : vector<16x256xf32>
    %31 = tpu.matmul %28, %30, %cst_20 {dimension_numbers = #tpu.dot_dimension_numbers<[1], [0], [0], [1], [0, 0, 1, 1], [], []>} : vector<16x128xf32>, vector<128x256xf32>, vector<16x256xf32> -> vector<16x256xf32>
    %32 = arith.addf %27, %31 : vector<16x256xf32>
    %33 = vector.extract_strided_slice %1 {offsets = [11, 0], sizes = [16, 128], strides = [1, 1]} : vector<50x128xf32> to vector<16x128xf32>
    %c6 = arith.constant 6 : index
    %c0_21 = arith.constant 0 : index
    %c0_22 = arith.constant 0 : index
    %34 = vector.load %arg2[%c6, %c0_21, %c0_22] : memref<25x128x256xf32, #tpu.memory_space<vmem>>, vector<1x128x256xf32>
    %35 = vector.shape_cast %34 : vector<1x128x256xf32> to vector<128x256xf32>
    %cst_23 = arith.constant dense<0.000000e+00> : vector<16x256xf32>
    %36 = tpu.matmul %33, %35, %cst_23 {dimension_numbers = #tpu.dot_dimension_numbers<[1], [0], [0], [1], [0, 0, 1, 1], [], []>} : vector<16x128xf32>, vector<128x256xf32>, vector<16x256xf32> -> vector<16x256xf32>
    %37 = arith.addf %32, %36 : vector<16x256xf32>
    %38 = vector.extract_strided_slice %1 {offsets = [12, 0], sizes = [16, 128], strides = [1, 1]} : vector<50x128xf32> to vector<16x128xf32>
    %c7 = arith.constant 7 : index
    %c0_24 = arith.constant 0 : index
    %c0_25 = arith.constant 0 : index
    %39 = vector.load %arg2[%c7, %c0_24, %c0_25] : memref<25x128x256xf32, #tpu.memory_space<vmem>>, vector<1x128x256xf32>
    %40 = vector.shape_cast %39 : vector<1x128x256xf32> to vector<128x256xf32>
    %cst_26 = arith.constant dense<0.000000e+00> : vector<16x256xf32>
    %41 = tpu.matmul %38, %40, %cst_26 {dimension_numbers = #tpu.dot_dimension_numbers<[1], [0], [0], [1], [0, 0, 1, 1], [], []>} : vector<16x128xf32>, vector<128x256xf32>, vector<16x256xf32> -> vector<16x256xf32>
    %42 = arith.addf %37, %41 : vector<16x256xf32>
    %43 = vector.extract_strided_slice %1 {offsets = [13, 0], sizes = [16, 128], strides = [1, 1]} : vector<50x128xf32> to vector<16x128xf32>
    %c8 = arith.constant 8 : index
    %c0_27 = arith.constant 0 : index
    %c0_28 = arith.constant 0 : index
    %44 = vector.load %arg2[%c8, %c0_27, %c0_28] : memref<25x128x256xf32, #tpu.memory_space<vmem>>, vector<1x128x256xf32>
    %45 = vector.shape_cast %44 : vector<1x128x256xf32> to vector<128x256xf32>
    %cst_29 = arith.constant dense<0.000000e+00> : vector<16x256xf32>
    %46 = tpu.matmul %43, %45, %cst_29 {dimension_numbers = #tpu.dot_dimension_numbers<[1], [0], [0], [1], [0, 0, 1, 1], [], []>} : vector<16x128xf32>, vector<128x256xf32>, vector<16x256xf32> -> vector<16x256xf32>
    %47 = arith.addf %42, %46 : vector<16x256xf32>
    %48 = vector.extract_strided_slice %1 {offsets = [14, 0], sizes = [16, 128], strides = [1, 1]} : vector<50x128xf32> to vector<16x128xf32>
    %c9 = arith.constant 9 : index
    %c0_30 = arith.constant 0 : index
    %c0_31 = arith.constant 0 : index
    %49 = vector.load %arg2[%c9, %c0_30, %c0_31] : memref<25x128x256xf32, #tpu.memory_space<vmem>>, vector<1x128x256xf32>
    %50 = vector.shape_cast %49 : vector<1x128x256xf32> to vector<128x256xf32>
    %cst_32 = arith.constant dense<0.000000e+00> : vector<16x256xf32>
    %51 = tpu.matmul %48, %50, %cst_32 {dimension_numbers = #tpu.dot_dimension_numbers<[1], [0], [0], [1], [0, 0, 1, 1], [], []>} : vector<16x128xf32>, vector<128x256xf32>, vector<16x256xf32> -> vector<16x256xf32>
    %52 = arith.addf %47, %51 : vector<16x256xf32>
    %53 = vector.extract_strided_slice %1 {offsets = [15, 0], sizes = [16, 128], strides = [1, 1]} : vector<50x128xf32> to vector<16x128xf32>
    %c10 = arith.constant 10 : index
    %c0_33 = arith.constant 0 : index
    %c0_34 = arith.constant 0 : index
    %54 = vector.load %arg2[%c10, %c0_33, %c0_34] : memref<25x128x256xf32, #tpu.memory_space<vmem>>, vector<1x128x256xf32>
    %55 = vector.shape_cast %54 : vector<1x128x256xf32> to vector<128x256xf32>
    %cst_35 = arith.constant dense<0.000000e+00> : vector<16x256xf32>
    %56 = tpu.matmul %53, %55, %cst_35 {dimension_numbers = #tpu.dot_dimension_numbers<[1], [0], [0], [1], [0, 0, 1, 1], [], []>} : vector<16x128xf32>, vector<128x256xf32>, vector<16x256xf32> -> vector<16x256xf32>
    %57 = arith.addf %52, %56 : vector<16x256xf32>
    %58 = vector.extract_strided_slice %1 {offsets = [16, 0], sizes = [16, 128], strides = [1, 1]} : vector<50x128xf32> to vector<16x128xf32>
    %c11 = arith.constant 11 : index
    %c0_36 = arith.constant 0 : index
    %c0_37 = arith.constant 0 : index
    %59 = vector.load %arg2[%c11, %c0_36, %c0_37] : memref<25x128x256xf32, #tpu.memory_space<vmem>>, vector<1x128x256xf32>
    %60 = vector.shape_cast %59 : vector<1x128x256xf32> to vector<128x256xf32>
    %cst_38 = arith.constant dense<0.000000e+00> : vector<16x256xf32>
    %61 = tpu.matmul %58, %60, %cst_38 {dimension_numbers = #tpu.dot_dimension_numbers<[1], [0], [0], [1], [0, 0, 1, 1], [], []>} : vector<16x128xf32>, vector<128x256xf32>, vector<16x256xf32> -> vector<16x256xf32>
    %62 = arith.addf %57, %61 : vector<16x256xf32>
    %63 = vector.extract_strided_slice %1 {offsets = [17, 0], sizes = [16, 128], strides = [1, 1]} : vector<50x128xf32> to vector<16x128xf32>
    %c12 = arith.constant 12 : index
    %c0_39 = arith.constant 0 : index
    %c0_40 = arith.constant 0 : index
    %64 = vector.load %arg2[%c12, %c0_39, %c0_40] : memref<25x128x256xf32, #tpu.memory_space<vmem>>, vector<1x128x256xf32>
    %65 = vector.shape_cast %64 : vector<1x128x256xf32> to vector<128x256xf32>
    %cst_41 = arith.constant dense<0.000000e+00> : vector<16x256xf32>
    %66 = tpu.matmul %63, %65, %cst_41 {dimension_numbers = #tpu.dot_dimension_numbers<[1], [0], [0], [1], [0, 0, 1, 1], [], []>} : vector<16x128xf32>, vector<128x256xf32>, vector<16x256xf32> -> vector<16x256xf32>
    %67 = arith.addf %62, %66 : vector<16x256xf32>
    %68 = vector.extract_strided_slice %1 {offsets = [18, 0], sizes = [16, 128], strides = [1, 1]} : vector<50x128xf32> to vector<16x128xf32>
    %c13 = arith.constant 13 : index
    %c0_42 = arith.constant 0 : index
    %c0_43 = arith.constant 0 : index
    %69 = vector.load %arg2[%c13, %c0_42, %c0_43] : memref<25x128x256xf32, #tpu.memory_space<vmem>>, vector<1x128x256xf32>
    %70 = vector.shape_cast %69 : vector<1x128x256xf32> to vector<128x256xf32>
    %cst_44 = arith.constant dense<0.000000e+00> : vector<16x256xf32>
    %71 = tpu.matmul %68, %70, %cst_44 {dimension_numbers = #tpu.dot_dimension_numbers<[1], [0], [0], [1], [0, 0, 1, 1], [], []>} : vector<16x128xf32>, vector<128x256xf32>, vector<16x256xf32> -> vector<16x256xf32>
    %72 = arith.addf %67, %71 : vector<16x256xf32>
    %73 = vector.extract_strided_slice %1 {offsets = [19, 0], sizes = [16, 128], strides = [1, 1]} : vector<50x128xf32> to vector<16x128xf32>
    %c14 = arith.constant 14 : index
    %c0_45 = arith.constant 0 : index
    %c0_46 = arith.constant 0 : index
    %74 = vector.load %arg2[%c14, %c0_45, %c0_46] : memref<25x128x256xf32, #tpu.memory_space<vmem>>, vector<1x128x256xf32>
    %75 = vector.shape_cast %74 : vector<1x128x256xf32> to vector<128x256xf32>
    %cst_47 = arith.constant dense<0.000000e+00> : vector<16x256xf32>
    %76 = tpu.matmul %73, %75, %cst_47 {dimension_numbers = #tpu.dot_dimension_numbers<[1], [0], [0], [1], [0, 0, 1, 1], [], []>} : vector<16x128xf32>, vector<128x256xf32>, vector<16x256xf32> -> vector<16x256xf32>
    %77 = arith.addf %72, %76 : vector<16x256xf32>
    %78 = vector.extract_strided_slice %1 {offsets = [20, 0], sizes = [16, 128], strides = [1, 1]} : vector<50x128xf32> to vector<16x128xf32>
    %c15 = arith.constant 15 : index
    %c0_48 = arith.constant 0 : index
    %c0_49 = arith.constant 0 : index
    %79 = vector.load %arg2[%c15, %c0_48, %c0_49] : memref<25x128x256xf32, #tpu.memory_space<vmem>>, vector<1x128x256xf32>
    %80 = vector.shape_cast %79 : vector<1x128x256xf32> to vector<128x256xf32>
    %cst_50 = arith.constant dense<0.000000e+00> : vector<16x256xf32>
    %81 = tpu.matmul %78, %80, %cst_50 {dimension_numbers = #tpu.dot_dimension_numbers<[1], [0], [0], [1], [0, 0, 1, 1], [], []>} : vector<16x128xf32>, vector<128x256xf32>, vector<16x256xf32> -> vector<16x256xf32>
    %82 = arith.addf %77, %81 : vector<16x256xf32>
    %83 = vector.extract_strided_slice %1 {offsets = [21, 0], sizes = [16, 128], strides = [1, 1]} : vector<50x128xf32> to vector<16x128xf32>
    %c16 = arith.constant 16 : index
    %c0_51 = arith.constant 0 : index
    %c0_52 = arith.constant 0 : index
    %84 = vector.load %arg2[%c16, %c0_51, %c0_52] : memref<25x128x256xf32, #tpu.memory_space<vmem>>, vector<1x128x256xf32>
    %85 = vector.shape_cast %84 : vector<1x128x256xf32> to vector<128x256xf32>
    %cst_53 = arith.constant dense<0.000000e+00> : vector<16x256xf32>
    %86 = tpu.matmul %83, %85, %cst_53 {dimension_numbers = #tpu.dot_dimension_numbers<[1], [0], [0], [1], [0, 0, 1, 1], [], []>} : vector<16x128xf32>, vector<128x256xf32>, vector<16x256xf32> -> vector<16x256xf32>
    %87 = arith.addf %82, %86 : vector<16x256xf32>
    %88 = vector.extract_strided_slice %1 {offsets = [22, 0], sizes = [16, 128], strides = [1, 1]} : vector<50x128xf32> to vector<16x128xf32>
    %c17 = arith.constant 17 : index
    %c0_54 = arith.constant 0 : index
    %c0_55 = arith.constant 0 : index
    %89 = vector.load %arg2[%c17, %c0_54, %c0_55] : memref<25x128x256xf32, #tpu.memory_space<vmem>>, vector<1x128x256xf32>
    %90 = vector.shape_cast %89 : vector<1x128x256xf32> to vector<128x256xf32>
    %cst_56 = arith.constant dense<0.000000e+00> : vector<16x256xf32>
    %91 = tpu.matmul %88, %90, %cst_56 {dimension_numbers = #tpu.dot_dimension_numbers<[1], [0], [0], [1], [0, 0, 1, 1], [], []>} : vector<16x128xf32>, vector<128x256xf32>, vector<16x256xf32> -> vector<16x256xf32>
    %92 = arith.addf %87, %91 : vector<16x256xf32>
    %93 = vector.extract_strided_slice %1 {offsets = [23, 0], sizes = [16, 128], strides = [1, 1]} : vector<50x128xf32> to vector<16x128xf32>
    %c18 = arith.constant 18 : index
    %c0_57 = arith.constant 0 : index
    %c0_58 = arith.constant 0 : index
    %94 = vector.load %arg2[%c18, %c0_57, %c0_58] : memref<25x128x256xf32, #tpu.memory_space<vmem>>, vector<1x128x256xf32>
    %95 = vector.shape_cast %94 : vector<1x128x256xf32> to vector<128x256xf32>
    %cst_59 = arith.constant dense<0.000000e+00> : vector<16x256xf32>
    %96 = tpu.matmul %93, %95, %cst_59 {dimension_numbers = #tpu.dot_dimension_numbers<[1], [0], [0], [1], [0, 0, 1, 1], [], []>} : vector<16x128xf32>, vector<128x256xf32>, vector<16x256xf32> -> vector<16x256xf32>
    %97 = arith.addf %92, %96 : vector<16x256xf32>
    %98 = vector.extract_strided_slice %1 {offsets = [24, 0], sizes = [16, 128], strides = [1, 1]} : vector<50x128xf32> to vector<16x128xf32>
    %c19 = arith.constant 19 : index
    %c0_60 = arith.constant 0 : index
    %c0_61 = arith.constant 0 : index
    %99 = vector.load %arg2[%c19, %c0_60, %c0_61] : memref<25x128x256xf32, #tpu.memory_space<vmem>>, vector<1x128x256xf32>
    %100 = vector.shape_cast %99 : vector<1x128x256xf32> to vector<128x256xf32>
    %cst_62 = arith.constant dense<0.000000e+00> : vector<16x256xf32>
    %101 = tpu.matmul %98, %100, %cst_62 {dimension_numbers = #tpu.dot_dimension_numbers<[1], [0], [0], [1], [0, 0, 1, 1], [], []>} : vector<16x128xf32>, vector<128x256xf32>, vector<16x256xf32> -> vector<16x256xf32>
    %102 = arith.addf %97, %101 : vector<16x256xf32>
    %103 = vector.extract_strided_slice %1 {offsets = [26, 0], sizes = [16, 128], strides = [1, 1]} : vector<50x128xf32> to vector<16x128xf32>
    %c20 = arith.constant 20 : index
    %c0_63 = arith.constant 0 : index
    %c0_64 = arith.constant 0 : index
    %104 = vector.load %arg2[%c20, %c0_63, %c0_64] : memref<25x128x256xf32, #tpu.memory_space<vmem>>, vector<1x128x256xf32>
    %105 = vector.shape_cast %104 : vector<1x128x256xf32> to vector<128x256xf32>
    %cst_65 = arith.constant dense<0.000000e+00> : vector<16x256xf32>
    %106 = tpu.matmul %103, %105, %cst_65 {dimension_numbers = #tpu.dot_dimension_numbers<[1], [0], [0], [1], [0, 0, 1, 1], [], []>} : vector<16x128xf32>, vector<128x256xf32>, vector<16x256xf32> -> vector<16x256xf32>
    %107 = arith.addf %102, %106 : vector<16x256xf32>
    %108 = vector.extract_strided_slice %1 {offsets = [28, 0], sizes = [16, 128], strides = [1, 1]} : vector<50x128xf32> to vector<16x128xf32>
    %c21 = arith.constant 21 : index
    %c0_66 = arith.constant 0 : index
    %c0_67 = arith.constant 0 : index
    %109 = vector.load %arg2[%c21, %c0_66, %c0_67] : memref<25x128x256xf32, #tpu.memory_space<vmem>>, vector<1x128x256xf32>
    %110 = vector.shape_cast %109 : vector<1x128x256xf32> to vector<128x256xf32>
    %cst_68 = arith.constant dense<0.000000e+00> : vector<16x256xf32>
    %111 = tpu.matmul %108, %110, %cst_68 {dimension_numbers = #tpu.dot_dimension_numbers<[1], [0], [0], [1], [0, 0, 1, 1], [], []>} : vector<16x128xf32>, vector<128x256xf32>, vector<16x256xf32> -> vector<16x256xf32>
    %112 = arith.addf %107, %111 : vector<16x256xf32>
    %113 = vector.extract_strided_slice %1 {offsets = [30, 0], sizes = [16, 128], strides = [1, 1]} : vector<50x128xf32> to vector<16x128xf32>
    %c22 = arith.constant 22 : index
    %c0_69 = arith.constant 0 : index
    %c0_70 = arith.constant 0 : index
    %114 = vector.load %arg2[%c22, %c0_69, %c0_70] : memref<25x128x256xf32, #tpu.memory_space<vmem>>, vector<1x128x256xf32>
    %115 = vector.shape_cast %114 : vector<1x128x256xf32> to vector<128x256xf32>
    %cst_71 = arith.constant dense<0.000000e+00> : vector<16x256xf32>
    %116 = tpu.matmul %113, %115, %cst_71 {dimension_numbers = #tpu.dot_dimension_numbers<[1], [0], [0], [1], [0, 0, 1, 1], [], []>} : vector<16x128xf32>, vector<128x256xf32>, vector<16x256xf32> -> vector<16x256xf32>
    %117 = arith.addf %112, %116 : vector<16x256xf32>
    %118 = vector.extract_strided_slice %1 {offsets = [32, 0], sizes = [16, 128], strides = [1, 1]} : vector<50x128xf32> to vector<16x128xf32>
    %c23 = arith.constant 23 : index
    %c0_72 = arith.constant 0 : index
    %c0_73 = arith.constant 0 : index
    %119 = vector.load %arg2[%c23, %c0_72, %c0_73] : memref<25x128x256xf32, #tpu.memory_space<vmem>>, vector<1x128x256xf32>
    %120 = vector.shape_cast %119 : vector<1x128x256xf32> to vector<128x256xf32>
    %cst_74 = arith.constant dense<0.000000e+00> : vector<16x256xf32>
    %121 = tpu.matmul %118, %120, %cst_74 {dimension_numbers = #tpu.dot_dimension_numbers<[1], [0], [0], [1], [0, 0, 1, 1], [], []>} : vector<16x128xf32>, vector<128x256xf32>, vector<16x256xf32> -> vector<16x256xf32>
    %122 = arith.addf %117, %121 : vector<16x256xf32>
    %123 = vector.extract_strided_slice %1 {offsets = [34, 0], sizes = [16, 128], strides = [1, 1]} : vector<50x128xf32> to vector<16x128xf32>
    %c24 = arith.constant 24 : index
    %c0_75 = arith.constant 0 : index
    %c0_76 = arith.constant 0 : index
    %124 = vector.load %arg2[%c24, %c0_75, %c0_76] : memref<25x128x256xf32, #tpu.memory_space<vmem>>, vector<1x128x256xf32>
    %125 = vector.shape_cast %124 : vector<1x128x256xf32> to vector<128x256xf32>
    %cst_77 = arith.constant dense<0.000000e+00> : vector<16x256xf32>
    %126 = tpu.matmul %123, %125, %cst_77 {dimension_numbers = #tpu.dot_dimension_numbers<[1], [0], [0], [1], [0, 0, 1, 1], [], []>} : vector<16x128xf32>, vector<128x256xf32>, vector<16x256xf32> -> vector<16x256xf32>
    %127 = arith.addf %122, %126 : vector<16x256xf32>
    %c0_78 = arith.constant 0 : index
    %c0_79 = arith.constant 0 : index
    %128 = vector.load %arg3[%c0_78, %c0_79] : memref<1x256xf32, #tpu.memory_space<vmem>>, vector<1x256xf32>
    %129 = vector.broadcast %128 : vector<1x256xf32> to vector<16x256xf32>
    %130 = arith.addf %127, %129 : vector<16x256xf32>
    %cst_80 = arith.constant 0.000000e+00 : f32
    %131 = vector.broadcast %cst_80 : f32 to vector<16x256xf32>
    %132 = arith.cmpf oge, %130, %131 : vector<16x256xf32>
    %cst_81 = arith.constant 0.00999999977 : f32
    %133 = vector.broadcast %cst_81 : f32 to vector<16x256xf32>
    %134 = arith.mulf %133, %130 : vector<16x256xf32>
    %135 = arith.select %132, %130, %134 : vector<16x256xi1>, vector<16x256xf32>
    %c0_82 = arith.constant 0 : index
    %c0_83 = arith.constant 0 : index
    %136 = vector.load %arg4[%c0_82, %c0_83] : memref<256x64xf32, #tpu.memory_space<vmem>>, vector<256x64xf32>
    %cst_84 = arith.constant dense<0.000000e+00> : vector<16x64xf32>
    %137 = tpu.matmul %135, %136, %cst_84 {dimension_numbers = #tpu.dot_dimension_numbers<[1], [0], [0], [1], [0, 0, 1, 1], [], []>} : vector<16x256xf32>, vector<256x64xf32>, vector<16x64xf32> -> vector<16x64xf32>
    %c0_85 = arith.constant 0 : index
    %c0_86 = arith.constant 0 : index
    %138 = vector.load %arg5[%c0_85, %c0_86] : memref<1x64xf32, #tpu.memory_space<vmem>>, vector<1x64xf32>
    %139 = vector.broadcast %138 : vector<1x64xf32> to vector<16x64xf32>
    %140 = arith.addf %137, %139 : vector<16x64xf32>
    %cst_87 = arith.constant 0.000000e+00 : f32
    %141 = vector.broadcast %cst_87 : f32 to vector<16x64xf32>
    %142 = arith.cmpf oge, %140, %141 : vector<16x64xf32>
    %cst_88 = arith.constant 0.00999999977 : f32
    %143 = vector.broadcast %cst_88 : f32 to vector<16x64xf32>
    %144 = arith.mulf %143, %140 : vector<16x64xf32>
    %145 = arith.select %142, %140, %144 : vector<16x64xi1>, vector<16x64xf32>
    %c0_89 = arith.constant 0 : index
    %c0_90 = arith.constant 0 : index
    %146 = vector.load %arg6[%c0_89, %c0_90] : memref<64x32xf32, #tpu.memory_space<vmem>>, vector<64x32xf32>
    %cst_91 = arith.constant dense<0.000000e+00> : vector<16x32xf32>
    %147 = tpu.matmul %145, %146, %cst_91 {dimension_numbers = #tpu.dot_dimension_numbers<[1], [0], [0], [1], [0, 0, 1, 1], [], []>} : vector<16x64xf32>, vector<64x32xf32>, vector<16x32xf32> -> vector<16x32xf32>
    %c0_92 = arith.constant 0 : index
    %c0_93 = arith.constant 0 : index
    %148 = vector.load %arg7[%c0_92, %c0_93] : memref<1x32xf32, #tpu.memory_space<vmem>>, vector<1x32xf32>
    %149 = vector.broadcast %148 : vector<1x32xf32> to vector<16x32xf32>
    %150 = arith.addf %147, %149 : vector<16x32xf32>
    %cst_94 = arith.constant 0.000000e+00 : f32
    %151 = vector.broadcast %cst_94 : f32 to vector<16x32xf32>
    %152 = arith.cmpf oge, %150, %151 : vector<16x32xf32>
    %cst_95 = arith.constant 0.00999999977 : f32
    %153 = vector.broadcast %cst_95 : f32 to vector<16x32xf32>
    %154 = arith.mulf %153, %150 : vector<16x32xf32>
    %155 = arith.select %152, %150, %154 : vector<16x32xi1>, vector<16x32xf32>
    %c0_96 = arith.constant 0 : index
    %c0_97 = arith.constant 0 : index
    %156 = vector.load %arg8[%c0_96, %c0_97] : memref<32x8xf32, #tpu.memory_space<vmem>>, vector<32x8xf32>
    %cst_98 = arith.constant dense<0.000000e+00> : vector<16x8xf32>
    %157 = tpu.matmul %155, %156, %cst_98 {dimension_numbers = #tpu.dot_dimension_numbers<[1], [0], [0], [1], [0, 0, 1, 1], [], []>} : vector<16x32xf32>, vector<32x8xf32>, vector<16x8xf32> -> vector<16x8xf32>
    %c0_99 = arith.constant 0 : index
    %c0_100 = arith.constant 0 : index
    %158 = vector.load %arg9[%c0_99, %c0_100] : memref<1x8xf32, #tpu.memory_space<vmem>>, vector<1x8xf32>
    %159 = vector.broadcast %158 : vector<1x8xf32> to vector<16x8xf32>
    %160 = arith.addf %157, %159 : vector<16x8xf32>
    %161 = arith.negf %160 : vector<16x8xf32>
    %162 = math.exp %161 : vector<16x8xf32>
    %cst_101 = arith.constant 1.000000e+00 : f32
    %163 = vector.broadcast %cst_101 : f32 to vector<16x8xf32>
    %164 = arith.addf %163, %162 : vector<16x8xf32>
    %165 = arith.divf %163, %164 : vector<16x8xf32>
    %c0_102 = arith.constant 0 : index
    %c0_103 = arith.constant 0 : index
    %c0_104 = arith.constant 0 : index
    %166 = vector.load %arg10[%c0_102, %c0_103, %c0_104] : memref<1x16x8xf32, #tpu.memory_space<vmem>>, vector<1x16x8xf32>
    %167 = vector.shape_cast %166 : vector<1x16x8xf32> to vector<16x8xf32>
    %168 = vector.shape_cast %165 : vector<16x8xf32> to vector<1x16x8xf32>
    tpu.vector_store %arg10[%c0_102, %c0_103, %c0_104], %168 {strides = array<i32>} : memref<1x16x8xf32, #tpu.memory_space<vmem>>, vector<1x16x8xf32>,
    return
  }
  func.func @transform_0(%arg0: i32) -> (i32, i32, i32) {
    %c0_i32 = arith.constant 0 : i32
    %c0_i32_0 = arith.constant 0 : i32
    %c0_i32_1 = arith.constant 0 : i32
    return %arg0, %c0_i32, %c0_i32_0 : i32, i32, i32
  }
  func.func @transform_1(%arg0: i32) -> (i32, i32, i32) {
    %c0_i32 = arith.constant 0 : i32
    %c0_i32_0 = arith.constant 0 : i32
    %c0_i32_1 = arith.constant 0 : i32
    %c0_i32_2 = arith.constant 0 : i32
    return %c0_i32, %c0_i32_0, %c0_i32_1 : i32, i32, i32
  }
  func.func @transform_2(%arg0: i32) -> (i32, i32) {
    %c0_i32 = arith.constant 0 : i32
    %c0_i32_0 = arith.constant 0 : i32
    %c0_i32_1 = arith.constant 0 : i32
    return %c0_i32, %c0_i32_0 : i32, i32
  }
  func.func @transform_3(%arg0: i32) -> (i32, i32) {
    %c0_i32 = arith.constant 0 : i32
    %c0_i32_0 = arith.constant 0 : i32
    %c0_i32_1 = arith.constant 0 : i32
    return %c0_i32, %c0_i32_0 : i32, i32
  }
  func.func @transform_4(%arg0: i32) -> (i32, i32) {
    %c0_i32 = arith.constant 0 : i32
    %c0_i32_0 = arith.constant 0 : i32
    %c0_i32_1 = arith.constant 0 : i32
    return %c0_i32, %c0_i32_0 : i32, i32
  }
  func.func @transform_5(%arg0: i32) -> (i32, i32) {
    %c0_i32 = arith.constant 0 : i32
    %c0_i32_0 = arith.constant 0 : i32
    %c0_i32_1 = arith.constant 0 : i32
    return %c0_i32, %c0_i32_0 : i32, i32
  }
  func.func @transform_6(%arg0: i32) -> (i32, i32) {
    %c0_i32 = arith.constant 0 : i32
    %c0_i32_0 = arith.constant 0 : i32
    %c0_i32_1 = arith.constant 0 : i32
    return %c0_i32, %c0_i32_0 : i32, i32
  }
  func.func @transform_7(%arg0: i32) -> (i32, i32) {
    %c0_i32 = arith.constant 0 : i32
    %c0_i32_0 = arith.constant 0 : i32
    %c0_i32_1 = arith.constant 0 : i32
    return %c0_i32, %c0_i32_0 : i32, i32
  }
  func.func @transform_8(%arg0: i32) -> (i32, i32) {
    %c0_i32 = arith.constant 0 : i32
    %c0_i32_0 = arith.constant 0 : i32
    %c0_i32_1 = arith.constant 0 : i32
    return %c0_i32, %c0_i32_0 : i32, i32
  }
  func.func @transform_9(%arg0: i32) -> (i32, i32, i32) {
    %c0_i32 = arith.constant 0 : i32
    %c0_i32_0 = arith.constant 0 : i32
    %c0_i32_1 = arith.constant 0 : i32
    return %arg0, %c0_i32, %c0_i32_0 : i32, i32, i32
  }
}

</mosaic_0001>

<llo_original>
// kernel: tpu_custom_call.1
$region0: #{tpu_custom_call.1}
  #allocation0 [shape = 'u32[]', space=smem, size = 0x4, offset = 0x4, fixed_abs, tag = 'smem constant byte address 0x4 - core index']
  #allocation1 [shape = 'u32[144,128]{1,0:T(1,128)}', space=vmem, size = 0x12000, scoped, tag = 'internal scratch']
  %s0 = inlined_call_operand.vmem [shape: f32[2,50,128], index: 0, kind: input, shape index: {}]
  %s1 = inlined_call_operand.hbm [shape: f32[25,128,256], index: 1, kind: input, shape index: {}]
  %s2 = inlined_call_operand.hbm [shape: f32[1,256], index: 2, kind: input, shape index: {}]
  %s3 = inlined_call_operand.vmem [shape: f32[256,64], index: 3, kind: input, shape index: {}]
  %s4 = inlined_call_operand.hbm [shape: f32[1,64], index: 4, kind: input, shape index: {}]
  %s5 = inlined_call_operand.vmem [shape: f32[64,32], index: 5, kind: input, shape index: {}]
  %s6 = inlined_call_operand.hbm [shape: f32[1,32], index: 6, kind: input, shape index: {}]
  %s7 = inlined_call_operand.vmem [shape: f32[32,8], index: 7, kind: input, shape index: {}]
  %s8 = inlined_call_operand.hbm [shape: f32[1,8], index: 8, kind: input, shape index: {}]
  %s9 = inlined_call_operand.vmem [shape: f32[2,16,8], index: 9, kind: output, shape index: {}]
  %s10 = sld [smem:[#allocation0]]
  $region89: #{tpu_custom_call.1} parent=0
    _
  %s12 = ssub.s32 1, %s10
  %s13 = scalar_select 0, %s12, %s10
  $region1: #{tpu_custom_call.1} parent=0
    #allocation2 [shape = 'u8[3276800]{0}', space=vmem, size = 0x320000, scoped, tag = 'input window, operand 1, single buffered']
    #allocation3 [shape = 's32[2]{0}', space=sflag, size = 0x8, scoped, tag = 'scoped memory for tpu_custom_call.1']
    #allocation4 [shape = 'u8[1024]{0}', space=vmem, size = 0x400, scoped, tag = 'input window, operand 2, single buffered']
    #allocation5 [shape = 's32[1]{0}', space=sflag, size = 0x4, scoped, tag = 'scoped memory for tpu_custom_call.1']
    #allocation6 [shape = 'u8[512]{0}', space=vmem, size = 0x400, scoped, tag = 'input window, operand 4, single buffered']
    #allocation7 [shape = 'u8[512]{0}', space=vmem, size = 0x400, scoped, tag = 'input window, operand 6, single buffered']
    #allocation8 [shape = 's32[1]{0}', space=sflag, size = 0x4, scoped, tag = 'scoped memory for tpu_custom_call.1']
    #allocation9 [shape = 'u8[512]{0}', space=vmem, size = 0x400, scoped, tag = 'input window, operand 8, single buffered']
    %14 = vsyncpa [#allocation3], 0
    %15 = vsyncpa [#allocation5], 0
    %16 = vsyncpa [#allocation8], 0
    loop: start=0, step=1, limit=4
    $region2: #{tpu_custom_call.1} parent=1 // loop_pre_header
      _
    $region3: #{tpu_custom_call.1} parent=1 // loop_header
      %s18 = sphi 0, %s22
      %p19 = scmp.ge.s32.totalorder %s18, 4
      %s28 = sphi 0, %s30
      %s31 = sphi 0, %s28
      %s32 = sphi 0, %s31
      %s48 = sphi 0, %s32
      %s52 = sphi 0, %s52
      %s54 = sphi 0, %s52
      %s55 = sphi 0, %s54
      %s69 = sphi 0, %s55
      %s73 = sphi 0, %s73
      %s75 = sphi 0, %s73
      %s76 = sphi 0, %s75
      %s90 = sphi 0, %s76
      %s94 = sphi 0, %s94
      %s96 = sphi 0, %s94
      %s97 = sphi 0, %s96
      %s111 = sphi 0, %s97
      %s115 = sphi 0, %s115
      %s117 = sphi 0, %s115
      %s118 = sphi 0, %s117
      %s132 = sphi 0, %s118
      %s136 = sphi 0, %s136
      %s138 = sphi 0, %s136
      %s139 = sphi 0, %s138
      %s153 = sphi 0, %s139
      %s157 = sphi 0, %s157
      %s159 = sphi 0, %s157
      %s160 = sphi 0, %s159
      %s174 = sphi 0, %s160
      %s178 = sphi 0, %s178
      %s180 = sphi 0, %s178
      %s181 = sphi 0, %s180
      %s195 = sphi 0, %s181
      %s199 = sphi 0, %s199
      %s201 = sphi 0, %s199
      %s202 = sphi 0, %s201
      %s216 = sphi 0, %s202
      %s222 = sphi 0, %s224
      %s225 = sphi 0, %s222
      %s226 = sphi 0, %s225
      %s242 = sphi 0, %s226
    $region4: #{tpu_custom_call.1} parent=1 // loop_header_branch
      %21 = sbr.rel (%p19) target = $region8
    $region5: #{tpu_custom_call.1} parent=1 // loop_body
      %s23 = ssub.s32 %s18, 1
      %s24 = ssub.s32 %s18, 2
      %s25 = sadd.s32 %s18, 1
      %s26 = ssub.s32 %s18, %s25
      %p27 = scmp.eq.s32.totalorder %s26, 0
      %s29 = sadd.s32 %s28, 1
      %s30 = scalar_select %p27, %s28, %s29
      %p33 = pneg %p27
      %p34 = scmp.eq.s32.totalorder %s18, 1
      %p35 = por %p33, %p34
      %p36 = scmp.ne.s32.totalorder %s28, %s31
      %p37 = scmp.eq.s32.totalorder %s18, 0
      %p38 = por %p36, %p37
      %p39 = scmp.ne.s32.totalorder %s28, %s31
      %p40 = scmp.eq.s32.totalorder %s23, 1
      %p41 = por %p39, %p40
      %p42 = scmp.ne.s32.totalorder %s31, %s32
      %p43 = scmp.eq.s32.totalorder %s23, 0
      %p44 = por %p42, %p43
      %p45 = scmp.ne.s32.totalorder %s31, %s32
      %p46 = scmp.eq.s32.totalorder %s24, 1
      %p47 = por %p45, %p46
      %p49 = scmp.ne.s32.totalorder %s32, %s48
      %p50 = scmp.eq.s32.totalorder %s24, 0
      %p51 = por %p49, %p50
      %s53 = sadd.s32 %s52, 1
      %p56 = scmp.eq.s32.totalorder %s18, 1
      %p57 = scmp.ne.s32.totalorder %s52, %s54
      %p58 = scmp.eq.s32.totalorder %s18, 0
      %p59 = por %p57, %p58
      %p60 = scmp.ne.s32.totalorder %s52, %s54
      %p61 = scmp.eq.s32.totalorder %s23, 1
      %p62 = por %p60, %p61
      %p63 = scmp.ne.s32.totalorder %s54, %s55
      %p64 = scmp.eq.s32.totalorder %s23, 0
      %p65 = por %p63, %p64
      %p66 = scmp.ne.s32.totalorder %s54, %s55
      %p67 = scmp.eq.s32.totalorder %s24, 1
      %p68 = por %p66, %p67
      %p70 = scmp.ne.s32.totalorder %s55, %s69
      %p71 = scmp.eq.s32.totalorder %s24, 0
      %p72 = por %p70, %p71
      %s74 = sadd.s32 %s73, 1
      %p77 = scmp.eq.s32.totalorder %s18, 1
      %p78 = scmp.ne.s32.totalorder %s73, %s75
      %p79 = scmp.eq.s32.totalorder %s18, 0
      %p80 = por %p78, %p79
      %p81 = scmp.ne.s32.totalorder %s73, %s75
      %p82 = scmp.eq.s32.totalorder %s23, 1
      %p83 = por %p81, %p82
      %p84 = scmp.ne.s32.totalorder %s75, %s76
      %p85 = scmp.eq.s32.totalorder %s23, 0
      %p86 = por %p84, %p85
      %p87 = scmp.ne.s32.totalorder %s75, %s76
      %p88 = scmp.eq.s32.totalorder %s24, 1
      %p89 = por %p87, %p88
      %p91 = scmp.ne.s32.totalorder %s76, %s90
      %p92 = scmp.eq.s32.totalorder %s24, 0
      %p93 = por %p91, %p92
      %s95 = sadd.s32 %s94, 1
      %p98 = scmp.eq.s32.totalorder %s18, 1
      %p99 = scmp.ne.s32.totalorder %s94, %s96
      %p100 = scmp.eq.s32.totalorder %s18, 0
      %p101 = por %p99, %p100
      %p102 = scmp.ne.s32.totalorder %s94, %s96
      %p103 = scmp.eq.s32.totalorder %s23, 1
      %p104 = por %p102, %p103
      %p105 = scmp.ne.s32.totalorder %s96, %s97
      %p106 = scmp.eq.s32.totalorder %s23, 0
      %p107 = por %p105, %p106
      %p108 = scmp.ne.s32.totalorder %s96, %s97
      %p109 = scmp.eq.s32.totalorder %s24, 1
      %p110 = por %p108, %p109
      %p112 = scmp.ne.s32.totalorder %s97, %s111
      %p113 = scmp.eq.s32.totalorder %s24, 0
      %p114 = por %p112, %p113
      %s116 = sadd.s32 %s115, 1
      %p119 = scmp.eq.s32.totalorder %s18, 1
      %p120 = scmp.ne.s32.totalorder %s115, %s117
      %p121 = scmp.eq.s32.totalorder %s18, 0
      %p122 = por %p120, %p121
      %p123 = scmp.ne.s32.totalorder %s115, %s117
      %p124 = scmp.eq.s32.totalorder %s23, 1
      %p125 = por %p123, %p124
      %p126 = scmp.ne.s32.totalorder %s117, %s118
      %p127 = scmp.eq.s32.totalorder %s23, 0
      %p128 = por %p126, %p127
      %p129 = scmp.ne.s32.totalorder %s117, %s118
      %p130 = scmp.eq.s32.totalorder %s24, 1
      %p131 = por %p129, %p130
      %p133 = scmp.ne.s32.totalorder %s118, %s132
      %p134 = scmp.eq.s32.totalorder %s24, 0
      %p135 = por %p133, %p134
      %s137 = sadd.s32 %s136, 1
      %p140 = scmp.eq.s32.totalorder %s18, 1
      %p141 = scmp.ne.s32.totalorder %s136, %s138
      %p142 = scmp.eq.s32.totalorder %s18, 0
      %p143 = por %p141, %p142
      %p144 = scmp.ne.s32.totalorder %s136, %s138
      %p145 = scmp.eq.s32.totalorder %s23, 1
      %p146 = por %p144, %p145
      %p147 = scmp.ne.s32.totalorder %s138, %s139
      %p148 = scmp.eq.s32.totalorder %s23, 0
      %p149 = por %p147, %p148
      %p150 = scmp.ne.s32.totalorder %s138, %s139
      %p151 = scmp.eq.s32.totalorder %s24, 1
      %p152 = por %p150, %p151
      %p154 = scmp.ne.s32.totalorder %s139, %s153
      %p155 = scmp.eq.s32.totalorder %s24, 0
      %p156 = por %p154, %p155
      %s158 = sadd.s32 %s157, 1
      %p161 = scmp.eq.s32.totalorder %s18, 1
      %p162 = scmp.ne.s32.totalorder %s157, %s159
      %p163 = scmp.eq.s32.totalorder %s18, 0
      %p164 = por %p162, %p163
      %p165 = scmp.ne.s32.totalorder %s157, %s159
      %p166 = scmp.eq.s32.totalorder %s23, 1
      %p167 = por %p165, %p166
      %p168 = scmp.ne.s32.totalorder %s159, %s160
      %p169 = scmp.eq.s32.totalorder %s23, 0
      %p170 = por %p168, %p169
      %p171 = scmp.ne.s32.totalorder %s159, %s160
      %p172 = scmp.eq.s32.totalorder %s24, 1
      %p173 = por %p171, %p172
      %p175 = scmp.ne.s32.totalorder %s160, %s174
      %p176 = scmp.eq.s32.totalorder %s24, 0
      %p177 = por %p175, %p176
      %s179 = sadd.s32 %s178, 1
      %p182 = scmp.eq.s32.totalorder %s18, 1
      %p183 = scmp.ne.s32.totalorder %s178, %s180
      %p184 = scmp.eq.s32.totalorder %s18, 0
      %p185 = por %p183, %p184
      %p186 = scmp.ne.s32.totalorder %s178, %s180
      %p187 = scmp.eq.s32.totalorder %s23, 1
      %p188 = por %p186, %p187
      %p189 = scmp.ne.s32.totalorder %s180, %s181
      %p190 = scmp.eq.s32.totalorder %s23, 0
      %p191 = por %p189, %p190
      %p192 = scmp.ne.s32.totalorder %s180, %s181
      %p193 = scmp.eq.s32.totalorder %s24, 1
      %p194 = por %p192, %p193
      %p196 = scmp.ne.s32.totalorder %s181, %s195
      %p197 = scmp.eq.s32.totalorder %s24, 0
      %p198 = por %p196, %p197
      %s200 = sadd.s32 %s199, 1
      %p203 = scmp.eq.s32.totalorder %s18, 1
      %p204 = scmp.ne.s32.totalorder %s199, %s201
      %p205 = scmp.eq.s32.totalorder %s18, 0
      %p206 = por %p204, %p205
      %p207 = scmp.ne.s32.totalorder %s199, %s201
      %p208 = scmp.eq.s32.totalorder %s23, 1
      %p209 = por %p207, %p208
      %p210 = scmp.ne.s32.totalorder %s201, %s202
      %p211 = scmp.eq.s32.totalorder %s23, 0
      %p212 = por %p210, %p211
      %p213 = scmp.ne.s32.totalorder %s201, %s202
      %p214 = scmp.eq.s32.totalorder %s24, 1
      %p215 = por %p213, %p214
      %p217 = scmp.ne.s32.totalorder %s202, %s216
      %p218 = scmp.eq.s32.totalorder %s24, 0
      %p219 = por %p217, %p218
      %s220 = ssub.s32 %s18, %s25
      %p221 = scmp.eq.s32.totalorder %s220, 0
      %s223 = sadd.s32 %s222, 1
      %s224 = scalar_select %p221, %s222, %s223
      %p227 = pneg %p221
      %p228 = scmp.eq.s32.totalorder %s18, 1
      %p229 = por %p227, %p228
      %p230 = scmp.ne.s32.totalorder %s222, %s225
      %p231 = scmp.eq.s32.totalorder %s18, 0
      %p232 = por %p230, %p231
      %p233 = scmp.ne.s32.totalorder %s222, %s225
      %p234 = scmp.eq.s32.totalorder %s23, 1
      %p235 = por %p233, %p234
      %p236 = scmp.ne.s32.totalorder %s225, %s226
      %p237 = scmp.eq.s32.totalorder %s23, 0
      %p238 = por %p236, %p237
      %p239 = scmp.ne.s32.totalorder %s225, %s226
      %p240 = scmp.eq.s32.totalorder %s24, 1
      %p241 = por %p239, %p240
      %p243 = scmp.ne.s32.totalorder %s226, %s242
      %p244 = scmp.eq.s32.totalorder %s24, 0
      %p245 = por %p243, %p244
      %p246 = scmp.le.s32.totalorder 1, %s18
      %p247 = scmp.lt.s32.totalorder %s18, 3
      %p248 = pnand %p246, %p247
      %p249 = pneg %p248
      // Predicated region
      $region9: #{tpu_custom_call.1} parent=5 // pred_check
        _
      $region10: #{tpu_custom_call.1} parent=5 // pred_check_branch
        %251 = sbr.rel (%p248) target = $region12
      $region11: #{tpu_custom_call.1} parent=5 // pred_region
        %s252 = ssub.s32 %s18, 1
        // Predicated region
        $region13: #{tpu_custom_call.1} parent=11 // pred_check
          %p253 = pneg %p65
        $region14: #{tpu_custom_call.1} parent=11 // pred_check_branch
          %255 = sbr.rel (%p253) target = $region16
        $region15: #{tpu_custom_call.1} parent=11 // pred_region
          %s257 = ssub.s32 102400, 102400
          %258 = vsyncadd [#allocation3], %s257
          %s259 = sshll.u32 [#allocation2], 4
          %s260 = int_to_ptr.vmem [resolvable:$true] %s259
          %265 = dma.hbm_to_vmem [thread:$0]  %s1, 102400, %s260, [#allocation3], 256, 256, 16
        $region16: #{tpu_custom_call.1} parent=11 // pred_fallthru
          _
        // Predicated region
        $region17: #{tpu_custom_call.1} parent=11 // pred_check
          %p266 = pneg %p86
        $region18: #{tpu_custom_call.1} parent=11 // pred_check_branch
          %268 = sbr.rel (%p266) target = $region20
        $region19: #{tpu_custom_call.1} parent=11 // pred_region
          %s270 = ssub.s32 32, 32
          %271 = vsyncadd [#allocation5], %s270
          %s273 = sshll.u32 [#allocation4], 4
          %s274 = int_to_ptr.vmem [resolvable:$true] %s273
          %276 = dma.hbm_to_vmem [thread:$0]  %s2, 32, %s274, [#allocation5]
        $region20: #{tpu_custom_call.1} parent=11 // pred_fallthru
          _
        // Predicated region
        $region21: #{tpu_custom_call.1} parent=11 // pred_check
          %p277 = pneg %p107
        $region22: #{tpu_custom_call.1} parent=11 // pred_check_branch
          %279 = sbr.rel (%p277) target = $region24
        $region23: #{tpu_custom_call.1} parent=11 // pred_region
          _
        $region24: #{tpu_custom_call.1} parent=11 // pred_fallthru
          _
        // Predicated region
        $region25: #{tpu_custom_call.1} parent=11 // pred_check
          %p280 = pneg %p128
        $region26: #{tpu_custom_call.1} parent=11 // pred_check_branch
          %282 = sbr.rel (%p280) target = $region28
        $region27: #{tpu_custom_call.1} parent=11 // pred_region
          %s284 = ssub.s32 16, 16
          %285 = vsyncadd [#allocation5], %s284
          %s287 = sshll.u32 [#allocation6], 4
          %s288 = int_to_ptr.vmem [resolvable:$true] %s287
          %290 = dma.hbm_to_vmem [thread:$0]  %s4, 16, %s288, [#allocation5]
        $region28: #{tpu_custom_call.1} parent=11 // pred_fallthru
          _
        // Predicated region
        $region29: #{tpu_custom_call.1} parent=11 // pred_check
          %p291 = pneg %p149
        $region30: #{tpu_custom_call.1} parent=11 // pred_check_branch
          %293 = sbr.rel (%p291) target = $region32
        $region31: #{tpu_custom_call.1} parent=11 // pred_region
          _
        $region32: #{tpu_custom_call.1} parent=11 // pred_fallthru
          _
        // Predicated region
        $region33: #{tpu_custom_call.1} parent=11 // pred_check
          %p294 = pneg %p170
        $region34: #{tpu_custom_call.1} parent=11 // pred_check_branch
          %296 = sbr.rel (%p294) target = $region36
        $region35: #{tpu_custom_call.1} parent=11 // pred_region
          %s298 = ssub.s32 16, 16
          %299 = vsyncadd [#allocation8], %s298
          %s301 = sshll.u32 [#allocation7], 4
          %s302 = int_to_ptr.vmem [resolvable:$true] %s301
          %304 = dma.hbm_to_vmem [thread:$0]  %s6, 16, %s302, [#allocation8]
        $region36: #{tpu_custom_call.1} parent=11 // pred_fallthru
          _
        // Predicated region
        $region37: #{tpu_custom_call.1} parent=11 // pred_check
          %p305 = pneg %p191
        $region38: #{tpu_custom_call.1} parent=11 // pred_check_branch
          %307 = sbr.rel (%p305) target = $region40
        $region39: #{tpu_custom_call.1} parent=11 // pred_region
          _
        $region40: #{tpu_custom_call.1} parent=11 // pred_fallthru
          _
        // Predicated region
        $region41: #{tpu_custom_call.1} parent=11 // pred_check
          %p308 = pneg %p212
        $region42: #{tpu_custom_call.1} parent=11 // pred_check_branch
          %310 = sbr.rel (%p308) target = $region44
        $region43: #{tpu_custom_call.1} parent=11 // pred_region
          %s312 = ssub.s32 16, 16
          %313 = vsyncadd [#allocation8], %s312
          %s315 = sshll.u32 [#allocation9], 4
          %s316 = int_to_ptr.vmem [resolvable:$true] %s315
          %318 = dma.hbm_to_vmem [thread:$0]  %s8, 16, %s316, [#allocation8]
        $region44: #{tpu_custom_call.1} parent=11 // pred_fallthru
          _
      $region12: #{tpu_custom_call.1} parent=5 // pred_fallthru
        _
      %p319 = scmp.lt.s32.totalorder %s18, 2
      // Predicated region
      $region45: #{tpu_custom_call.1} parent=5 // pred_check
        %p320 = pneg %p319
      $region46: #{tpu_custom_call.1} parent=5 // pred_check_branch
        %322 = sbr.rel (%p320) target = $region48
      $region47: #{tpu_custom_call.1} parent=5 // pred_region
        // Predicated region
        $region49: #{tpu_custom_call.1} parent=47 // pred_check
          %p323 = pneg %p38
        $region50: #{tpu_custom_call.1} parent=47 // pred_check_branch
          %325 = sbr.rel (%p323) target = $region52
        $region51: #{tpu_custom_call.1} parent=47 // pred_region
          %p326 = scmp.lt.s32.totalorder %s18, 1
          %s327 = scalar_select %p326, %s18, 1
          %s328 = smul.addr %s327, 7
          %s329 = smul.addr %s328, 8
          %s330 = scalar_lea.vmem %s0, %s329
        $region52: #{tpu_custom_call.1} parent=47 // pred_fallthru
          _
      $region48: #{tpu_custom_call.1} parent=5 // pred_fallthru
        _
      %p331 = scmp.le.s32.totalorder 1, %s18
      %p332 = scmp.lt.s32.totalorder %s18, 3
      %p333 = pnand %p331, %p332
      %p334 = pneg %p333
      // Predicated region
      $region53: #{tpu_custom_call.1} parent=5 // pred_check
        _
      $region54: #{tpu_custom_call.1} parent=5 // pred_check_branch
        %336 = sbr.rel (%p333) target = $region56
      $region55: #{tpu_custom_call.1} parent=5 // pred_region
        %s337 = ssub.s32 %s18, 1
        // Predicated region
        $region57: #{tpu_custom_call.1} parent=55 // pred_check
          %p338 = pneg %p65
        $region58: #{tpu_custom_call.1} parent=55 // pred_check_branch
          %340 = sbr.rel (%p338) target = $region60
        $region59: #{tpu_custom_call.1} parent=55 // pred_region
          %341 = dma.done [#allocation3], 102400
        $region60: #{tpu_custom_call.1} parent=55 // pred_fallthru
          _
        // Predicated region
        $region61: #{tpu_custom_call.1} parent=55 // pred_check
          %p342 = pneg %p86
        $region62: #{tpu_custom_call.1} parent=55 // pred_check_branch
          %344 = sbr.rel (%p342) target = $region64
        $region63: #{tpu_custom_call.1} parent=55 // pred_region
          %345 = dma.done [#allocation5], 32
        $region64: #{tpu_custom_call.1} parent=55 // pred_fallthru
          _
        // Predicated region
        $region65: #{tpu_custom_call.1} parent=55 // pred_check
          %p346 = pneg %p128
        $region66: #{tpu_custom_call.1} parent=55 // pred_check_branch
          %348 = sbr.rel (%p346) target = $region68
        $region67: #{tpu_custom_call.1} parent=55 // pred_region
          %349 = dma.done [#allocation5], 16
        $region68: #{tpu_custom_call.1} parent=55 // pred_fallthru
          _
        // Predicated region
        $region69: #{tpu_custom_call.1} parent=55 // pred_check
          %p350 = pneg %p170
        $region70: #{tpu_custom_call.1} parent=55 // pred_check_branch
          %352 = sbr.rel (%p350) target = $region72
        $region71: #{tpu_custom_call.1} parent=55 // pred_region
          %353 = dma.done [#allocation8], 16
        $region72: #{tpu_custom_call.1} parent=55 // pred_fallthru
          _
        // Predicated region
        $region73: #{tpu_custom_call.1} parent=55 // pred_check
          %p354 = pneg %p212
        $region74: #{tpu_custom_call.1} parent=55 // pred_check_branch
          %356 = sbr.rel (%p354) target = $region76
        $region75: #{tpu_custom_call.1} parent=55 // pred_region
          %357 = dma.done [#allocation8], 16
        $region76: #{tpu_custom_call.1} parent=55 // pred_fallthru
          _
        %p358 = scmp.lt.s32.totalorder %s23, 1
        %s359 = scalar_select %p358, %s23, 1
        %s360 = smul.addr %s359, 7
        %s361 = smul.addr %s360, 8
        %s362 = scalar_lea.vmem %s0, %s361
        %p363 = pneg %p44
        %p364 = pneg %p41
        %p365 = pneg %p65
        %p366 = pneg %p62
        %p367 = pneg %p86
        %p368 = pneg %p83
        %p369 = pneg %p107
        %p370 = pneg %p104
        %p371 = pneg %p128
        %p372 = pneg %p125
        %p373 = pneg %p149
        %p374 = pneg %p146
        %p375 = pneg %p170
        %p376 = pneg %p167
        %p377 = pneg %p191
        %p378 = pneg %p188
        %p379 = pneg %p212
        %p380 = pneg %p209
        %p381 = pneg %p238
        %p382 = pneg %p235
        %p383 = scmp.lt.s32.totalorder %s23, 1
        %s384 = scalar_select %p383, %s23, 1
        %s385 = smul.addr %s384, 2
        %s386 = smul.addr %s385, 8
        %s387 = scalar_lea.vmem %s9, %s386
        %p388 = scmp.lt.s32.totalorder %s23, 1
        %s389 = scalar_select %p388, %s23, 1
        %s390 = smul.addr %s389, 7
        %s391 = smul.addr %s390, 8
        %s392 = scalar_lea.vmem %s0, %s391
        %p393 = scmp.lt.s32.totalorder %s23, 1
        %s394 = scalar_select %p393, %s23, 1
        %s395 = smul.addr %s394, 2
        %s396 = smul.addr %s395, 8
        %s397 = scalar_lea.vmem %s9, %s396
        %v398 = vld [vmem:[%s392] sm:$0xff]
        %v399 = vld [vmem:[%s392 + $0x8] sm:$0xff]
        %v400 = vld [vmem:[%s392 + $0x10] sm:$0xff]
        %v401 = vld [vmem:[%s392 + $0x18] sm:$0xff]
        %v402 = vld [vmem:[%s392 + $0x20] sm:$0xff]
        %v403 = vld [vmem:[%s392 + $0x28] sm:$0xff]
        %v404 = vld [vmem:[%s392 + $0x30] sm:$0x3]
        %v405 = vld [vmem:[#allocation2] sm:$0xff]
        %v406 = vld [vmem:[#allocation2 + $0x8] sm:$0xff]
        %v407 = vld [vmem:[#allocation2 + $0x10] sm:$0xff]
        %v408 = vld [vmem:[#allocation2 + $0x18] sm:$0xff]
        %v409 = vld [vmem:[#allocation2 + $0x20] sm:$0xff]
        %v410 = vld [vmem:[#allocation2 + $0x28] sm:$0xff]
        %v411 = vld [vmem:[#allocation2 + $0x30] sm:$0xff]
        %v412 = vld [vmem:[#allocation2 + $0x38] sm:$0xff]
        %v413 = vld [vmem:[#allocation2 + $0x40] sm:$0xff]
        %v414 = vld [vmem:[#allocation2 + $0x48] sm:$0xff]
        %v415 = vld [vmem:[#allocation2 + $0x50] sm:$0xff]
        %v416 = vld [vmem:[#allocation2 + $0x58] sm:$0xff]
        %v417 = vld [vmem:[#allocation2 + $0x60] sm:$0xff]
        %v418 = vld [vmem:[#allocation2 + $0x68] sm:$0xff]
        %v419 = vld [vmem:[#allocation2 + $0x70] sm:$0xff]
        %v420 = vld [vmem:[#allocation2 + $0x78] sm:$0xff]
        %v421 = vld [vmem:[#allocation2 + $0x80] sm:$0xff]
        %v422 = vld [vmem:[#allocation2 + $0x88] sm:$0xff]
        %v423 = vld [vmem:[#allocation2 + $0x90] sm:$0xff]
        %v424 = vld [vmem:[#allocation2 + $0x98] sm:$0xff]
        %v425 = vld [vmem:[#allocation2 + $0xa0] sm:$0xff]
        %v426 = vld [vmem:[#allocation2 + $0xa8] sm:$0xff]
        %v427 = vld [vmem:[#allocation2 + $0xb0] sm:$0xff]
        %v428 = vld [vmem:[#allocation2 + $0xb8] sm:$0xff]
        %v429 = vld [vmem:[#allocation2 + $0xc0] sm:$0xff]
        %v430 = vld [vmem:[#allocation2 + $0xc8] sm:$0xff]
        %v431 = vld [vmem:[#allocation2 + $0xd0] sm:$0xff]
        %v432 = vld [vmem:[#allocation2 + $0xd8] sm:$0xff]
        %v433 = vld [vmem:[#allocation2 + $0xe0] sm:$0xff]
        %v434 = vld [vmem:[#allocation2 + $0xe8] sm:$0xff]
        %v435 = vld [vmem:[#allocation2 + $0xf0] sm:$0xff]
        %v436 = vld [vmem:[#allocation2 + $0xf8] sm:$0xff]
        %s437 = scalar_lea.vmem [#allocation2], 256
        %v438 = vld [vmem:[%s437] sm:$0xff]
        %v439 = vld [vmem:[%s437 + $0x8] sm:$0xff]
        %v440 = vld [vmem:[%s437 + $0x10] sm:$0xff]
        %v441 = vld [vmem:[%s437 + $0x18] sm:$0xff]
        %v442 = vld [vmem:[%s437 + $0x20] sm:$0xff]
        %v443 = vld [vmem:[%s437 + $0x28] sm:$0xff]
        %v444 = vld [vmem:[%s437 + $0x30] sm:$0xff]
        %v445 = vld [vmem:[%s437 + $0x38] sm:$0xff]
        %v446 = vld [vmem:[%s437 + $0x40] sm:$0xff]
        %v447 = vld [vmem:[%s437 + $0x48] sm:$0xff]
        %v448 = vld [vmem:[%s437 + $0x50] sm:$0xff]
        %v449 = vld [vmem:[%s437 + $0x58] sm:$0xff]
        %v450 = vld [vmem:[%s437 + $0x60] sm:$0xff]
        %v451 = vld [vmem:[%s437 + $0x68] sm:$0xff]
        %v452 = vld [vmem:[%s437 + $0x70] sm:$0xff]
        %v453 = vld [vmem:[%s437 + $0x78] sm:$0xff]
        %v454 = vld [vmem:[%s437 + $0x80] sm:$0xff]
        %v455 = vld [vmem:[%s437 + $0x88] sm:$0xff]
        %v456 = vld [vmem:[%s437 + $0x90] sm:$0xff]
        %v457 = vld [vmem:[%s437 + $0x98] sm:$0xff]
        %v458 = vld [vmem:[%s437 + $0xa0] sm:$0xff]
        %v459 = vld [vmem:[%s437 + $0xa8] sm:$0xff]
        %v460 = vld [vmem:[%s437 + $0xb0] sm:$0xff]
        %v461 = vld [vmem:[%s437 + $0xb8] sm:$0xff]
        %v462 = vld [vmem:[%s437 + $0xc0] sm:$0xff]
        %v463 = vld [vmem:[%s437 + $0xc8] sm:$0xff]
        %v464 = vld [vmem:[%s437 + $0xd0] sm:$0xff]
        %v465 = vld [vmem:[%s437 + $0xd8] sm:$0xff]
        %v466 = vld [vmem:[%s437 + $0xe0] sm:$0xff]
        %v467 = vld [vmem:[%s437 + $0xe8] sm:$0xff]
        %v468 = vld [vmem:[%s437 + $0xf0] sm:$0xff]
        %v469 = vld [vmem:[%s437 + $0xf8] sm:$0xff]
        %vm473 = vcmask 1045504
        %v474 = vrot.slane %v398, 2
        %v475 = vrot.slane %v399, 2
        %v476 = vsel %vm473, %v474, %v475
        %v477 = vrot.slane %v400, 2
        %v478 = vsel %vm473, %v475, %v477
        %481 = vmatprep.subr.mxu0 %v439
        %482 = vmatpush1.msra.mxu0 %v438
        %483 = vmatprep.subr.mxu0 %v441
        %484 = vmatpush1.msra.mxu0 %v440
        %485 = vmatprep.subr.mxu0 %v443
        %486 = vmatpush1.msra.mxu0 %v442
        %487 = vmatprep.subr.mxu0 %v445
        %488 = vmatpush1.msra.mxu0 %v444
        %489 = vmatprep.subr.mxu0 %v447
        %490 = vmatpush1.msra.mxu0 %v446
        %491 = vmatprep.subr.mxu0 %v449
        %492 = vmatpush1.msra.mxu0 %v448
        %493 = vmatprep.subr.mxu0 %v451
        %494 = vmatpush1.msra.mxu0 %v450
        %495 = vmatprep.subr.mxu0 %v453
        %496 = vmatpush1.msra.mxu0 %v452
        %497 = vmatprep.subr.mxu0 %v455
        %498 = vmatpush1.msra.mxu0 %v454
        %499 = vmatprep.subr.mxu0 %v457
        %500 = vmatpush1.msra.mxu0 %v456
        %501 = vmatprep.subr.mxu0 %v459
        %502 = vmatpush1.msra.mxu0 %v458
        %503 = vmatprep.subr.mxu0 %v461
        %504 = vmatpush1.msra.mxu0 %v460
        %505 = vmatprep.subr.mxu0 %v463
        %506 = vmatpush1.msra.mxu0 %v462
        %507 = vmatprep.subr.mxu0 %v465
        %508 = vmatpush1.msra.mxu0 %v464
        %509 = vmatprep.subr.mxu0 %v467
        %510 = vmatpush1.msra.mxu0 %v466
        %511 = vmatprep.subr.mxu0 %v469
        %512 = vmatpush1.msra.mxu0 %v468
        %513 = vmatprep.subr.mxu0 0.0
        %514 = vmatpush1.msra.mxu0 0.0
        %515 = vmatprep.subr.mxu0 0.0
        %516 = vmatpush1.msra.mxu0 0.0
        %517 = vmatprep.subr.mxu0 0.0
        %518 = vmatpush1.msra.mxu0 0.0
        %519 = vmatprep.subr.mxu0 0.0
        %520 = vmatpush1.msra.mxu0 0.0
        %521 = vmatprep.subr.mxu0 0.0
        %522 = vmatpush1.msra.mxu0 0.0
        %523 = vmatprep.subr.mxu0 0.0
        %524 = vmatpush1.msra.mxu0 0.0
        %525 = vmatprep.subr.mxu0 0.0
        %526 = vmatpush1.msra.mxu0 0.0
        %527 = vmatprep.subr.mxu0 0.0
        %528 = vmatpush1.msra.mxu0 0.0
        %529 = vmatprep.subr.mxu0 0.0
        %530 = vmatpush1.msra.mxu0 0.0
        %531 = vmatprep.subr.mxu0 0.0
        %532 = vmatpush1.msra.mxu0 0.0
        %533 = vmatprep.subr.mxu0 0.0
        %534 = vmatpush1.msra.mxu0 0.0
        %535 = vmatprep.subr.mxu0 0.0
        %536 = vmatpush1.msra.mxu0 0.0
        %537 = vmatprep.subr.mxu0 0.0
        %538 = vmatpush1.msra.mxu0 0.0
        %539 = vmatprep.subr.mxu0 0.0
        %540 = vmatpush1.msra.mxu0 0.0
        %541 = vmatprep.subr.mxu0 0.0
        %542 = vmatpush1.msra.mxu0 0.0
        %543 = vmatprep.subr.mxu0 0.0
        %544 = vmatpush1.msra.mxu0 0.0
        %545 = vmatprep.mubr.f32.mxu0 0.0
        %546 = vmatmul.mubr.f32.gmra.mrb[0].mxu0 %v476
        %v547 = vpop.f32.mrb[0].mxu0
        %v548 = vadd.f32 0.0, %v547
        %v549 = vpop.f32.mrb[0].mxu0
        %v550 = vadd.f32 0.0, %v549
        %551 = vmatprep.mubr.f32.mxu0 0.0
        %552 = vmatmul.mubr.f32.gmra.mrb[0].mxu0 %v478
        %v553 = vpop.f32.mrb[0].mxu0
        %v554 = vadd.f32 0.0, %v553
        %v555 = vpop.f32.mrb[0].mxu0
        %v556 = vadd.f32 0.0, %v555
        %557 = vdwg.mxu0
        %558 = vmatprep.subr.mxu0 %v406
        %559 = vmatpush1.msra.mxu0 %v405
        %560 = vmatprep.subr.mxu0 %v408
        %561 = vmatpush1.msra.mxu0 %v407
        %562 = vmatprep.subr.mxu0 %v410
        %563 = vmatpush1.msra.mxu0 %v409
        %564 = vmatprep.subr.mxu0 %v412
        %565 = vmatpush1.msra.mxu0 %v411
        %566 = vmatprep.subr.mxu0 %v414
        %567 = vmatpush1.msra.mxu0 %v413
        %568 = vmatprep.subr.mxu0 %v416
        %569 = vmatpush1.msra.mxu0 %v415
        %570 = vmatprep.subr.mxu0 %v418
        %571 = vmatpush1.msra.mxu0 %v417
        %572 = vmatprep.subr.mxu0 %v420
        %573 = vmatpush1.msra.mxu0 %v419
        %574 = vmatprep.subr.mxu0 %v422
        %575 = vmatpush1.msra.mxu0 %v421
        %576 = vmatprep.subr.mxu0 %v424
        %577 = vmatpush1.msra.mxu0 %v423
        %578 = vmatprep.subr.mxu0 %v426
        %579 = vmatpush1.msra.mxu0 %v425
        %580 = vmatprep.subr.mxu0 %v428
        %581 = vmatpush1.msra.mxu0 %v427
        %582 = vmatprep.subr.mxu0 %v430
        %583 = vmatpush1.msra.mxu0 %v429
        %584 = vmatprep.subr.mxu0 %v432
        %585 = vmatpush1.msra.mxu0 %v431
        %586 = vmatprep.subr.mxu0 %v434
        %587 = vmatpush1.msra.mxu0 %v433
        %588 = vmatprep.subr.mxu0 %v436
        %589 = vmatpush1.msra.mxu0 %v435
        %590 = vmatprep.subr.mxu0 0.0
        %591 = vmatpush1.msra.mxu0 0.0
        %592 = vmatprep.subr.mxu0 0.0
        %593 = vmatpush1.msra.mxu0 0.0
        %594 = vmatprep.subr.mxu0 0.0
        %595 = vmatpush1.msra.mxu0 0.0
        %596 = vmatprep.subr.mxu0 0.0
        %597 = vmatpush1.msra.mxu0 0.0
        %598 = vmatprep.subr.mxu0 0.0
        %599 = vmatpush1.msra.mxu0 0.0
        %600 = vmatprep.subr.mxu0 0.0
        %601 = vmatpush1.msra.mxu0 0.0
        %602 = vmatprep.subr.mxu0 0.0
        %603 = vmatpush1.msra.mxu0 0.0
        %604 = vmatprep.subr.mxu0 0.0
        %605 = vmatpush1.msra.mxu0 0.0
        %606 = vmatprep.subr.mxu0 0.0
        %607 = vmatpush1.msra.mxu0 0.0
        %608 = vmatprep.subr.mxu0 0.0
        %609 = vmatpush1.msra.mxu0 0.0
        %610 = vmatprep.subr.mxu0 0.0
        %611 = vmatpush1.msra.mxu0 0.0
        %612 = vmatprep.subr.mxu0 0.0
        %613 = vmatpush1.msra.mxu0 0.0
        %614 = vmatprep.subr.mxu0 0.0
        %615 = vmatpush1.msra.mxu0 0.0
        %616 = vmatprep.subr.mxu0 0.0
        %617 = vmatpush1.msra.mxu0 0.0
        %618 = vmatprep.subr.mxu0 0.0
        %619 = vmatpush1.msra.mxu0 0.0
        %620 = vmatprep.subr.mxu0 0.0
        %621 = vmatpush1.msra.mxu0 0.0
        %622 = vmatprep.mubr.f32.mxu0 0.0
        %623 = vmatmul.mubr.f32.gmra.mrb[0].mxu0 %v398
        %v624 = vpop.f32.mrb[0].mxu0
        %v625 = vadd.f32 %v548, %v624
        %v626 = vpop.f32.mrb[0].mxu0
        %v627 = vadd.f32 %v550, %v626
        %628 = vmatprep.mubr.f32.mxu0 0.0
        %629 = vmatmul.mubr.f32.gmra.mrb[0].mxu0 %v399
        %v630 = vpop.f32.mrb[0].mxu0
        %v631 = vadd.f32 %v554, %v630
        %v632 = vpop.f32.mrb[0].mxu0
        %v633 = vadd.f32 %v556, %v632
        %634 = vdwg.mxu0
        %s635 = scalar_lea.vmem [#allocation2], 512
        %v636 = vld [vmem:[%s635] sm:$0xff]
        %v637 = vld [vmem:[%s635 + $0x8] sm:$0xff]
        %v638 = vld [vmem:[%s635 + $0x10] sm:$0xff]
        %v639 = vld [vmem:[%s635 + $0x18] sm:$0xff]
        %v640 = vld [vmem:[%s635 + $0x20] sm:$0xff]
        %v641 = vld [vmem:[%s635 + $0x28] sm:$0xff]
        %v642 = vld [vmem:[%s635 + $0x30] sm:$0xff]
        %v643 = vld [vmem:[%s635 + $0x38] sm:$0xff]
        %v644 = vld [vmem:[%s635 + $0x40] sm:$0xff]
        %v645 = vld [vmem:[%s635 + $0x48] sm:$0xff]
        %v646 = vld [vmem:[%s635 + $0x50] sm:$0xff]
        %v647 = vld [vmem:[%s635 + $0x58] sm:$0xff]
        %v648 = vld [vmem:[%s635 + $0x60] sm:$0xff]
        %v649 = vld [vmem:[%s635 + $0x68] sm:$0xff]
        %v650 = vld [vmem:[%s635 + $0x70] sm:$0xff]
        %v651 = vld [vmem:[%s635 + $0x78] sm:$0xff]
        %v652 = vld [vmem:[%s635 + $0x80] sm:$0xff]
        %v653 = vld [vmem:[%s635 + $0x88] sm:$0xff]
        %v654 = vld [vmem:[%s635 + $0x90] sm:$0xff]
        %v655 = vld [vmem:[%s635 + $0x98] sm:$0xff]
        %v656 = vld [vmem:[%s635 + $0xa0] sm:$0xff]
        %v657 = vld [vmem:[%s635 + $0xa8] sm:$0xff]
        %v658 = vld [vmem:[%s635 + $0xb0] sm:$0xff]
        %v659 = vld [vmem:[%s635 + $0xb8] sm:$0xff]
        %v660 = vld [vmem:[%s635 + $0xc0] sm:$0xff]
        %v661 = vld [vmem:[%s635 + $0xc8] sm:$0xff]
        %v662 = vld [vmem:[%s635 + $0xd0] sm:$0xff]
        %v663 = vld [vmem:[%s635 + $0xd8] sm:$0xff]
        %v664 = vld [vmem:[%s635 + $0xe0] sm:$0xff]
        %v665 = vld [vmem:[%s635 + $0xe8] sm:$0xff]
        %v666 = vld [vmem:[%s635 + $0xf0] sm:$0xff]
        %v667 = vld [vmem:[%s635 + $0xf8] sm:$0xff]
        %vm668 = vcmask 1043456
        %v669 = vrot.slane %v398, 4
        %v670 = vrot.slane %v399, 4
        %v671 = vsel %vm668, %v669, %v670
        %v672 = vrot.slane %v400, 4
        %v673 = vsel %vm668, %v670, %v672
        %676 = vmatprep.subr.mxu0 %v637
        %677 = vmatpush1.msra.mxu0 %v636
        %678 = vmatprep.subr.mxu0 %v639
        %679 = vmatpush1.msra.mxu0 %v638
        %680 = vmatprep.subr.mxu0 %v641
        %681 = vmatpush1.msra.mxu0 %v640
        %682 = vmatprep.subr.mxu0 %v643
        %683 = vmatpush1.msra.mxu0 %v642
        %684 = vmatprep.subr.mxu0 %v645
        %685 = vmatpush1.msra.mxu0 %v644
        %686 = vmatprep.subr.mxu0 %v647
        %687 = vmatpush1.msra.mxu0 %v646
        %688 = vmatprep.subr.mxu0 %v649
        %689 = vmatpush1.msra.mxu0 %v648
        %690 = vmatprep.subr.mxu0 %v651
        %691 = vmatpush1.msra.mxu0 %v650
        %692 = vmatprep.subr.mxu0 %v653
        %693 = vmatpush1.msra.mxu0 %v652
        %694 = vmatprep.subr.mxu0 %v655
        %695 = vmatpush1.msra.mxu0 %v654
        %696 = vmatprep.subr.mxu0 %v657
        %697 = vmatpush1.msra.mxu0 %v656
        %698 = vmatprep.subr.mxu0 %v659
        %699 = vmatpush1.msra.mxu0 %v658
        %700 = vmatprep.subr.mxu0 %v661
        %701 = vmatpush1.msra.mxu0 %v660
        %702 = vmatprep.subr.mxu0 %v663
        %703 = vmatpush1.msra.mxu0 %v662
        %704 = vmatprep.subr.mxu0 %v665
        %705 = vmatpush1.msra.mxu0 %v664
        %706 = vmatprep.subr.mxu0 %v667
        %707 = vmatpush1.msra.mxu0 %v666
        %708 = vmatprep.subr.mxu0 0.0
        %709 = vmatpush1.msra.mxu0 0.0
        %710 = vmatprep.subr.mxu0 0.0
        %711 = vmatpush1.msra.mxu0 0.0
        %712 = vmatprep.subr.mxu0 0.0
        %713 = vmatpush1.msra.mxu0 0.0
        %714 = vmatprep.subr.mxu0 0.0
        %715 = vmatpush1.msra.mxu0 0.0
        %716 = vmatprep.subr.mxu0 0.0
        %717 = vmatpush1.msra.mxu0 0.0
        %718 = vmatprep.subr.mxu0 0.0
        %719 = vmatpush1.msra.mxu0 0.0
        %720 = vmatprep.subr.mxu0 0.0
        %721 = vmatpush1.msra.mxu0 0.0
        %722 = vmatprep.subr.mxu0 0.0
        %723 = vmatpush1.msra.mxu0 0.0
        %724 = vmatprep.subr.mxu0 0.0
        %725 = vmatpush1.msra.mxu0 0.0
        %726 = vmatprep.subr.mxu0 0.0
        %727 = vmatpush1.msra.mxu0 0.0
        %728 = vmatprep.subr.mxu0 0.0
        %729 = vmatpush1.msra.mxu0 0.0
        %730 = vmatprep.subr.mxu0 0.0
        %731 = vmatpush1.msra.mxu0 0.0
        %732 = vmatprep.subr.mxu0 0.0
        %733 = vmatpush1.msra.mxu0 0.0
        %734 = vmatprep.subr.mxu0 0.0
        %735 = vmatpush1.msra.mxu0 0.0
        %736 = vmatprep.subr.mxu0 0.0
        %737 = vmatpush1.msra.mxu0 0.0
        %738 = vmatprep.subr.mxu0 0.0
        %739 = vmatpush1.msra.mxu0 0.0
        %740 = vmatprep.mubr.f32.mxu0 0.0
        %741 = vmatmul.mubr.f32.gmra.mrb[0].mxu0 %v671
        %v742 = vpop.f32.mrb[0].mxu0
        %v743 = vadd.f32 0.0, %v742
        %v744 = vpop.f32.mrb[0].mxu0
        %v745 = vadd.f32 0.0, %v744
        %746 = vmatprep.mubr.f32.mxu0 0.0
        %747 = vmatmul.mubr.f32.gmra.mrb[0].mxu0 %v673
        %v748 = vpop.f32.mrb[0].mxu0
        %v749 = vadd.f32 0.0, %v748
        %v750 = vpop.f32.mrb[0].mxu0
        %v751 = vadd.f32 0.0, %v750
        %752 = vdwg.mxu0
        %v753 = vadd.f32 %v625, %v743
        %v754 = vadd.f32 %v627, %v745
        %v755 = vadd.f32 %v631, %v749
        %v756 = vadd.f32 %v633, %v751
        %s757 = scalar_lea.vmem [#allocation2], 768
        %v758 = vld [vmem:[%s757] sm:$0xff]
        %v759 = vld [vmem:[%s757 + $0x8] sm:$0xff]
        %v760 = vld [vmem:[%s757 + $0x10] sm:$0xff]
        %v761 = vld [vmem:[%s757 + $0x18] sm:$0xff]
        %v762 = vld [vmem:[%s757 + $0x20] sm:$0xff]
        %v763 = vld [vmem:[%s757 + $0x28] sm:$0xff]
        %v764 = vld [vmem:[%s757 + $0x30] sm:$0xff]
        %v765 = vld [vmem:[%s757 + $0x38] sm:$0xff]
        %v766 = vld [vmem:[%s757 + $0x40] sm:$0xff]
        %v767 = vld [vmem:[%s757 + $0x48] sm:$0xff]
        %v768 = vld [vmem:[%s757 + $0x50] sm:$0xff]
        %v769 = vld [vmem:[%s757 + $0x58] sm:$0xff]
        %v770 = vld [vmem:[%s757 + $0x60] sm:$0xff]
        %v771 = vld [vmem:[%s757 + $0x68] sm:$0xff]
        %v772 = vld [vmem:[%s757 + $0x70] sm:$0xff]
        %v773 = vld [vmem:[%s757 + $0x78] sm:$0xff]
        %v774 = vld [vmem:[%s757 + $0x80] sm:$0xff]
        %v775 = vld [vmem:[%s757 + $0x88] sm:$0xff]
        %v776 = vld [vmem:[%s757 + $0x90] sm:$0xff]
        %v777 = vld [vmem:[%s757 + $0x98] sm:$0xff]
        %v778 = vld [vmem:[%s757 + $0xa0] sm:$0xff]
        %v779 = vld [vmem:[%s757 + $0xa8] sm:$0xff]
        %v780 = vld [vmem:[%s757 + $0xb0] sm:$0xff]
        %v781 = vld [vmem:[%s757 + $0xb8] sm:$0xff]
        %v782 = vld [vmem:[%s757 + $0xc0] sm:$0xff]
        %v783 = vld [vmem:[%s757 + $0xc8] sm:$0xff]
        %v784 = vld [vmem:[%s757 + $0xd0] sm:$0xff]
        %v785 = vld [vmem:[%s757 + $0xd8] sm:$0xff]
        %v786 = vld [vmem:[%s757 + $0xe0] sm:$0xff]
        %v787 = vld [vmem:[%s757 + $0xe8] sm:$0xff]
        %v788 = vld [vmem:[%s757 + $0xf0] sm:$0xff]
        %v789 = vld [vmem:[%s757 + $0xf8] sm:$0xff]
        %vm790 = vcmask 1041408
        %v791 = vrot.slane %v398, 6
        %v792 = vrot.slane %v399, 6
        %v793 = vsel %vm790, %v791, %v792
        %v794 = vrot.slane %v400, 6
        %v795 = vsel %vm790, %v792, %v794
        %798 = vmatprep.subr.mxu0 %v759
        %799 = vmatpush1.msra.mxu0 %v758
        %800 = vmatprep.subr.mxu0 %v761
        %801 = vmatpush1.msra.mxu0 %v760
        %802 = vmatprep.subr.mxu0 %v763
        %803 = vmatpush1.msra.mxu0 %v762
        %804 = vmatprep.subr.mxu0 %v765
        %805 = vmatpush1.msra.mxu0 %v764
        %806 = vmatprep.subr.mxu0 %v767
        %807 = vmatpush1.msra.mxu0 %v766
        %808 = vmatprep.subr.mxu0 %v769
        %809 = vmatpush1.msra.mxu0 %v768
        %810 = vmatprep.subr.mxu0 %v771
        %811 = vmatpush1.msra.mxu0 %v770
        %812 = vmatprep.subr.mxu0 %v773
        %813 = vmatpush1.msra.mxu0 %v772
        %814 = vmatprep.subr.mxu0 %v775
        %815 = vmatpush1.msra.mxu0 %v774
        %816 = vmatprep.subr.mxu0 %v777
        %817 = vmatpush1.msra.mxu0 %v776
        %818 = vmatprep.subr.mxu0 %v779
        %819 = vmatpush1.msra.mxu0 %v778
        %820 = vmatprep.subr.mxu0 %v781
        %821 = vmatpush1.msra.mxu0 %v780
        %822 = vmatprep.subr.mxu0 %v783
        %823 = vmatpush1.msra.mxu0 %v782
        %824 = vmatprep.subr.mxu0 %v785
        %825 = vmatpush1.msra.mxu0 %v784
        %826 = vmatprep.subr.mxu0 %v787
        %827 = vmatpush1.msra.mxu0 %v786
        %828 = vmatprep.subr.mxu0 %v789
        %829 = vmatpush1.msra.mxu0 %v788
        %830 = vmatprep.subr.mxu0 0.0
        %831 = vmatpush1.msra.mxu0 0.0
        %832 = vmatprep.subr.mxu0 0.0
        %833 = vmatpush1.msra.mxu0 0.0
        %834 = vmatprep.subr.mxu0 0.0
        %835 = vmatpush1.msra.mxu0 0.0
        %836 = vmatprep.subr.mxu0 0.0
        %837 = vmatpush1.msra.mxu0 0.0
        %838 = vmatprep.subr.mxu0 0.0
        %839 = vmatpush1.msra.mxu0 0.0
        %840 = vmatprep.subr.mxu0 0.0
        %841 = vmatpush1.msra.mxu0 0.0
        %842 = vmatprep.subr.mxu0 0.0
        %843 = vmatpush1.msra.mxu0 0.0
        %844 = vmatprep.subr.mxu0 0.0
        %845 = vmatpush1.msra.mxu0 0.0
        %846 = vmatprep.subr.mxu0 0.0
        %847 = vmatpush1.msra.mxu0 0.0
        %848 = vmatprep.subr.mxu0 0.0
        %849 = vmatpush1.msra.mxu0 0.0
        %850 = vmatprep.subr.mxu0 0.0
        %851 = vmatpush1.msra.mxu0 0.0
        %852 = vmatprep.subr.mxu0 0.0
        %853 = vmatpush1.msra.mxu0 0.0
        %854 = vmatprep.subr.mxu0 0.0
        %855 = vmatpush1.msra.mxu0 0.0
        %856 = vmatprep.subr.mxu0 0.0
        %857 = vmatpush1.msra.mxu0 0.0
        %858 = vmatprep.subr.mxu0 0.0
        %859 = vmatpush1.msra.mxu0 0.0
        %860 = vmatprep.subr.mxu0 0.0
        %861 = vmatpush1.msra.mxu0 0.0
        %862 = vmatprep.mubr.f32.mxu0 0.0
        %863 = vmatmul.mubr.f32.gmra.mrb[0].mxu0 %v793
        %v864 = vpop.f32.mrb[0].mxu0
        %v865 = vadd.f32 0.0, %v864
        %v866 = vpop.f32.mrb[0].mxu0
        %v867 = vadd.f32 0.0, %v866
        %868 = vmatprep.mubr.f32.mxu0 0.0
        %869 = vmatmul.mubr.f32.gmra.mrb[0].mxu0 %v795
        %v870 = vpop.f32.mrb[0].mxu0
        %v871 = vadd.f32 0.0, %v870
        %v872 = vpop.f32.mrb[0].mxu0
        %v873 = vadd.f32 0.0, %v872
        %874 = vdwg.mxu0
        %v875 = vadd.f32 %v753, %v865
        %v876 = vadd.f32 %v754, %v867
        %v877 = vadd.f32 %v755, %v871
        %v878 = vadd.f32 %v756, %v873
        %s879 = scalar_lea.vmem [#allocation2], 1024
        %v880 = vld [vmem:[%s879] sm:$0xff]
        %v881 = vld [vmem:[%s879 + $0x8] sm:$0xff]
        %v882 = vld [vmem:[%s879 + $0x10] sm:$0xff]
        %v883 = vld [vmem:[%s879 + $0x18] sm:$0xff]
        %v884 = vld [vmem:[%s879 + $0x20] sm:$0xff]
        %v885 = vld [vmem:[%s879 + $0x28] sm:$0xff]
        %v886 = vld [vmem:[%s879 + $0x30] sm:$0xff]
        %v887 = vld [vmem:[%s879 + $0x38] sm:$0xff]
        %v888 = vld [vmem:[%s879 + $0x40] sm:$0xff]
        %v889 = vld [vmem:[%s879 + $0x48] sm:$0xff]
        %v890 = vld [vmem:[%s879 + $0x50] sm:$0xff]
        %v891 = vld [vmem:[%s879 + $0x58] sm:$0xff]
        %v892 = vld [vmem:[%s879 + $0x60] sm:$0xff]
        %v893 = vld [vmem:[%s879 + $0x68] sm:$0xff]
        %v894 = vld [vmem:[%s879 + $0x70] sm:$0xff]
        %v895 = vld [vmem:[%s879 + $0x78] sm:$0xff]
        %v896 = vld [vmem:[%s879 + $0x80] sm:$0xff]
        %v897 = vld [vmem:[%s879 + $0x88] sm:$0xff]
        %v898 = vld [vmem:[%s879 + $0x90] sm:$0xff]
        %v899 = vld [vmem:[%s879 + $0x98] sm:$0xff]
        %v900 = vld [vmem:[%s879 + $0xa0] sm:$0xff]
        %v901 = vld [vmem:[%s879 + $0xa8] sm:$0xff]
        %v902 = vld [vmem:[%s879 + $0xb0] sm:$0xff]
        %v903 = vld [vmem:[%s879 + $0xb8] sm:$0xff]
        %v904 = vld [vmem:[%s879 + $0xc0] sm:$0xff]
        %v905 = vld [vmem:[%s879 + $0xc8] sm:$0xff]
        %v906 = vld [vmem:[%s879 + $0xd0] sm:$0xff]
        %v907 = vld [vmem:[%s879 + $0xd8] sm:$0xff]
        %v908 = vld [vmem:[%s879 + $0xe0] sm:$0xff]
        %v909 = vld [vmem:[%s879 + $0xe8] sm:$0xff]
        %v910 = vld [vmem:[%s879 + $0xf0] sm:$0xff]
        %v911 = vld [vmem:[%s879 + $0xf8] sm:$0xff]
        %912 = vmatprep.subr.mxu0 %v881
        %913 = vmatpush1.msra.mxu0 %v880
        %914 = vmatprep.subr.mxu0 %v883
        %915 = vmatpush1.msra.mxu0 %v882
        %916 = vmatprep.subr.mxu0 %v885
        %917 = vmatpush1.msra.mxu0 %v884
        %918 = vmatprep.subr.mxu0 %v887
        %919 = vmatpush1.msra.mxu0 %v886
        %920 = vmatprep.subr.mxu0 %v889
        %921 = vmatpush1.msra.mxu0 %v888
        %922 = vmatprep.subr.mxu0 %v891
        %923 = vmatpush1.msra.mxu0 %v890
        %924 = vmatprep.subr.mxu0 %v893
        %925 = vmatpush1.msra.mxu0 %v892
        %926 = vmatprep.subr.mxu0 %v895
        %927 = vmatpush1.msra.mxu0 %v894
        %928 = vmatprep.subr.mxu0 %v897
        %929 = vmatpush1.msra.mxu0 %v896
        %930 = vmatprep.subr.mxu0 %v899
        %931 = vmatpush1.msra.mxu0 %v898
        %932 = vmatprep.subr.mxu0 %v901
        %933 = vmatpush1.msra.mxu0 %v900
        %934 = vmatprep.subr.mxu0 %v903
        %935 = vmatpush1.msra.mxu0 %v902
        %936 = vmatprep.subr.mxu0 %v905
        %937 = vmatpush1.msra.mxu0 %v904
        %938 = vmatprep.subr.mxu0 %v907
        %939 = vmatpush1.msra.mxu0 %v906
        %940 = vmatprep.subr.mxu0 %v909
        %941 = vmatpush1.msra.mxu0 %v908
        %942 = vmatprep.subr.mxu0 %v911
        %943 = vmatpush1.msra.mxu0 %v910
        %944 = vmatprep.subr.mxu0 0.0
        %945 = vmatpush1.msra.mxu0 0.0
        %946 = vmatprep.subr.mxu0 0.0
        %947 = vmatpush1.msra.mxu0 0.0
        %948 = vmatprep.subr.mxu0 0.0
        %949 = vmatpush1.msra.mxu0 0.0
        %950 = vmatprep.subr.mxu0 0.0
        %951 = vmatpush1.msra.mxu0 0.0
        %952 = vmatprep.subr.mxu0 0.0
        %953 = vmatpush1.msra.mxu0 0.0
        %954 = vmatprep.subr.mxu0 0.0
        %955 = vmatpush1.msra.mxu0 0.0
        %956 = vmatprep.subr.mxu0 0.0
        %957 = vmatpush1.msra.mxu0 0.0
        %958 = vmatprep.subr.mxu0 0.0
        %959 = vmatpush1.msra.mxu0 0.0
        %960 = vmatprep.subr.mxu0 0.0
        %961 = vmatpush1.msra.mxu0 0.0
        %962 = vmatprep.subr.mxu0 0.0
        %963 = vmatpush1.msra.mxu0 0.0
        %964 = vmatprep.subr.mxu0 0.0
        %965 = vmatpush1.msra.mxu0 0.0
        %966 = vmatprep.subr.mxu0 0.0
        %967 = vmatpush1.msra.mxu0 0.0
        %968 = vmatprep.subr.mxu0 0.0
        %969 = vmatpush1.msra.mxu0 0.0
        %970 = vmatprep.subr.mxu0 0.0
        %971 = vmatpush1.msra.mxu0 0.0
        %972 = vmatprep.subr.mxu0 0.0
        %973 = vmatpush1.msra.mxu0 0.0
        %974 = vmatprep.subr.mxu0 0.0
        %975 = vmatpush1.msra.mxu0 0.0
        %976 = vmatprep.mubr.f32.mxu0 0.0
        %977 = vmatmul.mubr.f32.gmra.mrb[0].mxu0 %v399
        %v978 = vpop.f32.mrb[0].mxu0
        %v979 = vadd.f32 0.0, %v978
        %v980 = vpop.f32.mrb[0].mxu0
        %v981 = vadd.f32 0.0, %v980
        %982 = vmatprep.mubr.f32.mxu0 0.0
        %983 = vmatmul.mubr.f32.gmra.mrb[0].mxu0 %v400
        %v984 = vpop.f32.mrb[0].mxu0
        %v985 = vadd.f32 0.0, %v984
        %v986 = vpop.f32.mrb[0].mxu0
        %v987 = vadd.f32 0.0, %v986
        %988 = vdwg.mxu0
        %v989 = vadd.f32 %v875, %v979
        %v990 = vadd.f32 %v876, %v981
        %v991 = vadd.f32 %v877, %v985
        %v992 = vadd.f32 %v878, %v987
        %s993 = scalar_lea.vmem [#allocation2], 1280
        %v994 = vld [vmem:[%s993] sm:$0xff]
        %v995 = vld [vmem:[%s993 + $0x8] sm:$0xff]
        %v996 = vld [vmem:[%s993 + $0x10] sm:$0xff]
        %v997 = vld [vmem:[%s993 + $0x18] sm:$0xff]
        %v998 = vld [vmem:[%s993 + $0x20] sm:$0xff]
        %v999 = vld [vmem:[%s993 + $0x28] sm:$0xff]
        %v1000 = vld [vmem:[%s993 + $0x30] sm:$0xff]
        %v1001 = vld [vmem:[%s993 + $0x38] sm:$0xff]
        %v1002 = vld [vmem:[%s993 + $0x40] sm:$0xff]
        %v1003 = vld [vmem:[%s993 + $0x48] sm:$0xff]
        %v1004 = vld [vmem:[%s993 + $0x50] sm:$0xff]
        %v1005 = vld [vmem:[%s993 + $0x58] sm:$0xff]
        %v1006 = vld [vmem:[%s993 + $0x60] sm:$0xff]
        %v1007 = vld [vmem:[%s993 + $0x68] sm:$0xff]
        %v1008 = vld [vmem:[%s993 + $0x70] sm:$0xff]
        %v1009 = vld [vmem:[%s993 + $0x78] sm:$0xff]
        %v1010 = vld [vmem:[%s993 + $0x80] sm:$0xff]
        %v1011 = vld [vmem:[%s993 + $0x88] sm:$0xff]
        %v1012 = vld [vmem:[%s993 + $0x90] sm:$0xff]
        %v1013 = vld [vmem:[%s993 + $0x98] sm:$0xff]
        %v1014 = vld [vmem:[%s993 + $0xa0] sm:$0xff]
        %v1015 = vld [vmem:[%s993 + $0xa8] sm:$0xff]
        %v1016 = vld [vmem:[%s993 + $0xb0] sm:$0xff]
        %v1017 = vld [vmem:[%s993 + $0xb8] sm:$0xff]
        %v1018 = vld [vmem:[%s993 + $0xc0] sm:$0xff]
        %v1019 = vld [vmem:[%s993 + $0xc8] sm:$0xff]
        %v1020 = vld [vmem:[%s993 + $0xd0] sm:$0xff]
        %v1021 = vld [vmem:[%s993 + $0xd8] sm:$0xff]
        %v1022 = vld [vmem:[%s993 + $0xe0] sm:$0xff]
        %v1023 = vld [vmem:[%s993 + $0xe8] sm:$0xff]
        %v1024 = vld [vmem:[%s993 + $0xf0] sm:$0xff]
        %v1025 = vld [vmem:[%s993 + $0xf8] sm:$0xff]
        %v1027 = vrot.slane %v401, 2
        %v1028 = vsel %vm473, %v477, %v1027
        %1030 = vmatprep.subr.mxu0 %v995
        %1031 = vmatpush1.msra.mxu0 %v994
        %1032 = vmatprep.subr.mxu0 %v997
        %1033 = vmatpush1.msra.mxu0 %v996
        %1034 = vmatprep.subr.mxu0 %v999
        %1035 = vmatpush1.msra.mxu0 %v998
        %1036 = vmatprep.subr.mxu0 %v1001
        %1037 = vmatpush1.msra.mxu0 %v1000
        %1038 = vmatprep.subr.mxu0 %v1003
        %1039 = vmatpush1.msra.mxu0 %v1002
        %1040 = vmatprep.subr.mxu0 %v1005
        %1041 = vmatpush1.msra.mxu0 %v1004
        %1042 = vmatprep.subr.mxu0 %v1007
        %1043 = vmatpush1.msra.mxu0 %v1006
        %1044 = vmatprep.subr.mxu0 %v1009
        %1045 = vmatpush1.msra.mxu0 %v1008
        %1046 = vmatprep.subr.mxu0 %v1011
        %1047 = vmatpush1.msra.mxu0 %v1010
        %1048 = vmatprep.subr.mxu0 %v1013
        %1049 = vmatpush1.msra.mxu0 %v1012
        %1050 = vmatprep.subr.mxu0 %v1015
        %1051 = vmatpush1.msra.mxu0 %v1014
        %1052 = vmatprep.subr.mxu0 %v1017
        %1053 = vmatpush1.msra.mxu0 %v1016
        %1054 = vmatprep.subr.mxu0 %v1019
        %1055 = vmatpush1.msra.mxu0 %v1018
        %1056 = vmatprep.subr.mxu0 %v1021
        %1057 = vmatpush1.msra.mxu0 %v1020
        %1058 = vmatprep.subr.mxu0 %v1023
        %1059 = vmatpush1.msra.mxu0 %v1022
        %1060 = vmatprep.subr.mxu0 %v1025
        %1061 = vmatpush1.msra.mxu0 %v1024
        %1062 = vmatprep.subr.mxu0 0.0
        %1063 = vmatpush1.msra.mxu0 0.0
        %1064 = vmatprep.subr.mxu0 0.0
        %1065 = vmatpush1.msra.mxu0 0.0
        %1066 = vmatprep.subr.mxu0 0.0
        %1067 = vmatpush1.msra.mxu0 0.0
        %1068 = vmatprep.subr.mxu0 0.0
        %1069 = vmatpush1.msra.mxu0 0.0
        %1070 = vmatprep.subr.mxu0 0.0
        %1071 = vmatpush1.msra.mxu0 0.0
        %1072 = vmatprep.subr.mxu0 0.0
        %1073 = vmatpush1.msra.mxu0 0.0
        %1074 = vmatprep.subr.mxu0 0.0
        %1075 = vmatpush1.msra.mxu0 0.0
        %1076 = vmatprep.subr.mxu0 0.0
        %1077 = vmatpush1.msra.mxu0 0.0
        %1078 = vmatprep.subr.mxu0 0.0
        %1079 = vmatpush1.msra.mxu0 0.0
        %1080 = vmatprep.subr.mxu0 0.0
        %1081 = vmatpush1.msra.mxu0 0.0
        %1082 = vmatprep.subr.mxu0 0.0
        %1083 = vmatpush1.msra.mxu0 0.0
        %1084 = vmatprep.subr.mxu0 0.0
        %1085 = vmatpush1.msra.mxu0 0.0
        %1086 = vmatprep.subr.mxu0 0.0
        %1087 = vmatpush1.msra.mxu0 0.0
        %1088 = vmatprep.subr.mxu0 0.0
        %1089 = vmatpush1.msra.mxu0 0.0
        %1090 = vmatprep.subr.mxu0 0.0
        %1091 = vmatpush1.msra.mxu0 0.0
        %1092 = vmatprep.subr.mxu0 0.0
        %1093 = vmatpush1.msra.mxu0 0.0
        %1094 = vmatprep.mubr.f32.mxu0 0.0
        %1095 = vmatmul.mubr.f32.gmra.mrb[0].mxu0 %v478
        %v1096 = vpop.f32.mrb[0].mxu0
        %v1097 = vadd.f32 0.0, %v1096
        %v1098 = vpop.f32.mrb[0].mxu0
        %v1099 = vadd.f32 0.0, %v1098
        %1100 = vmatprep.mubr.f32.mxu0 0.0
        %1101 = vmatmul.mubr.f32.gmra.mrb[0].mxu0 %v1028
        %v1102 = vpop.f32.mrb[0].mxu0
        %v1103 = vadd.f32 0.0, %v1102
        %v1104 = vpop.f32.mrb[0].mxu0
        %v1105 = vadd.f32 0.0, %v1104
        %1106 = vdwg.mxu0
        %v1107 = vadd.f32 %v989, %v1097
        %v1108 = vadd.f32 %v990, %v1099
        %v1109 = vadd.f32 %v991, %v1103
        %v1110 = vadd.f32 %v992, %v1105
        %s1111 = scalar_lea.vmem [#allocation2], 1536
        %v1112 = vld [vmem:[%s1111] sm:$0xff]
        %v1113 = vld [vmem:[%s1111 + $0x8] sm:$0xff]
        %v1114 = vld [vmem:[%s1111 + $0x10] sm:$0xff]
        %v1115 = vld [vmem:[%s1111 + $0x18] sm:$0xff]
        %v1116 = vld [vmem:[%s1111 + $0x20] sm:$0xff]
        %v1117 = vld [vmem:[%s1111 + $0x28] sm:$0xff]
        %v1118 = vld [vmem:[%s1111 + $0x30] sm:$0xff]
        %v1119 = vld [vmem:[%s1111 + $0x38] sm:$0xff]
        %v1120 = vld [vmem:[%s1111 + $0x40] sm:$0xff]
        %v1121 = vld [vmem:[%s1111 + $0x48] sm:$0xff]
        %v1122 = vld [vmem:[%s1111 + $0x50] sm:$0xff]
        %v1123 = vld [vmem:[%s1111 + $0x58] sm:$0xff]
        %v1124 = vld [vmem:[%s1111 + $0x60] sm:$0xff]
        %v1125 = vld [vmem:[%s1111 + $0x68] sm:$0xff]
        %v1126 = vld [vmem:[%s1111 + $0x70] sm:$0xff]
        %v1127 = vld [vmem:[%s1111 + $0x78] sm:$0xff]
        %v1128 = vld [vmem:[%s1111 + $0x80] sm:$0xff]
        %v1129 = vld [vmem:[%s1111 + $0x88] sm:$0xff]
        %v1130 = vld [vmem:[%s1111 + $0x90] sm:$0xff]
        %v1131 = vld [vmem:[%s1111 + $0x98] sm:$0xff]
        %v1132 = vld [vmem:[%s1111 + $0xa0] sm:$0xff]
        %v1133 = vld [vmem:[%s1111 + $0xa8] sm:$0xff]
        %v1134 = vld [vmem:[%s1111 + $0xb0] sm:$0xff]
        %v1135 = vld [vmem:[%s1111 + $0xb8] sm:$0xff]
        %v1136 = vld [vmem:[%s1111 + $0xc0] sm:$0xff]
        %v1137 = vld [vmem:[%s1111 + $0xc8] sm:$0xff]
        %v1138 = vld [vmem:[%s1111 + $0xd0] sm:$0xff]
        %v1139 = vld [vmem:[%s1111 + $0xd8] sm:$0xff]
        %v1140 = vld [vmem:[%s1111 + $0xe0] sm:$0xff]
        %v1141 = vld [vmem:[%s1111 + $0xe8] sm:$0xff]
        %v1142 = vld [vmem:[%s1111 + $0xf0] sm:$0xff]
        %v1143 = vld [vmem:[%s1111 + $0xf8] sm:$0xff]
        %vm1144 = vcmask 1044480
        %v1145 = vrot.slane %v399, 3
        %v1146 = vrot.slane %v400, 3
        %v1147 = vsel %vm1144, %v1145, %v1146
        %v1148 = vrot.slane %v401, 3
        %v1149 = vsel %vm1144, %v1146, %v1148
        %1152 = vmatprep.subr.mxu0 %v1113
        %1153 = vmatpush1.msra.mxu0 %v1112
        %1154 = vmatprep.subr.mxu0 %v1115
        %1155 = vmatpush1.msra.mxu0 %v1114
        %1156 = vmatprep.subr.mxu0 %v1117
        %1157 = vmatpush1.msra.mxu0 %v1116
        %1158 = vmatprep.subr.mxu0 %v1119
        %1159 = vmatpush1.msra.mxu0 %v1118
        %1160 = vmatprep.subr.mxu0 %v1121
        %1161 = vmatpush1.msra.mxu0 %v1120
        %1162 = vmatprep.subr.mxu0 %v1123
        %1163 = vmatpush1.msra.mxu0 %v1122
        %1164 = vmatprep.subr.mxu0 %v1125
        %1165 = vmatpush1.msra.mxu0 %v1124
        %1166 = vmatprep.subr.mxu0 %v1127
        %1167 = vmatpush1.msra.mxu0 %v1126
        %1168 = vmatprep.subr.mxu0 %v1129
        %1169 = vmatpush1.msra.mxu0 %v1128
        %1170 = vmatprep.subr.mxu0 %v1131
        %1171 = vmatpush1.msra.mxu0 %v1130
        %1172 = vmatprep.subr.mxu0 %v1133
        %1173 = vmatpush1.msra.mxu0 %v1132
        %1174 = vmatprep.subr.mxu0 %v1135
        %1175 = vmatpush1.msra.mxu0 %v1134
        %1176 = vmatprep.subr.mxu0 %v1137
        %1177 = vmatpush1.msra.mxu0 %v1136
        %1178 = vmatprep.subr.mxu0 %v1139
        %1179 = vmatpush1.msra.mxu0 %v1138
        %1180 = vmatprep.subr.mxu0 %v1141
        %1181 = vmatpush1.msra.mxu0 %v1140
        %1182 = vmatprep.subr.mxu0 %v1143
        %1183 = vmatpush1.msra.mxu0 %v1142
        %1184 = vmatprep.subr.mxu0 0.0
        %1185 = vmatpush1.msra.mxu0 0.0
        %1186 = vmatprep.subr.mxu0 0.0
        %1187 = vmatpush1.msra.mxu0 0.0
        %1188 = vmatprep.subr.mxu0 0.0
        %1189 = vmatpush1.msra.mxu0 0.0
        %1190 = vmatprep.subr.mxu0 0.0
        %1191 = vmatpush1.msra.mxu0 0.0
        %1192 = vmatprep.subr.mxu0 0.0
        %1193 = vmatpush1.msra.mxu0 0.0
        %1194 = vmatprep.subr.mxu0 0.0
        %1195 = vmatpush1.msra.mxu0 0.0
        %1196 = vmatprep.subr.mxu0 0.0
        %1197 = vmatpush1.msra.mxu0 0.0
        %1198 = vmatprep.subr.mxu0 0.0
        %1199 = vmatpush1.msra.mxu0 0.0
        %1200 = vmatprep.subr.mxu0 0.0
        %1201 = vmatpush1.msra.mxu0 0.0
        %1202 = vmatprep.subr.mxu0 0.0
        %1203 = vmatpush1.msra.mxu0 0.0
        %1204 = vmatprep.subr.mxu0 0.0
        %1205 = vmatpush1.msra.mxu0 0.0
        %1206 = vmatprep.subr.mxu0 0.0
        %1207 = vmatpush1.msra.mxu0 0.0
        %1208 = vmatprep.subr.mxu0 0.0
        %1209 = vmatpush1.msra.mxu0 0.0
        %1210 = vmatprep.subr.mxu0 0.0
        %1211 = vmatpush1.msra.mxu0 0.0
        %1212 = vmatprep.subr.mxu0 0.0
        %1213 = vmatpush1.msra.mxu0 0.0
        %1214 = vmatprep.subr.mxu0 0.0
        %1215 = vmatpush1.msra.mxu0 0.0
        %1216 = vmatprep.mubr.f32.mxu0 0.0
        %1217 = vmatmul.mubr.f32.gmra.mrb[0].mxu0 %v1147
        %v1218 = vpop.f32.mrb[0].mxu0
        %v1219 = vadd.f32 0.0, %v1218
        %v1220 = vpop.f32.mrb[0].mxu0
        %v1221 = vadd.f32 0.0, %v1220
        %1222 = vmatprep.mubr.f32.mxu0 0.0
        %1223 = vmatmul.mubr.f32.gmra.mrb[0].mxu0 %v1149
        %v1224 = vpop.f32.mrb[0].mxu0
        %v1225 = vadd.f32 0.0, %v1224
        %v1226 = vpop.f32.mrb[0].mxu0
        %v1227 = vadd.f32 0.0, %v1226
        %1228 = vdwg.mxu0
        %v1229 = vadd.f32 %v1107, %v1219
        %v1230 = vadd.f32 %v1108, %v1221
        %v1231 = vadd.f32 %v1109, %v1225
        %v1232 = vadd.f32 %v1110, %v1227
        %s1233 = scalar_lea.vmem [#allocation2], 1792
        %v1234 = vld [vmem:[%s1233] sm:$0xff]
        %v1235 = vld [vmem:[%s1233 + $0x8] sm:$0xff]
        %v1236 = vld [vmem:[%s1233 + $0x10] sm:$0xff]
        %v1237 = vld [vmem:[%s1233 + $0x18] sm:$0xff]
        %v1238 = vld [vmem:[%s1233 + $0x20] sm:$0xff]
        %v1239 = vld [vmem:[%s1233 + $0x28] sm:$0xff]
        %v1240 = vld [vmem:[%s1233 + $0x30] sm:$0xff]
        %v1241 = vld [vmem:[%s1233 + $0x38] sm:$0xff]
        %v1242 = vld [vmem:[%s1233 + $0x40] sm:$0xff]
        %v1243 = vld [vmem:[%s1233 + $0x48] sm:$0xff]
        %v1244 = vld [vmem:[%s1233 + $0x50] sm:$0xff]
        %v1245 = vld [vmem:[%s1233 + $0x58] sm:$0xff]
        %v1246 = vld [vmem:[%s1233 + $0x60] sm:$0xff]
        %v1247 = vld [vmem:[%s1233 + $0x68] sm:$0xff]
        %v1248 = vld [vmem:[%s1233 + $0x70] sm:$0xff]
        %v1249 = vld [vmem:[%s1233 + $0x78] sm:$0xff]
        %v1250 = vld [vmem:[%s1233 + $0x80] sm:$0xff]
        %v1251 = vld [vmem:[%s1233 + $0x88] sm:$0xff]
        %v1252 = vld [vmem:[%s1233 + $0x90] sm:$0xff]
        %v1253 = vld [vmem:[%s1233 + $0x98] sm:$0xff]
        %v1254 = vld [vmem:[%s1233 + $0xa0] sm:$0xff]
        %v1255 = vld [vmem:[%s1233 + $0xa8] sm:$0xff]
        %v1256 = vld [vmem:[%s1233 + $0xb0] sm:$0xff]
        %v1257 = vld [vmem:[%s1233 + $0xb8] sm:$0xff]
        %v1258 = vld [vmem:[%s1233 + $0xc0] sm:$0xff]
        %v1259 = vld [vmem:[%s1233 + $0xc8] sm:$0xff]
        %v1260 = vld [vmem:[%s1233 + $0xd0] sm:$0xff]
        %v1261 = vld [vmem:[%s1233 + $0xd8] sm:$0xff]
        %v1262 = vld [vmem:[%s1233 + $0xe0] sm:$0xff]
        %v1263 = vld [vmem:[%s1233 + $0xe8] sm:$0xff]
        %v1264 = vld [vmem:[%s1233 + $0xf0] sm:$0xff]
        %v1265 = vld [vmem:[%s1233 + $0xf8] sm:$0xff]
        %v1266 = vrot.slane %v401, 4
        %v1267 = vsel %vm668, %v672, %v1266
        %1269 = vmatprep.subr.mxu0 %v1235
        %1270 = vmatpush1.msra.mxu0 %v1234
        %1271 = vmatprep.subr.mxu0 %v1237
        %1272 = vmatpush1.msra.mxu0 %v1236
        %1273 = vmatprep.subr.mxu0 %v1239
        %1274 = vmatpush1.msra.mxu0 %v1238
        %1275 = vmatprep.subr.mxu0 %v1241
        %1276 = vmatpush1.msra.mxu0 %v1240
        %1277 = vmatprep.subr.mxu0 %v1243
        %1278 = vmatpush1.msra.mxu0 %v1242
        %1279 = vmatprep.subr.mxu0 %v1245
        %1280 = vmatpush1.msra.mxu0 %v1244
        %1281 = vmatprep.subr.mxu0 %v1247
        %1282 = vmatpush1.msra.mxu0 %v1246
        %1283 = vmatprep.subr.mxu0 %v1249
        %1284 = vmatpush1.msra.mxu0 %v1248
        %1285 = vmatprep.subr.mxu0 %v1251
        %1286 = vmatpush1.msra.mxu0 %v1250
        %1287 = vmatprep.subr.mxu0 %v1253
        %1288 = vmatpush1.msra.mxu0 %v1252
        %1289 = vmatprep.subr.mxu0 %v1255
        %1290 = vmatpush1.msra.mxu0 %v1254
        %1291 = vmatprep.subr.mxu0 %v1257
        %1292 = vmatpush1.msra.mxu0 %v1256
        %1293 = vmatprep.subr.mxu0 %v1259
        %1294 = vmatpush1.msra.mxu0 %v1258
        %1295 = vmatprep.subr.mxu0 %v1261
        %1296 = vmatpush1.msra.mxu0 %v1260
        %1297 = vmatprep.subr.mxu0 %v1263
        %1298 = vmatpush1.msra.mxu0 %v1262
        %1299 = vmatprep.subr.mxu0 %v1265
        %1300 = vmatpush1.msra.mxu0 %v1264
        %1301 = vmatprep.subr.mxu0 0.0
        %1302 = vmatpush1.msra.mxu0 0.0
        %1303 = vmatprep.subr.mxu0 0.0
        %1304 = vmatpush1.msra.mxu0 0.0
        %1305 = vmatprep.subr.mxu0 0.0
        %1306 = vmatpush1.msra.mxu0 0.0
        %1307 = vmatprep.subr.mxu0 0.0
        %1308 = vmatpush1.msra.mxu0 0.0
        %1309 = vmatprep.subr.mxu0 0.0
        %1310 = vmatpush1.msra.mxu0 0.0
        %1311 = vmatprep.subr.mxu0 0.0
        %1312 = vmatpush1.msra.mxu0 0.0
        %1313 = vmatprep.subr.mxu0 0.0
        %1314 = vmatpush1.msra.mxu0 0.0
        %1315 = vmatprep.subr.mxu0 0.0
        %1316 = vmatpush1.msra.mxu0 0.0
        %1317 = vmatprep.subr.mxu0 0.0
        %1318 = vmatpush1.msra.mxu0 0.0
        %1319 = vmatprep.subr.mxu0 0.0
        %1320 = vmatpush1.msra.mxu0 0.0
        %1321 = vmatprep.subr.mxu0 0.0
        %1322 = vmatpush1.msra.mxu0 0.0
        %1323 = vmatprep.subr.mxu0 0.0
        %1324 = vmatpush1.msra.mxu0 0.0
        %1325 = vmatprep.subr.mxu0 0.0
        %1326 = vmatpush1.msra.mxu0 0.0
        %1327 = vmatprep.subr.mxu0 0.0
        %1328 = vmatpush1.msra.mxu0 0.0
        %1329 = vmatprep.subr.mxu0 0.0
        %1330 = vmatpush1.msra.mxu0 0.0
        %1331 = vmatprep.subr.mxu0 0.0
        %1332 = vmatpush1.msra.mxu0 0.0
        %1333 = vmatprep.mubr.f32.mxu0 0.0
        %1334 = vmatmul.mubr.f32.gmra.mrb[0].mxu0 %v673
        %v1335 = vpop.f32.mrb[0].mxu0
        %v1336 = vadd.f32 0.0, %v1335
        %v1337 = vpop.f32.mrb[0].mxu0
        %v1338 = vadd.f32 0.0, %v1337
        %1339 = vmatprep.mubr.f32.mxu0 0.0
        %1340 = vmatmul.mubr.f32.gmra.mrb[0].mxu0 %v1267
        %v1341 = vpop.f32.mrb[0].mxu0
        %v1342 = vadd.f32 0.0, %v1341
        %v1343 = vpop.f32.mrb[0].mxu0
        %v1344 = vadd.f32 0.0, %v1343
        %1345 = vdwg.mxu0
        %v1346 = vadd.f32 %v1229, %v1336
        %v1347 = vadd.f32 %v1230, %v1338
        %v1348 = vadd.f32 %v1231, %v1342
        %v1349 = vadd.f32 %v1232, %v1344
        %s1350 = scalar_lea.vmem [#allocation2], 2048
        %v1351 = vld [vmem:[%s1350] sm:$0xff]
        %v1352 = vld [vmem:[%s1350 + $0x8] sm:$0xff]
        %v1353 = vld [vmem:[%s1350 + $0x10] sm:$0xff]
        %v1354 = vld [vmem:[%s1350 + $0x18] sm:$0xff]
        %v1355 = vld [vmem:[%s1350 + $0x20] sm:$0xff]
        %v1356 = vld [vmem:[%s1350 + $0x28] sm:$0xff]
        %v1357 = vld [vmem:[%s1350 + $0x30] sm:$0xff]
        %v1358 = vld [vmem:[%s1350 + $0x38] sm:$0xff]
        %v1359 = vld [vmem:[%s1350 + $0x40] sm:$0xff]
        %v1360 = vld [vmem:[%s1350 + $0x48] sm:$0xff]
        %v1361 = vld [vmem:[%s1350 + $0x50] sm:$0xff]
        %v1362 = vld [vmem:[%s1350 + $0x58] sm:$0xff]
        %v1363 = vld [vmem:[%s1350 + $0x60] sm:$0xff]
        %v1364 = vld [vmem:[%s1350 + $0x68] sm:$0xff]
        %v1365 = vld [vmem:[%s1350 + $0x70] sm:$0xff]
        %v1366 = vld [vmem:[%s1350 + $0x78] sm:$0xff]
        %v1367 = vld [vmem:[%s1350 + $0x80] sm:$0xff]
        %v1368 = vld [vmem:[%s1350 + $0x88] sm:$0xff]
        %v1369 = vld [vmem:[%s1350 + $0x90] sm:$0xff]
        %v1370 = vld [vmem:[%s1350 + $0x98] sm:$0xff]
        %v1371 = vld [vmem:[%s1350 + $0xa0] sm:$0xff]
        %v1372 = vld [vmem:[%s1350 + $0xa8] sm:$0xff]
        %v1373 = vld [vmem:[%s1350 + $0xb0] sm:$0xff]
        %v1374 = vld [vmem:[%s1350 + $0xb8] sm:$0xff]
        %v1375 = vld [vmem:[%s1350 + $0xc0] sm:$0xff]
        %v1376 = vld [vmem:[%s1350 + $0xc8] sm:$0xff]
        %v1377 = vld [vmem:[%s1350 + $0xd0] sm:$0xff]
        %v1378 = vld [vmem:[%s1350 + $0xd8] sm:$0xff]
        %v1379 = vld [vmem:[%s1350 + $0xe0] sm:$0xff]
        %v1380 = vld [vmem:[%s1350 + $0xe8] sm:$0xff]
        %v1381 = vld [vmem:[%s1350 + $0xf0] sm:$0xff]
        %v1382 = vld [vmem:[%s1350 + $0xf8] sm:$0xff]
        %vm1383 = vcmask 1042432
        %v1384 = vrot.slane %v399, 5
        %v1385 = vrot.slane %v400, 5
        %v1386 = vsel %vm1383, %v1384, %v1385
        %v1387 = vrot.slane %v401, 5
        %v1388 = vsel %vm1383, %v1385, %v1387
        %1391 = vmatprep.subr.mxu0 %v1352
        %1392 = vmatpush1.msra.mxu0 %v1351
        %1393 = vmatprep.subr.mxu0 %v1354
        %1394 = vmatpush1.msra.mxu0 %v1353
        %1395 = vmatprep.subr.mxu0 %v1356
        %1396 = vmatpush1.msra.mxu0 %v1355
        %1397 = vmatprep.subr.mxu0 %v1358
        %1398 = vmatpush1.msra.mxu0 %v1357
        %1399 = vmatprep.subr.mxu0 %v1360
        %1400 = vmatpush1.msra.mxu0 %v1359
        %1401 = vmatprep.subr.mxu0 %v1362
        %1402 = vmatpush1.msra.mxu0 %v1361
        %1403 = vmatprep.subr.mxu0 %v1364
        %1404 = vmatpush1.msra.mxu0 %v1363
        %1405 = vmatprep.subr.mxu0 %v1366
        %1406 = vmatpush1.msra.mxu0 %v1365
        %1407 = vmatprep.subr.mxu0 %v1368
        %1408 = vmatpush1.msra.mxu0 %v1367
        %1409 = vmatprep.subr.mxu0 %v1370
        %1410 = vmatpush1.msra.mxu0 %v1369
        %1411 = vmatprep.subr.mxu0 %v1372
        %1412 = vmatpush1.msra.mxu0 %v1371
        %1413 = vmatprep.subr.mxu0 %v1374
        %1414 = vmatpush1.msra.mxu0 %v1373
        %1415 = vmatprep.subr.mxu0 %v1376
        %1416 = vmatpush1.msra.mxu0 %v1375
        %1417 = vmatprep.subr.mxu0 %v1378
        %1418 = vmatpush1.msra.mxu0 %v1377
        %1419 = vmatprep.subr.mxu0 %v1380
        %1420 = vmatpush1.msra.mxu0 %v1379
        %1421 = vmatprep.subr.mxu0 %v1382
        %1422 = vmatpush1.msra.mxu0 %v1381
        %1423 = vmatprep.subr.mxu0 0.0
        %1424 = vmatpush1.msra.mxu0 0.0
        %1425 = vmatprep.subr.mxu0 0.0
        %1426 = vmatpush1.msra.mxu0 0.0
        %1427 = vmatprep.subr.mxu0 0.0
        %1428 = vmatpush1.msra.mxu0 0.0
        %1429 = vmatprep.subr.mxu0 0.0
        %1430 = vmatpush1.msra.mxu0 0.0
        %1431 = vmatprep.subr.mxu0 0.0
        %1432 = vmatpush1.msra.mxu0 0.0
        %1433 = vmatprep.subr.mxu0 0.0
        %1434 = vmatpush1.msra.mxu0 0.0
        %1435 = vmatprep.subr.mxu0 0.0
        %1436 = vmatpush1.msra.mxu0 0.0
        %1437 = vmatprep.subr.mxu0 0.0
        %1438 = vmatpush1.msra.mxu0 0.0
        %1439 = vmatprep.subr.mxu0 0.0
        %1440 = vmatpush1.msra.mxu0 0.0
        %1441 = vmatprep.subr.mxu0 0.0
        %1442 = vmatpush1.msra.mxu0 0.0
        %1443 = vmatprep.subr.mxu0 0.0
        %1444 = vmatpush1.msra.mxu0 0.0
        %1445 = vmatprep.subr.mxu0 0.0
        %1446 = vmatpush1.msra.mxu0 0.0
        %1447 = vmatprep.subr.mxu0 0.0
        %1448 = vmatpush1.msra.mxu0 0.0
        %1449 = vmatprep.subr.mxu0 0.0
        %1450 = vmatpush1.msra.mxu0 0.0
        %1451 = vmatprep.subr.mxu0 0.0
        %1452 = vmatpush1.msra.mxu0 0.0
        %1453 = vmatprep.subr.mxu0 0.0
        %1454 = vmatpush1.msra.mxu0 0.0
        %1455 = vmatprep.mubr.f32.mxu0 0.0
        %1456 = vmatmul.mubr.f32.gmra.mrb[0].mxu0 %v1386
        %v1457 = vpop.f32.mrb[0].mxu0
        %v1458 = vadd.f32 0.0, %v1457
        %v1459 = vpop.f32.mrb[0].mxu0
        %v1460 = vadd.f32 0.0, %v1459
        %1461 = vmatprep.mubr.f32.mxu0 0.0
        %1462 = vmatmul.mubr.f32.gmra.mrb[0].mxu0 %v1388
        %v1463 = vpop.f32.mrb[0].mxu0
        %v1464 = vadd.f32 0.0, %v1463
        %v1465 = vpop.f32.mrb[0].mxu0
        %v1466 = vadd.f32 0.0, %v1465
        %1467 = vdwg.mxu0
        %v1468 = vadd.f32 %v1346, %v1458
        %v1469 = vadd.f32 %v1347, %v1460
        %v1470 = vadd.f32 %v1348, %v1464
        %v1471 = vadd.f32 %v1349, %v1466
        %s1472 = scalar_lea.vmem [#allocation2], 2304
        %v1473 = vld [vmem:[%s1472] sm:$0xff]
        %v1474 = vld [vmem:[%s1472 + $0x8] sm:$0xff]
        %v1475 = vld [vmem:[%s1472 + $0x10] sm:$0xff]
        %v1476 = vld [vmem:[%s1472 + $0x18] sm:$0xff]
        %v1477 = vld [vmem:[%s1472 + $0x20] sm:$0xff]
        %v1478 = vld [vmem:[%s1472 + $0x28] sm:$0xff]
        %v1479 = vld [vmem:[%s1472 + $0x30] sm:$0xff]
        %v1480 = vld [vmem:[%s1472 + $0x38] sm:$0xff]
        %v1481 = vld [vmem:[%s1472 + $0x40] sm:$0xff]
        %v1482 = vld [vmem:[%s1472 + $0x48] sm:$0xff]
        %v1483 = vld [vmem:[%s1472 + $0x50] sm:$0xff]
        %v1484 = vld [vmem:[%s1472 + $0x58] sm:$0xff]
        %v1485 = vld [vmem:[%s1472 + $0x60] sm:$0xff]
        %v1486 = vld [vmem:[%s1472 + $0x68] sm:$0xff]
        %v1487 = vld [vmem:[%s1472 + $0x70] sm:$0xff]
        %v1488 = vld [vmem:[%s1472 + $0x78] sm:$0xff]
        %v1489 = vld [vmem:[%s1472 + $0x80] sm:$0xff]
        %v1490 = vld [vmem:[%s1472 + $0x88] sm:$0xff]
        %v1491 = vld [vmem:[%s1472 + $0x90] sm:$0xff]
        %v1492 = vld [vmem:[%s1472 + $0x98] sm:$0xff]
        %v1493 = vld [vmem:[%s1472 + $0xa0] sm:$0xff]
        %v1494 = vld [vmem:[%s1472 + $0xa8] sm:$0xff]
        %v1495 = vld [vmem:[%s1472 + $0xb0] sm:$0xff]
        %v1496 = vld [vmem:[%s1472 + $0xb8] sm:$0xff]
        %v1497 = vld [vmem:[%s1472 + $0xc0] sm:$0xff]
        %v1498 = vld [vmem:[%s1472 + $0xc8] sm:$0xff]
        %v1499 = vld [vmem:[%s1472 + $0xd0] sm:$0xff]
        %v1500 = vld [vmem:[%s1472 + $0xd8] sm:$0xff]
        %v1501 = vld [vmem:[%s1472 + $0xe0] sm:$0xff]
        %v1502 = vld [vmem:[%s1472 + $0xe8] sm:$0xff]
        %v1503 = vld [vmem:[%s1472 + $0xf0] sm:$0xff]
        %v1504 = vld [vmem:[%s1472 + $0xf8] sm:$0xff]
        %v1505 = vrot.slane %v401, 6
        %v1506 = vsel %vm790, %v794, %v1505
        %1508 = vmatprep.subr.mxu0 %v1474
        %1509 = vmatpush1.msra.mxu0 %v1473
        %1510 = vmatprep.subr.mxu0 %v1476
        %1511 = vmatpush1.msra.mxu0 %v1475
        %1512 = vmatprep.subr.mxu0 %v1478
        %1513 = vmatpush1.msra.mxu0 %v1477
        %1514 = vmatprep.subr.mxu0 %v1480
        %1515 = vmatpush1.msra.mxu0 %v1479
        %1516 = vmatprep.subr.mxu0 %v1482
        %1517 = vmatpush1.msra.mxu0 %v1481
        %1518 = vmatprep.subr.mxu0 %v1484
        %1519 = vmatpush1.msra.mxu0 %v1483
        %1520 = vmatprep.subr.mxu0 %v1486
        %1521 = vmatpush1.msra.mxu0 %v1485
        %1522 = vmatprep.subr.mxu0 %v1488
        %1523 = vmatpush1.msra.mxu0 %v1487
        %1524 = vmatprep.subr.mxu0 %v1490
        %1525 = vmatpush1.msra.mxu0 %v1489
        %1526 = vmatprep.subr.mxu0 %v1492
        %1527 = vmatpush1.msra.mxu0 %v1491
        %1528 = vmatprep.subr.mxu0 %v1494
        %1529 = vmatpush1.msra.mxu0 %v1493
        %1530 = vmatprep.subr.mxu0 %v1496
        %1531 = vmatpush1.msra.mxu0 %v1495
        %1532 = vmatprep.subr.mxu0 %v1498
        %1533 = vmatpush1.msra.mxu0 %v1497
        %1534 = vmatprep.subr.mxu0 %v1500
        %1535 = vmatpush1.msra.mxu0 %v1499
        %1536 = vmatprep.subr.mxu0 %v1502
        %1537 = vmatpush1.msra.mxu0 %v1501
        %1538 = vmatprep.subr.mxu0 %v1504
        %1539 = vmatpush1.msra.mxu0 %v1503
        %1540 = vmatprep.subr.mxu0 0.0
        %1541 = vmatpush1.msra.mxu0 0.0
        %1542 = vmatprep.subr.mxu0 0.0
        %1543 = vmatpush1.msra.mxu0 0.0
        %1544 = vmatprep.subr.mxu0 0.0
        %1545 = vmatpush1.msra.mxu0 0.0
        %1546 = vmatprep.subr.mxu0 0.0
        %1547 = vmatpush1.msra.mxu0 0.0
        %1548 = vmatprep.subr.mxu0 0.0
        %1549 = vmatpush1.msra.mxu0 0.0
        %1550 = vmatprep.subr.mxu0 0.0
        %1551 = vmatpush1.msra.mxu0 0.0
        %1552 = vmatprep.subr.mxu0 0.0
        %1553 = vmatpush1.msra.mxu0 0.0
        %1554 = vmatprep.subr.mxu0 0.0
        %1555 = vmatpush1.msra.mxu0 0.0
        %1556 = vmatprep.subr.mxu0 0.0
        %1557 = vmatpush1.msra.mxu0 0.0
        %1558 = vmatprep.subr.mxu0 0.0
        %1559 = vmatpush1.msra.mxu0 0.0
        %1560 = vmatprep.subr.mxu0 0.0
        %1561 = vmatpush1.msra.mxu0 0.0
        %1562 = vmatprep.subr.mxu0 0.0
        %1563 = vmatpush1.msra.mxu0 0.0
        %1564 = vmatprep.subr.mxu0 0.0
        %1565 = vmatpush1.msra.mxu0 0.0
        %1566 = vmatprep.subr.mxu0 0.0
        %1567 = vmatpush1.msra.mxu0 0.0
        %1568 = vmatprep.subr.mxu0 0.0
        %1569 = vmatpush1.msra.mxu0 0.0
        %1570 = vmatprep.subr.mxu0 0.0
        %1571 = vmatpush1.msra.mxu0 0.0
        %1572 = vmatprep.mubr.f32.mxu0 0.0
        %1573 = vmatmul.mubr.f32.gmra.mrb[0].mxu0 %v795
        %v1574 = vpop.f32.mrb[0].mxu0
        %v1575 = vadd.f32 0.0, %v1574
        %v1576 = vpop.f32.mrb[0].mxu0
        %v1577 = vadd.f32 0.0, %v1576
        %1578 = vmatprep.mubr.f32.mxu0 0.0
        %1579 = vmatmul.mubr.f32.gmra.mrb[0].mxu0 %v1506
        %v1580 = vpop.f32.mrb[0].mxu0
        %v1581 = vadd.f32 0.0, %v1580
        %v1582 = vpop.f32.mrb[0].mxu0
        %v1583 = vadd.f32 0.0, %v1582
        %1584 = vdwg.mxu0
        %v1585 = vadd.f32 %v1468, %v1575
        %v1586 = vadd.f32 %v1469, %v1577
        %v1587 = vadd.f32 %v1470, %v1581
        %v1588 = vadd.f32 %v1471, %v1583
        %s1589 = scalar_lea.vmem [#allocation2], 2560
        %v1590 = vld [vmem:[%s1589] sm:$0xff]
        %v1591 = vld [vmem:[%s1589 + $0x8] sm:$0xff]
        %v1592 = vld [vmem:[%s1589 + $0x10] sm:$0xff]
        %v1593 = vld [vmem:[%s1589 + $0x18] sm:$0xff]
        %v1594 = vld [vmem:[%s1589 + $0x20] sm:$0xff]
        %v1595 = vld [vmem:[%s1589 + $0x28] sm:$0xff]
        %v1596 = vld [vmem:[%s1589 + $0x30] sm:$0xff]
        %v1597 = vld [vmem:[%s1589 + $0x38] sm:$0xff]
        %v1598 = vld [vmem:[%s1589 + $0x40] sm:$0xff]
        %v1599 = vld [vmem:[%s1589 + $0x48] sm:$0xff]
        %v1600 = vld [vmem:[%s1589 + $0x50] sm:$0xff]
        %v1601 = vld [vmem:[%s1589 + $0x58] sm:$0xff]
        %v1602 = vld [vmem:[%s1589 + $0x60] sm:$0xff]
        %v1603 = vld [vmem:[%s1589 + $0x68] sm:$0xff]
        %v1604 = vld [vmem:[%s1589 + $0x70] sm:$0xff]
        %v1605 = vld [vmem:[%s1589 + $0x78] sm:$0xff]
        %v1606 = vld [vmem:[%s1589 + $0x80] sm:$0xff]
        %v1607 = vld [vmem:[%s1589 + $0x88] sm:$0xff]
        %v1608 = vld [vmem:[%s1589 + $0x90] sm:$0xff]
        %v1609 = vld [vmem:[%s1589 + $0x98] sm:$0xff]
        %v1610 = vld [vmem:[%s1589 + $0xa0] sm:$0xff]
        %v1611 = vld [vmem:[%s1589 + $0xa8] sm:$0xff]
        %v1612 = vld [vmem:[%s1589 + $0xb0] sm:$0xff]
        %v1613 = vld [vmem:[%s1589 + $0xb8] sm:$0xff]
        %v1614 = vld [vmem:[%s1589 + $0xc0] sm:$0xff]
        %v1615 = vld [vmem:[%s1589 + $0xc8] sm:$0xff]
        %v1616 = vld [vmem:[%s1589 + $0xd0] sm:$0xff]
        %v1617 = vld [vmem:[%s1589 + $0xd8] sm:$0xff]
        %v1618 = vld [vmem:[%s1589 + $0xe0] sm:$0xff]
        %v1619 = vld [vmem:[%s1589 + $0xe8] sm:$0xff]
        %v1620 = vld [vmem:[%s1589 + $0xf0] sm:$0xff]
        %v1621 = vld [vmem:[%s1589 + $0xf8] sm:$0xff]
        %vm1622 = vcmask 1040384
        %v1623 = vrot.slane %v399, 7
        %v1624 = vrot.slane %v400, 7
        %v1625 = vsel %vm1622, %v1623, %v1624
        %v1626 = vrot.slane %v401, 7
        %v1627 = vsel %vm1622, %v1624, %v1626
        %1630 = vmatprep.subr.mxu0 %v1591
        %1631 = vmatpush1.msra.mxu0 %v1590
        %1632 = vmatprep.subr.mxu0 %v1593
        %1633 = vmatpush1.msra.mxu0 %v1592
        %1634 = vmatprep.subr.mxu0 %v1595
        %1635 = vmatpush1.msra.mxu0 %v1594
        %1636 = vmatprep.subr.mxu0 %v1597
        %1637 = vmatpush1.msra.mxu0 %v1596
        %1638 = vmatprep.subr.mxu0 %v1599
        %1639 = vmatpush1.msra.mxu0 %v1598
        %1640 = vmatprep.subr.mxu0 %v1601
        %1641 = vmatpush1.msra.mxu0 %v1600
        %1642 = vmatprep.subr.mxu0 %v1603
        %1643 = vmatpush1.msra.mxu0 %v1602
        %1644 = vmatprep.subr.mxu0 %v1605
        %1645 = vmatpush1.msra.mxu0 %v1604
        %1646 = vmatprep.subr.mxu0 %v1607
        %1647 = vmatpush1.msra.mxu0 %v1606
        %1648 = vmatprep.subr.mxu0 %v1609
        %1649 = vmatpush1.msra.mxu0 %v1608
        %1650 = vmatprep.subr.mxu0 %v1611
        %1651 = vmatpush1.msra.mxu0 %v1610
        %1652 = vmatprep.subr.mxu0 %v1613
        %1653 = vmatpush1.msra.mxu0 %v1612
        %1654 = vmatprep.subr.mxu0 %v1615
        %1655 = vmatpush1.msra.mxu0 %v1614
        %1656 = vmatprep.subr.mxu0 %v1617
        %1657 = vmatpush1.msra.mxu0 %v1616
        %1658 = vmatprep.subr.mxu0 %v1619
        %1659 = vmatpush1.msra.mxu0 %v1618
        %1660 = vmatprep.subr.mxu0 %v1621
        %1661 = vmatpush1.msra.mxu0 %v1620
        %1662 = vmatprep.subr.mxu0 0.0
        %1663 = vmatpush1.msra.mxu0 0.0
        %1664 = vmatprep.subr.mxu0 0.0
        %1665 = vmatpush1.msra.mxu0 0.0
        %1666 = vmatprep.subr.mxu0 0.0
        %1667 = vmatpush1.msra.mxu0 0.0
        %1668 = vmatprep.subr.mxu0 0.0
        %1669 = vmatpush1.msra.mxu0 0.0
        %1670 = vmatprep.subr.mxu0 0.0
        %1671 = vmatpush1.msra.mxu0 0.0
        %1672 = vmatprep.subr.mxu0 0.0
        %1673 = vmatpush1.msra.mxu0 0.0
        %1674 = vmatprep.subr.mxu0 0.0
        %1675 = vmatpush1.msra.mxu0 0.0
        %1676 = vmatprep.subr.mxu0 0.0
        %1677 = vmatpush1.msra.mxu0 0.0
        %1678 = vmatprep.subr.mxu0 0.0
        %1679 = vmatpush1.msra.mxu0 0.0
        %1680 = vmatprep.subr.mxu0 0.0
        %1681 = vmatpush1.msra.mxu0 0.0
        %1682 = vmatprep.subr.mxu0 0.0
        %1683 = vmatpush1.msra.mxu0 0.0
        %1684 = vmatprep.subr.mxu0 0.0
        %1685 = vmatpush1.msra.mxu0 0.0
        %1686 = vmatprep.subr.mxu0 0.0
        %1687 = vmatpush1.msra.mxu0 0.0
        %1688 = vmatprep.subr.mxu0 0.0
        %1689 = vmatpush1.msra.mxu0 0.0
        %1690 = vmatprep.subr.mxu0 0.0
        %1691 = vmatpush1.msra.mxu0 0.0
        %1692 = vmatprep.subr.mxu0 0.0
        %1693 = vmatpush1.msra.mxu0 0.0
        %1694 = vmatprep.mubr.f32.mxu0 0.0
        %1695 = vmatmul.mubr.f32.gmra.mrb[0].mxu0 %v1625
        %v1696 = vpop.f32.mrb[0].mxu0
        %v1697 = vadd.f32 0.0, %v1696
        %v1698 = vpop.f32.mrb[0].mxu0
        %v1699 = vadd.f32 0.0, %v1698
        %1700 = vmatprep.mubr.f32.mxu0 0.0
        %1701 = vmatmul.mubr.f32.gmra.mrb[0].mxu0 %v1627
        %v1702 = vpop.f32.mrb[0].mxu0
        %v1703 = vadd.f32 0.0, %v1702
        %v1704 = vpop.f32.mrb[0].mxu0
        %v1705 = vadd.f32 0.0, %v1704
        %1706 = vdwg.mxu0
        %v1707 = vadd.f32 %v1585, %v1697
        %v1708 = vadd.f32 %v1586, %v1699
        %v1709 = vadd.f32 %v1587, %v1703
        %v1710 = vadd.f32 %v1588, %v1705
        %s1711 = scalar_lea.vmem [#allocation2], 2816
        %v1712 = vld [vmem:[%s1711] sm:$0xff]
        %v1713 = vld [vmem:[%s1711 + $0x8] sm:$0xff]
        %v1714 = vld [vmem:[%s1711 + $0x10] sm:$0xff]
        %v1715 = vld [vmem:[%s1711 + $0x18] sm:$0xff]
        %v1716 = vld [vmem:[%s1711 + $0x20] sm:$0xff]
        %v1717 = vld [vmem:[%s1711 + $0x28] sm:$0xff]
        %v1718 = vld [vmem:[%s1711 + $0x30] sm:$0xff]
        %v1719 = vld [vmem:[%s1711 + $0x38] sm:$0xff]
        %v1720 = vld [vmem:[%s1711 + $0x40] sm:$0xff]
        %v1721 = vld [vmem:[%s1711 + $0x48] sm:$0xff]
        %v1722 = vld [vmem:[%s1711 + $0x50] sm:$0xff]
        %v1723 = vld [vmem:[%s1711 + $0x58] sm:$0xff]
        %v1724 = vld [vmem:[%s1711 + $0x60] sm:$0xff]
        %v1725 = vld [vmem:[%s1711 + $0x68] sm:$0xff]
        %v1726 = vld [vmem:[%s1711 + $0x70] sm:$0xff]
        %v1727 = vld [vmem:[%s1711 + $0x78] sm:$0xff]
        %v1728 = vld [vmem:[%s1711 + $0x80] sm:$0xff]
        %v1729 = vld [vmem:[%s1711 + $0x88] sm:$0xff]
        %v1730 = vld [vmem:[%s1711 + $0x90] sm:$0xff]
        %v1731 = vld [vmem:[%s1711 + $0x98] sm:$0xff]
        %v1732 = vld [vmem:[%s1711 + $0xa0] sm:$0xff]
        %v1733 = vld [vmem:[%s1711 + $0xa8] sm:$0xff]
        %v1734 = vld [vmem:[%s1711 + $0xb0] sm:$0xff]
        %v1735 = vld [vmem:[%s1711 + $0xb8] sm:$0xff]
        %v1736 = vld [vmem:[%s1711 + $0xc0] sm:$0xff]
        %v1737 = vld [vmem:[%s1711 + $0xc8] sm:$0xff]
        %v1738 = vld [vmem:[%s1711 + $0xd0] sm:$0xff]
        %v1739 = vld [vmem:[%s1711 + $0xd8] sm:$0xff]
        %v1740 = vld [vmem:[%s1711 + $0xe0] sm:$0xff]
        %v1741 = vld [vmem:[%s1711 + $0xe8] sm:$0xff]
        %v1742 = vld [vmem:[%s1711 + $0xf0] sm:$0xff]
        %v1743 = vld [vmem:[%s1711 + $0xf8] sm:$0xff]
        %1744 = vmatprep.subr.mxu0 %v1713
        %1745 = vmatpush1.msra.mxu0 %v1712
        %1746 = vmatprep.subr.mxu0 %v1715
        %1747 = vmatpush1.msra.mxu0 %v1714
        %1748 = vmatprep.subr.mxu0 %v1717
        %1749 = vmatpush1.msra.mxu0 %v1716
        %1750 = vmatprep.subr.mxu0 %v1719
        %1751 = vmatpush1.msra.mxu0 %v1718
        %1752 = vmatprep.subr.mxu0 %v1721
        %1753 = vmatpush1.msra.mxu0 %v1720
        %1754 = vmatprep.subr.mxu0 %v1723
        %1755 = vmatpush1.msra.mxu0 %v1722
        %1756 = vmatprep.subr.mxu0 %v1725
        %1757 = vmatpush1.msra.mxu0 %v1724
        %1758 = vmatprep.subr.mxu0 %v1727
        %1759 = vmatpush1.msra.mxu0 %v1726
        %1760 = vmatprep.subr.mxu0 %v1729
        %1761 = vmatpush1.msra.mxu0 %v1728
        %1762 = vmatprep.subr.mxu0 %v1731
        %1763 = vmatpush1.msra.mxu0 %v1730
        %1764 = vmatprep.subr.mxu0 %v1733
        %1765 = vmatpush1.msra.mxu0 %v1732
        %1766 = vmatprep.subr.mxu0 %v1735
        %1767 = vmatpush1.msra.mxu0 %v1734
        %1768 = vmatprep.subr.mxu0 %v1737
        %1769 = vmatpush1.msra.mxu0 %v1736
        %1770 = vmatprep.subr.mxu0 %v1739
        %1771 = vmatpush1.msra.mxu0 %v1738
        %1772 = vmatprep.subr.mxu0 %v1741
        %1773 = vmatpush1.msra.mxu0 %v1740
        %1774 = vmatprep.subr.mxu0 %v1743
        %1775 = vmatpush1.msra.mxu0 %v1742
        %1776 = vmatprep.subr.mxu0 0.0
        %1777 = vmatpush1.msra.mxu0 0.0
        %1778 = vmatprep.subr.mxu0 0.0
        %1779 = vmatpush1.msra.mxu0 0.0
        %1780 = vmatprep.subr.mxu0 0.0
        %1781 = vmatpush1.msra.mxu0 0.0
        %1782 = vmatprep.subr.mxu0 0.0
        %1783 = vmatpush1.msra.mxu0 0.0
        %1784 = vmatprep.subr.mxu0 0.0
        %1785 = vmatpush1.msra.mxu0 0.0
        %1786 = vmatprep.subr.mxu0 0.0
        %1787 = vmatpush1.msra.mxu0 0.0
        %1788 = vmatprep.subr.mxu0 0.0
        %1789 = vmatpush1.msra.mxu0 0.0
        %1790 = vmatprep.subr.mxu0 0.0
        %1791 = vmatpush1.msra.mxu0 0.0
        %1792 = vmatprep.subr.mxu0 0.0
        %1793 = vmatpush1.msra.mxu0 0.0
        %1794 = vmatprep.subr.mxu0 0.0
        %1795 = vmatpush1.msra.mxu0 0.0
        %1796 = vmatprep.subr.mxu0 0.0
        %1797 = vmatpush1.msra.mxu0 0.0
        %1798 = vmatprep.subr.mxu0 0.0
        %1799 = vmatpush1.msra.mxu0 0.0
        %1800 = vmatprep.subr.mxu0 0.0
        %1801 = vmatpush1.msra.mxu0 0.0
        %1802 = vmatprep.subr.mxu0 0.0
        %1803 = vmatpush1.msra.mxu0 0.0
        %1804 = vmatprep.subr.mxu0 0.0
        %1805 = vmatpush1.msra.mxu0 0.0
        %1806 = vmatprep.subr.mxu0 0.0
        %1807 = vmatpush1.msra.mxu0 0.0
        %1808 = vmatprep.mubr.f32.mxu0 0.0
        %1809 = vmatmul.mubr.f32.gmra.mrb[0].mxu0 %v400
        %v1810 = vpop.f32.mrb[0].mxu0
        %v1811 = vadd.f32 0.0, %v1810
        %v1812 = vpop.f32.mrb[0].mxu0
        %v1813 = vadd.f32 0.0, %v1812
        %1814 = vmatprep.mubr.f32.mxu0 0.0
        %1815 = vmatmul.mubr.f32.gmra.mrb[0].mxu0 %v401
        %v1816 = vpop.f32.mrb[0].mxu0
        %v1817 = vadd.f32 0.0, %v1816
        %v1818 = vpop.f32.mrb[0].mxu0
        %v1819 = vadd.f32 0.0, %v1818
        %1820 = vdwg.mxu0
        %v1821 = vadd.f32 %v1707, %v1811
        %v1822 = vadd.f32 %v1708, %v1813
        %v1823 = vadd.f32 %v1709, %v1817
        %v1824 = vadd.f32 %v1710, %v1819
        %s1825 = scalar_lea.vmem [#allocation2], 3072
        %v1826 = vld [vmem:[%s1825] sm:$0xff]
        %v1827 = vld [vmem:[%s1825 + $0x8] sm:$0xff]
        %v1828 = vld [vmem:[%s1825 + $0x10] sm:$0xff]
        %v1829 = vld [vmem:[%s1825 + $0x18] sm:$0xff]
        %v1830 = vld [vmem:[%s1825 + $0x20] sm:$0xff]
        %v1831 = vld [vmem:[%s1825 + $0x28] sm:$0xff]
        %v1832 = vld [vmem:[%s1825 + $0x30] sm:$0xff]
        %v1833 = vld [vmem:[%s1825 + $0x38] sm:$0xff]
        %v1834 = vld [vmem:[%s1825 + $0x40] sm:$0xff]
        %v1835 = vld [vmem:[%s1825 + $0x48] sm:$0xff]
        %v1836 = vld [vmem:[%s1825 + $0x50] sm:$0xff]
        %v1837 = vld [vmem:[%s1825 + $0x58] sm:$0xff]
        %v1838 = vld [vmem:[%s1825 + $0x60] sm:$0xff]
        %v1839 = vld [vmem:[%s1825 + $0x68] sm:$0xff]
        %v1840 = vld [vmem:[%s1825 + $0x70] sm:$0xff]
        %v1841 = vld [vmem:[%s1825 + $0x78] sm:$0xff]
        %v1842 = vld [vmem:[%s1825 + $0x80] sm:$0xff]
        %v1843 = vld [vmem:[%s1825 + $0x88] sm:$0xff]
        %v1844 = vld [vmem:[%s1825 + $0x90] sm:$0xff]
        %v1845 = vld [vmem:[%s1825 + $0x98] sm:$0xff]
        %v1846 = vld [vmem:[%s1825 + $0xa0] sm:$0xff]
        %v1847 = vld [vmem:[%s1825 + $0xa8] sm:$0xff]
        %v1848 = vld [vmem:[%s1825 + $0xb0] sm:$0xff]
        %v1849 = vld [vmem:[%s1825 + $0xb8] sm:$0xff]
        %v1850 = vld [vmem:[%s1825 + $0xc0] sm:$0xff]
        %v1851 = vld [vmem:[%s1825 + $0xc8] sm:$0xff]
        %v1852 = vld [vmem:[%s1825 + $0xd0] sm:$0xff]
        %v1853 = vld [vmem:[%s1825 + $0xd8] sm:$0xff]
        %v1854 = vld [vmem:[%s1825 + $0xe0] sm:$0xff]
        %v1855 = vld [vmem:[%s1825 + $0xe8] sm:$0xff]
        %v1856 = vld [vmem:[%s1825 + $0xf0] sm:$0xff]
        %v1857 = vld [vmem:[%s1825 + $0xf8] sm:$0xff]
        %vm1859 = vcmask 1046528
        %v1860 = vrot.slane %v400, 1
        %v1861 = vrot.slane %v401, 1
        %v1862 = vsel %vm1859, %v1860, %v1861
        %v1863 = vrot.slane %v402, 1
        %v1864 = vsel %vm1859, %v1861, %v1863
        %1867 = vmatprep.subr.mxu0 %v1827
        %1868 = vmatpush1.msra.mxu0 %v1826
        %1869 = vmatprep.subr.mxu0 %v1829
        %1870 = vmatpush1.msra.mxu0 %v1828
        %1871 = vmatprep.subr.mxu0 %v1831
        %1872 = vmatpush1.msra.mxu0 %v1830
        %1873 = vmatprep.subr.mxu0 %v1833
        %1874 = vmatpush1.msra.mxu0 %v1832
        %1875 = vmatprep.subr.mxu0 %v1835
        %1876 = vmatpush1.msra.mxu0 %v1834
        %1877 = vmatprep.subr.mxu0 %v1837
        %1878 = vmatpush1.msra.mxu0 %v1836
        %1879 = vmatprep.subr.mxu0 %v1839
        %1880 = vmatpush1.msra.mxu0 %v1838
        %1881 = vmatprep.subr.mxu0 %v1841
        %1882 = vmatpush1.msra.mxu0 %v1840
        %1883 = vmatprep.subr.mxu0 %v1843
        %1884 = vmatpush1.msra.mxu0 %v1842
        %1885 = vmatprep.subr.mxu0 %v1845
        %1886 = vmatpush1.msra.mxu0 %v1844
        %1887 = vmatprep.subr.mxu0 %v1847
        %1888 = vmatpush1.msra.mxu0 %v1846
        %1889 = vmatprep.subr.mxu0 %v1849
        %1890 = vmatpush1.msra.mxu0 %v1848
        %1891 = vmatprep.subr.mxu0 %v1851
        %1892 = vmatpush1.msra.mxu0 %v1850
        %1893 = vmatprep.subr.mxu0 %v1853
        %1894 = vmatpush1.msra.mxu0 %v1852
        %1895 = vmatprep.subr.mxu0 %v1855
        %1896 = vmatpush1.msra.mxu0 %v1854
        %1897 = vmatprep.subr.mxu0 %v1857
        %1898 = vmatpush1.msra.mxu0 %v1856
        %1899 = vmatprep.subr.mxu0 0.0
        %1900 = vmatpush1.msra.mxu0 0.0
        %1901 = vmatprep.subr.mxu0 0.0
        %1902 = vmatpush1.msra.mxu0 0.0
        %1903 = vmatprep.subr.mxu0 0.0
        %1904 = vmatpush1.msra.mxu0 0.0
        %1905 = vmatprep.subr.mxu0 0.0
        %1906 = vmatpush1.msra.mxu0 0.0
        %1907 = vmatprep.subr.mxu0 0.0
        %1908 = vmatpush1.msra.mxu0 0.0
        %1909 = vmatprep.subr.mxu0 0.0
        %1910 = vmatpush1.msra.mxu0 0.0
        %1911 = vmatprep.subr.mxu0 0.0
        %1912 = vmatpush1.msra.mxu0 0.0
        %1913 = vmatprep.subr.mxu0 0.0
        %1914 = vmatpush1.msra.mxu0 0.0
        %1915 = vmatprep.subr.mxu0 0.0
        %1916 = vmatpush1.msra.mxu0 0.0
        %1917 = vmatprep.subr.mxu0 0.0
        %1918 = vmatpush1.msra.mxu0 0.0
        %1919 = vmatprep.subr.mxu0 0.0
        %1920 = vmatpush1.msra.mxu0 0.0
        %1921 = vmatprep.subr.mxu0 0.0
        %1922 = vmatpush1.msra.mxu0 0.0
        %1923 = vmatprep.subr.mxu0 0.0
        %1924 = vmatpush1.msra.mxu0 0.0
        %1925 = vmatprep.subr.mxu0 0.0
        %1926 = vmatpush1.msra.mxu0 0.0
        %1927 = vmatprep.subr.mxu0 0.0
        %1928 = vmatpush1.msra.mxu0 0.0
        %1929 = vmatprep.subr.mxu0 0.0
        %1930 = vmatpush1.msra.mxu0 0.0
        %1931 = vmatprep.mubr.f32.mxu0 0.0
        %1932 = vmatmul.mubr.f32.gmra.mrb[0].mxu0 %v1862
        %v1933 = vpop.f32.mrb[0].mxu0
        %v1934 = vadd.f32 0.0, %v1933
        %v1935 = vpop.f32.mrb[0].mxu0
        %v1936 = vadd.f32 0.0, %v1935
        %1937 = vmatprep.mubr.f32.mxu0 0.0
        %1938 = vmatmul.mubr.f32.gmra.mrb[0].mxu0 %v1864
        %v1939 = vpop.f32.mrb[0].mxu0
        %v1940 = vadd.f32 0.0, %v1939
        %v1941 = vpop.f32.mrb[0].mxu0
        %v1942 = vadd.f32 0.0, %v1941
        %1943 = vdwg.mxu0
        %v1944 = vadd.f32 %v1821, %v1934
        %v1945 = vadd.f32 %v1822, %v1936
        %v1946 = vadd.f32 %v1823, %v1940
        %v1947 = vadd.f32 %v1824, %v1942
        %s1948 = scalar_lea.vmem [#allocation2], 3328
        %v1949 = vld [vmem:[%s1948] sm:$0xff]
        %v1950 = vld [vmem:[%s1948 + $0x8] sm:$0xff]
        %v1951 = vld [vmem:[%s1948 + $0x10] sm:$0xff]
        %v1952 = vld [vmem:[%s1948 + $0x18] sm:$0xff]
        %v1953 = vld [vmem:[%s1948 + $0x20] sm:$0xff]
        %v1954 = vld [vmem:[%s1948 + $0x28] sm:$0xff]
        %v1955 = vld [vmem:[%s1948 + $0x30] sm:$0xff]
        %v1956 = vld [vmem:[%s1948 + $0x38] sm:$0xff]
        %v1957 = vld [vmem:[%s1948 + $0x40] sm:$0xff]
        %v1958 = vld [vmem:[%s1948 + $0x48] sm:$0xff]
        %v1959 = vld [vmem:[%s1948 + $0x50] sm:$0xff]
        %v1960 = vld [vmem:[%s1948 + $0x58] sm:$0xff]
        %v1961 = vld [vmem:[%s1948 + $0x60] sm:$0xff]
        %v1962 = vld [vmem:[%s1948 + $0x68] sm:$0xff]
        %v1963 = vld [vmem:[%s1948 + $0x70] sm:$0xff]
        %v1964 = vld [vmem:[%s1948 + $0x78] sm:$0xff]
        %v1965 = vld [vmem:[%s1948 + $0x80] sm:$0xff]
        %v1966 = vld [vmem:[%s1948 + $0x88] sm:$0xff]
        %v1967 = vld [vmem:[%s1948 + $0x90] sm:$0xff]
        %v1968 = vld [vmem:[%s1948 + $0x98] sm:$0xff]
        %v1969 = vld [vmem:[%s1948 + $0xa0] sm:$0xff]
        %v1970 = vld [vmem:[%s1948 + $0xa8] sm:$0xff]
        %v1971 = vld [vmem:[%s1948 + $0xb0] sm:$0xff]
        %v1972 = vld [vmem:[%s1948 + $0xb8] sm:$0xff]
        %v1973 = vld [vmem:[%s1948 + $0xc0] sm:$0xff]
        %v1974 = vld [vmem:[%s1948 + $0xc8] sm:$0xff]
        %v1975 = vld [vmem:[%s1948 + $0xd0] sm:$0xff]
        %v1976 = vld [vmem:[%s1948 + $0xd8] sm:$0xff]
        %v1977 = vld [vmem:[%s1948 + $0xe0] sm:$0xff]
        %v1978 = vld [vmem:[%s1948 + $0xe8] sm:$0xff]
        %v1979 = vld [vmem:[%s1948 + $0xf0] sm:$0xff]
        %v1980 = vld [vmem:[%s1948 + $0xf8] sm:$0xff]
        %v1981 = vrot.slane %v402, 2
        %v1982 = vsel %vm473, %v1027, %v1981
        %1984 = vmatprep.subr.mxu0 %v1950
        %1985 = vmatpush1.msra.mxu0 %v1949
        %1986 = vmatprep.subr.mxu0 %v1952
        %1987 = vmatpush1.msra.mxu0 %v1951
        %1988 = vmatprep.subr.mxu0 %v1954
        %1989 = vmatpush1.msra.mxu0 %v1953
        %1990 = vmatprep.subr.mxu0 %v1956
        %1991 = vmatpush1.msra.mxu0 %v1955
        %1992 = vmatprep.subr.mxu0 %v1958
        %1993 = vmatpush1.msra.mxu0 %v1957
        %1994 = vmatprep.subr.mxu0 %v1960
        %1995 = vmatpush1.msra.mxu0 %v1959
        %1996 = vmatprep.subr.mxu0 %v1962
        %1997 = vmatpush1.msra.mxu0 %v1961
        %1998 = vmatprep.subr.mxu0 %v1964
        %1999 = vmatpush1.msra.mxu0 %v1963
        %2000 = vmatprep.subr.mxu0 %v1966
        %2001 = vmatpush1.msra.mxu0 %v1965
        %2002 = vmatprep.subr.mxu0 %v1968
        %2003 = vmatpush1.msra.mxu0 %v1967
        %2004 = vmatprep.subr.mxu0 %v1970
        %2005 = vmatpush1.msra.mxu0 %v1969
        %2006 = vmatprep.subr.mxu0 %v1972
        %2007 = vmatpush1.msra.mxu0 %v1971
        %2008 = vmatprep.subr.mxu0 %v1974
        %2009 = vmatpush1.msra.mxu0 %v1973
        %2010 = vmatprep.subr.mxu0 %v1976
        %2011 = vmatpush1.msra.mxu0 %v1975
        %2012 = vmatprep.subr.mxu0 %v1978
        %2013 = vmatpush1.msra.mxu0 %v1977
        %2014 = vmatprep.subr.mxu0 %v1980
        %2015 = vmatpush1.msra.mxu0 %v1979
        %2016 = vmatprep.subr.mxu0 0.0
        %2017 = vmatpush1.msra.mxu0 0.0
        %2018 = vmatprep.subr.mxu0 0.0
        %2019 = vmatpush1.msra.mxu0 0.0
        %2020 = vmatprep.subr.mxu0 0.0
        %2021 = vmatpush1.msra.mxu0 0.0
        %2022 = vmatprep.subr.mxu0 0.0
        %2023 = vmatpush1.msra.mxu0 0.0
        %2024 = vmatprep.subr.mxu0 0.0
        %2025 = vmatpush1.msra.mxu0 0.0
        %2026 = vmatprep.subr.mxu0 0.0
        %2027 = vmatpush1.msra.mxu0 0.0
        %2028 = vmatprep.subr.mxu0 0.0
        %2029 = vmatpush1.msra.mxu0 0.0
        %2030 = vmatprep.subr.mxu0 0.0
        %2031 = vmatpush1.msra.mxu0 0.0
        %2032 = vmatprep.subr.mxu0 0.0
        %2033 = vmatpush1.msra.mxu0 0.0
        %2034 = vmatprep.subr.mxu0 0.0
        %2035 = vmatpush1.msra.mxu0 0.0
        %2036 = vmatprep.subr.mxu0 0.0
        %2037 = vmatpush1.msra.mxu0 0.0
        %2038 = vmatprep.subr.mxu0 0.0
        %2039 = vmatpush1.msra.mxu0 0.0
        %2040 = vmatprep.subr.mxu0 0.0
        %2041 = vmatpush1.msra.mxu0 0.0
        %2042 = vmatprep.subr.mxu0 0.0
        %2043 = vmatpush1.msra.mxu0 0.0
        %2044 = vmatprep.subr.mxu0 0.0
        %2045 = vmatpush1.msra.mxu0 0.0
        %2046 = vmatprep.subr.mxu0 0.0
        %2047 = vmatpush1.msra.mxu0 0.0
        %2048 = vmatprep.mubr.f32.mxu0 0.0
        %2049 = vmatmul.mubr.f32.gmra.mrb[0].mxu0 %v1028
        %v2050 = vpop.f32.mrb[0].mxu0
        %v2051 = vadd.f32 0.0, %v2050
        %v2052 = vpop.f32.mrb[0].mxu0
        %v2053 = vadd.f32 0.0, %v2052
        %2054 = vmatprep.mubr.f32.mxu0 0.0
        %2055 = vmatmul.mubr.f32.gmra.mrb[0].mxu0 %v1982
        %v2056 = vpop.f32.mrb[0].mxu0
        %v2057 = vadd.f32 0.0, %v2056
        %v2058 = vpop.f32.mrb[0].mxu0
        %v2059 = vadd.f32 0.0, %v2058
        %2060 = vdwg.mxu0
        %v2061 = vadd.f32 %v1944, %v2051
        %v2062 = vadd.f32 %v1945, %v2053
        %v2063 = vadd.f32 %v1946, %v2057
        %v2064 = vadd.f32 %v1947, %v2059
        %s2065 = scalar_lea.vmem [#allocation2], 3584
        %v2066 = vld [vmem:[%s2065] sm:$0xff]
        %v2067 = vld [vmem:[%s2065 + $0x8] sm:$0xff]
        %v2068 = vld [vmem:[%s2065 + $0x10] sm:$0xff]
        %v2069 = vld [vmem:[%s2065 + $0x18] sm:$0xff]
        %v2070 = vld [vmem:[%s2065 + $0x20] sm:$0xff]
        %v2071 = vld [vmem:[%s2065 + $0x28] sm:$0xff]
        %v2072 = vld [vmem:[%s2065 + $0x30] sm:$0xff]
        %v2073 = vld [vmem:[%s2065 + $0x38] sm:$0xff]
        %v2074 = vld [vmem:[%s2065 + $0x40] sm:$0xff]
        %v2075 = vld [vmem:[%s2065 + $0x48] sm:$0xff]
        %v2076 = vld [vmem:[%s2065 + $0x50] sm:$0xff]
        %v2077 = vld [vmem:[%s2065 + $0x58] sm:$0xff]
        %v2078 = vld [vmem:[%s2065 + $0x60] sm:$0xff]
        %v2079 = vld [vmem:[%s2065 + $0x68] sm:$0xff]
        %v2080 = vld [vmem:[%s2065 + $0x70] sm:$0xff]
        %v2081 = vld [vmem:[%s2065 + $0x78] sm:$0xff]
        %v2082 = vld [vmem:[%s2065 + $0x80] sm:$0xff]
        %v2083 = vld [vmem:[%s2065 + $0x88] sm:$0xff]
        %v2084 = vld [vmem:[%s2065 + $0x90] sm:$0xff]
        %v2085 = vld [vmem:[%s2065 + $0x98] sm:$0xff]
        %v2086 = vld [vmem:[%s2065 + $0xa0] sm:$0xff]
        %v2087 = vld [vmem:[%s2065 + $0xa8] sm:$0xff]
        %v2088 = vld [vmem:[%s2065 + $0xb0] sm:$0xff]
        %v2089 = vld [vmem:[%s2065 + $0xb8] sm:$0xff]
        %v2090 = vld [vmem:[%s2065 + $0xc0] sm:$0xff]
        %v2091 = vld [vmem:[%s2065 + $0xc8] sm:$0xff]
        %v2092 = vld [vmem:[%s2065 + $0xd0] sm:$0xff]
        %v2093 = vld [vmem:[%s2065 + $0xd8] sm:$0xff]
        %v2094 = vld [vmem:[%s2065 + $0xe0] sm:$0xff]
        %v2095 = vld [vmem:[%s2065 + $0xe8] sm:$0xff]
        %v2096 = vld [vmem:[%s2065 + $0xf0] sm:$0xff]
        %v2097 = vld [vmem:[%s2065 + $0xf8] sm:$0xff]
        %v2098 = vrot.slane %v402, 3
        %v2099 = vsel %vm1144, %v1148, %v2098
        %2101 = vmatprep.subr.mxu0 %v2067
        %2102 = vmatpush1.msra.mxu0 %v2066
        %2103 = vmatprep.subr.mxu0 %v2069
        %2104 = vmatpush1.msra.mxu0 %v2068
        %2105 = vmatprep.subr.mxu0 %v2071
        %2106 = vmatpush1.msra.mxu0 %v2070
        %2107 = vmatprep.subr.mxu0 %v2073
        %2108 = vmatpush1.msra.mxu0 %v2072
        %2109 = vmatprep.subr.mxu0 %v2075
        %2110 = vmatpush1.msra.mxu0 %v2074
        %2111 = vmatprep.subr.mxu0 %v2077
        %2112 = vmatpush1.msra.mxu0 %v2076
        %2113 = vmatprep.subr.mxu0 %v2079
        %2114 = vmatpush1.msra.mxu0 %v2078
        %2115 = vmatprep.subr.mxu0 %v2081
        %2116 = vmatpush1.msra.mxu0 %v2080
        %2117 = vmatprep.subr.mxu0 %v2083
        %2118 = vmatpush1.msra.mxu0 %v2082
        %2119 = vmatprep.subr.mxu0 %v2085
        %2120 = vmatpush1.msra.mxu0 %v2084
        %2121 = vmatprep.subr.mxu0 %v2087
        %2122 = vmatpush1.msra.mxu0 %v2086
        %2123 = vmatprep.subr.mxu0 %v2089
        %2124 = vmatpush1.msra.mxu0 %v2088
        %2125 = vmatprep.subr.mxu0 %v2091
        %2126 = vmatpush1.msra.mxu0 %v2090
        %2127 = vmatprep.subr.mxu0 %v2093
        %2128 = vmatpush1.msra.mxu0 %v2092
        %2129 = vmatprep.subr.mxu0 %v2095
        %2130 = vmatpush1.msra.mxu0 %v2094
        %2131 = vmatprep.subr.mxu0 %v2097
        %2132 = vmatpush1.msra.mxu0 %v2096
        %2133 = vmatprep.subr.mxu0 0.0
        %2134 = vmatpush1.msra.mxu0 0.0
        %2135 = vmatprep.subr.mxu0 0.0
        %2136 = vmatpush1.msra.mxu0 0.0
        %2137 = vmatprep.subr.mxu0 0.0
        %2138 = vmatpush1.msra.mxu0 0.0
        %2139 = vmatprep.subr.mxu0 0.0
        %2140 = vmatpush1.msra.mxu0 0.0
        %2141 = vmatprep.subr.mxu0 0.0
        %2142 = vmatpush1.msra.mxu0 0.0
        %2143 = vmatprep.subr.mxu0 0.0
        %2144 = vmatpush1.msra.mxu0 0.0
        %2145 = vmatprep.subr.mxu0 0.0
        %2146 = vmatpush1.msra.mxu0 0.0
        %2147 = vmatprep.subr.mxu0 0.0
        %2148 = vmatpush1.msra.mxu0 0.0
        %2149 = vmatprep.subr.mxu0 0.0
        %2150 = vmatpush1.msra.mxu0 0.0
        %2151 = vmatprep.subr.mxu0 0.0
        %2152 = vmatpush1.msra.mxu0 0.0
        %2153 = vmatprep.subr.mxu0 0.0
        %2154 = vmatpush1.msra.mxu0 0.0
        %2155 = vmatprep.subr.mxu0 0.0
        %2156 = vmatpush1.msra.mxu0 0.0
        %2157 = vmatprep.subr.mxu0 0.0
        %2158 = vmatpush1.msra.mxu0 0.0
        %2159 = vmatprep.subr.mxu0 0.0
        %2160 = vmatpush1.msra.mxu0 0.0
        %2161 = vmatprep.subr.mxu0 0.0
        %2162 = vmatpush1.msra.mxu0 0.0
        %2163 = vmatprep.subr.mxu0 0.0
        %2164 = vmatpush1.msra.mxu0 0.0
        %2165 = vmatprep.mubr.f32.mxu0 0.0
        %2166 = vmatmul.mubr.f32.gmra.mrb[0].mxu0 %v1149
        %v2167 = vpop.f32.mrb[0].mxu0
        %v2168 = vadd.f32 0.0, %v2167
        %v2169 = vpop.f32.mrb[0].mxu0
        %v2170 = vadd.f32 0.0, %v2169
        %2171 = vmatprep.mubr.f32.mxu0 0.0
        %2172 = vmatmul.mubr.f32.gmra.mrb[0].mxu0 %v2099
        %v2173 = vpop.f32.mrb[0].mxu0
        %v2174 = vadd.f32 0.0, %v2173
        %v2175 = vpop.f32.mrb[0].mxu0
        %v2176 = vadd.f32 0.0, %v2175
        %2177 = vdwg.mxu0
        %v2178 = vadd.f32 %v2061, %v2168
        %v2179 = vadd.f32 %v2062, %v2170
        %v2180 = vadd.f32 %v2063, %v2174
        %v2181 = vadd.f32 %v2064, %v2176
        %s2182 = scalar_lea.vmem [#allocation2], 3840
        %v2183 = vld [vmem:[%s2182] sm:$0xff]
        %v2184 = vld [vmem:[%s2182 + $0x8] sm:$0xff]
        %v2185 = vld [vmem:[%s2182 + $0x10] sm:$0xff]
        %v2186 = vld [vmem:[%s2182 + $0x18] sm:$0xff]
        %v2187 = vld [vmem:[%s2182 + $0x20] sm:$0xff]
        %v2188 = vld [vmem:[%s2182 + $0x28] sm:$0xff]
        %v2189 = vld [vmem:[%s2182 + $0x30] sm:$0xff]
        %v2190 = vld [vmem:[%s2182 + $0x38] sm:$0xff]
        %v2191 = vld [vmem:[%s2182 + $0x40] sm:$0xff]
        %v2192 = vld [vmem:[%s2182 + $0x48] sm:$0xff]
        %v2193 = vld [vmem:[%s2182 + $0x50] sm:$0xff]
        %v2194 = vld [vmem:[%s2182 + $0x58] sm:$0xff]
        %v2195 = vld [vmem:[%s2182 + $0x60] sm:$0xff]
        %v2196 = vld [vmem:[%s2182 + $0x68] sm:$0xff]
        %v2197 = vld [vmem:[%s2182 + $0x70] sm:$0xff]
        %v2198 = vld [vmem:[%s2182 + $0x78] sm:$0xff]
        %v2199 = vld [vmem:[%s2182 + $0x80] sm:$0xff]
        %v2200 = vld [vmem:[%s2182 + $0x88] sm:$0xff]
        %v2201 = vld [vmem:[%s2182 + $0x90] sm:$0xff]
        %v2202 = vld [vmem:[%s2182 + $0x98] sm:$0xff]
        %v2203 = vld [vmem:[%s2182 + $0xa0] sm:$0xff]
        %v2204 = vld [vmem:[%s2182 + $0xa8] sm:$0xff]
        %v2205 = vld [vmem:[%s2182 + $0xb0] sm:$0xff]
        %v2206 = vld [vmem:[%s2182 + $0xb8] sm:$0xff]
        %v2207 = vld [vmem:[%s2182 + $0xc0] sm:$0xff]
        %v2208 = vld [vmem:[%s2182 + $0xc8] sm:$0xff]
        %v2209 = vld [vmem:[%s2182 + $0xd0] sm:$0xff]
        %v2210 = vld [vmem:[%s2182 + $0xd8] sm:$0xff]
        %v2211 = vld [vmem:[%s2182 + $0xe0] sm:$0xff]
        %v2212 = vld [vmem:[%s2182 + $0xe8] sm:$0xff]
        %v2213 = vld [vmem:[%s2182 + $0xf0] sm:$0xff]
        %v2214 = vld [vmem:[%s2182 + $0xf8] sm:$0xff]
        %v2215 = vrot.slane %v402, 4
        %v2216 = vsel %vm668, %v1266, %v2215
        %2218 = vmatprep.subr.mxu0 %v2184
        %2219 = vmatpush1.msra.mxu0 %v2183
        %2220 = vmatprep.subr.mxu0 %v2186
        %2221 = vmatpush1.msra.mxu0 %v2185
        %2222 = vmatprep.subr.mxu0 %v2188
        %2223 = vmatpush1.msra.mxu0 %v2187
        %2224 = vmatprep.subr.mxu0 %v2190
        %2225 = vmatpush1.msra.mxu0 %v2189
        %2226 = vmatprep.subr.mxu0 %v2192
        %2227 = vmatpush1.msra.mxu0 %v2191
        %2228 = vmatprep.subr.mxu0 %v2194
        %2229 = vmatpush1.msra.mxu0 %v2193
        %2230 = vmatprep.subr.mxu0 %v2196
        %2231 = vmatpush1.msra.mxu0 %v2195
        %2232 = vmatprep.subr.mxu0 %v2198
        %2233 = vmatpush1.msra.mxu0 %v2197
        %2234 = vmatprep.subr.mxu0 %v2200
        %2235 = vmatpush1.msra.mxu0 %v2199
        %2236 = vmatprep.subr.mxu0 %v2202
        %2237 = vmatpush1.msra.mxu0 %v2201
        %2238 = vmatprep.subr.mxu0 %v2204
        %2239 = vmatpush1.msra.mxu0 %v2203
        %2240 = vmatprep.subr.mxu0 %v2206
        %2241 = vmatpush1.msra.mxu0 %v2205
        %2242 = vmatprep.subr.mxu0 %v2208
        %2243 = vmatpush1.msra.mxu0 %v2207
        %2244 = vmatprep.subr.mxu0 %v2210
        %2245 = vmatpush1.msra.mxu0 %v2209
        %2246 = vmatprep.subr.mxu0 %v2212
        %2247 = vmatpush1.msra.mxu0 %v2211
        %2248 = vmatprep.subr.mxu0 %v2214
        %2249 = vmatpush1.msra.mxu0 %v2213
        %2250 = vmatprep.subr.mxu0 0.0
        %2251 = vmatpush1.msra.mxu0 0.0
        %2252 = vmatprep.subr.mxu0 0.0
        %2253 = vmatpush1.msra.mxu0 0.0
        %2254 = vmatprep.subr.mxu0 0.0
        %2255 = vmatpush1.msra.mxu0 0.0
        %2256 = vmatprep.subr.mxu0 0.0
        %2257 = vmatpush1.msra.mxu0 0.0
        %2258 = vmatprep.subr.mxu0 0.0
        %2259 = vmatpush1.msra.mxu0 0.0
        %2260 = vmatprep.subr.mxu0 0.0
        %2261 = vmatpush1.msra.mxu0 0.0
        %2262 = vmatprep.subr.mxu0 0.0
        %2263 = vmatpush1.msra.mxu0 0.0
        %2264 = vmatprep.subr.mxu0 0.0
        %2265 = vmatpush1.msra.mxu0 0.0
        %2266 = vmatprep.subr.mxu0 0.0
        %2267 = vmatpush1.msra.mxu0 0.0
        %2268 = vmatprep.subr.mxu0 0.0
        %2269 = vmatpush1.msra.mxu0 0.0
        %2270 = vmatprep.subr.mxu0 0.0
        %2271 = vmatpush1.msra.mxu0 0.0
        %2272 = vmatprep.subr.mxu0 0.0
        %2273 = vmatpush1.msra.mxu0 0.0
        %2274 = vmatprep.subr.mxu0 0.0
        %2275 = vmatpush1.msra.mxu0 0.0
        %2276 = vmatprep.subr.mxu0 0.0
        %2277 = vmatpush1.msra.mxu0 0.0
        %2278 = vmatprep.subr.mxu0 0.0
        %2279 = vmatpush1.msra.mxu0 0.0
        %2280 = vmatprep.subr.mxu0 0.0
        %2281 = vmatpush1.msra.mxu0 0.0
        %2282 = vmatprep.mubr.f32.mxu0 0.0
        %2283 = vmatmul.mubr.f32.gmra.mrb[0].mxu0 %v1267
        %v2284 = vpop.f32.mrb[0].mxu0
        %v2285 = vadd.f32 0.0, %v2284
        %v2286 = vpop.f32.mrb[0].mxu0
        %v2287 = vadd.f32 0.0, %v2286
        %2288 = vmatprep.mubr.f32.mxu0 0.0
        %2289 = vmatmul.mubr.f32.gmra.mrb[0].mxu0 %v2216
        %v2290 = vpop.f32.mrb[0].mxu0
        %v2291 = vadd.f32 0.0, %v2290
        %v2292 = vpop.f32.mrb[0].mxu0
        %v2293 = vadd.f32 0.0, %v2292
        %2294 = vdwg.mxu0
        %v2295 = vadd.f32 %v2178, %v2285
        %v2296 = vadd.f32 %v2179, %v2287
        %v2297 = vadd.f32 %v2180, %v2291
        %v2298 = vadd.f32 %v2181, %v2293
        %s2299 = scalar_lea.vmem [#allocation2], 4096
        %v2300 = vld [vmem:[%s2299] sm:$0xff]
        %v2301 = vld [vmem:[%s2299 + $0x8] sm:$0xff]
        %v2302 = vld [vmem:[%s2299 + $0x10] sm:$0xff]
        %v2303 = vld [vmem:[%s2299 + $0x18] sm:$0xff]
        %v2304 = vld [vmem:[%s2299 + $0x20] sm:$0xff]
        %v2305 = vld [vmem:[%s2299 + $0x28] sm:$0xff]
        %v2306 = vld [vmem:[%s2299 + $0x30] sm:$0xff]
        %v2307 = vld [vmem:[%s2299 + $0x38] sm:$0xff]
        %v2308 = vld [vmem:[%s2299 + $0x40] sm:$0xff]
        %v2309 = vld [vmem:[%s2299 + $0x48] sm:$0xff]
        %v2310 = vld [vmem:[%s2299 + $0x50] sm:$0xff]
        %v2311 = vld [vmem:[%s2299 + $0x58] sm:$0xff]
        %v2312 = vld [vmem:[%s2299 + $0x60] sm:$0xff]
        %v2313 = vld [vmem:[%s2299 + $0x68] sm:$0xff]
        %v2314 = vld [vmem:[%s2299 + $0x70] sm:$0xff]
        %v2315 = vld [vmem:[%s2299 + $0x78] sm:$0xff]
        %v2316 = vld [vmem:[%s2299 + $0x80] sm:$0xff]
        %v2317 = vld [vmem:[%s2299 + $0x88] sm:$0xff]
        %v2318 = vld [vmem:[%s2299 + $0x90] sm:$0xff]
        %v2319 = vld [vmem:[%s2299 + $0x98] sm:$0xff]
        %v2320 = vld [vmem:[%s2299 + $0xa0] sm:$0xff]
        %v2321 = vld [vmem:[%s2299 + $0xa8] sm:$0xff]
        %v2322 = vld [vmem:[%s2299 + $0xb0] sm:$0xff]
        %v2323 = vld [vmem:[%s2299 + $0xb8] sm:$0xff]
        %v2324 = vld [vmem:[%s2299 + $0xc0] sm:$0xff]
        %v2325 = vld [vmem:[%s2299 + $0xc8] sm:$0xff]
        %v2326 = vld [vmem:[%s2299 + $0xd0] sm:$0xff]
        %v2327 = vld [vmem:[%s2299 + $0xd8] sm:$0xff]
        %v2328 = vld [vmem:[%s2299 + $0xe0] sm:$0xff]
        %v2329 = vld [vmem:[%s2299 + $0xe8] sm:$0xff]
        %v2330 = vld [vmem:[%s2299 + $0xf0] sm:$0xff]
        %v2331 = vld [vmem:[%s2299 + $0xf8] sm:$0xff]
        %v2332 = vrot.slane %v402, 5
        %v2333 = vsel %vm1383, %v1387, %v2332
        %2335 = vmatprep.subr.mxu0 %v2301
        %2336 = vmatpush1.msra.mxu0 %v2300
        %2337 = vmatprep.subr.mxu0 %v2303
        %2338 = vmatpush1.msra.mxu0 %v2302
        %2339 = vmatprep.subr.mxu0 %v2305
        %2340 = vmatpush1.msra.mxu0 %v2304
        %2341 = vmatprep.subr.mxu0 %v2307
        %2342 = vmatpush1.msra.mxu0 %v2306
        %2343 = vmatprep.subr.mxu0 %v2309
        %2344 = vmatpush1.msra.mxu0 %v2308
        %2345 = vmatprep.subr.mxu0 %v2311
        %2346 = vmatpush1.msra.mxu0 %v2310
        %2347 = vmatprep.subr.mxu0 %v2313
        %2348 = vmatpush1.msra.mxu0 %v2312
        %2349 = vmatprep.subr.mxu0 %v2315
        %2350 = vmatpush1.msra.mxu0 %v2314
        %2351 = vmatprep.subr.mxu0 %v2317
        %2352 = vmatpush1.msra.mxu0 %v2316
        %2353 = vmatprep.subr.mxu0 %v2319
        %2354 = vmatpush1.msra.mxu0 %v2318
        %2355 = vmatprep.subr.mxu0 %v2321
        %2356 = vmatpush1.msra.mxu0 %v2320
        %2357 = vmatprep.subr.mxu0 %v2323
        %2358 = vmatpush1.msra.mxu0 %v2322
        %2359 = vmatprep.subr.mxu0 %v2325
        %2360 = vmatpush1.msra.mxu0 %v2324
        %2361 = vmatprep.subr.mxu0 %v2327
        %2362 = vmatpush1.msra.mxu0 %v2326
        %2363 = vmatprep.subr.mxu0 %v2329
        %2364 = vmatpush1.msra.mxu0 %v2328
        %2365 = vmatprep.subr.mxu0 %v2331
        %2366 = vmatpush1.msra.mxu0 %v2330
        %2367 = vmatprep.subr.mxu0 0.0
        %2368 = vmatpush1.msra.mxu0 0.0
        %2369 = vmatprep.subr.mxu0 0.0
        %2370 = vmatpush1.msra.mxu0 0.0
        %2371 = vmatprep.subr.mxu0 0.0
        %2372 = vmatpush1.msra.mxu0 0.0
        %2373 = vmatprep.subr.mxu0 0.0
        %2374 = vmatpush1.msra.mxu0 0.0
        %2375 = vmatprep.subr.mxu0 0.0
        %2376 = vmatpush1.msra.mxu0 0.0
        %2377 = vmatprep.subr.mxu0 0.0
        %2378 = vmatpush1.msra.mxu0 0.0
        %2379 = vmatprep.subr.mxu0 0.0
        %2380 = vmatpush1.msra.mxu0 0.0
        %2381 = vmatprep.subr.mxu0 0.0
        %2382 = vmatpush1.msra.mxu0 0.0
        %2383 = vmatprep.subr.mxu0 0.0
        %2384 = vmatpush1.msra.mxu0 0.0
        %2385 = vmatprep.subr.mxu0 0.0
        %2386 = vmatpush1.msra.mxu0 0.0
        %2387 = vmatprep.subr.mxu0 0.0
        %2388 = vmatpush1.msra.mxu0 0.0
        %2389 = vmatprep.subr.mxu0 0.0
        %2390 = vmatpush1.msra.mxu0 0.0
        %2391 = vmatprep.subr.mxu0 0.0
        %2392 = vmatpush1.msra.mxu0 0.0
        %2393 = vmatprep.subr.mxu0 0.0
        %2394 = vmatpush1.msra.mxu0 0.0
        %2395 = vmatprep.subr.mxu0 0.0
        %2396 = vmatpush1.msra.mxu0 0.0
        %2397 = vmatprep.subr.mxu0 0.0
        %2398 = vmatpush1.msra.mxu0 0.0
        %2399 = vmatprep.mubr.f32.mxu0 0.0
        %2400 = vmatmul.mubr.f32.gmra.mrb[0].mxu0 %v1388
        %v2401 = vpop.f32.mrb[0].mxu0
        %v2402 = vadd.f32 0.0, %v2401
        %v2403 = vpop.f32.mrb[0].mxu0
        %v2404 = vadd.f32 0.0, %v2403
        %2405 = vmatprep.mubr.f32.mxu0 0.0
        %2406 = vmatmul.mubr.f32.gmra.mrb[0].mxu0 %v2333
        %v2407 = vpop.f32.mrb[0].mxu0
        %v2408 = vadd.f32 0.0, %v2407
        %v2409 = vpop.f32.mrb[0].mxu0
        %v2410 = vadd.f32 0.0, %v2409
        %2411 = vdwg.mxu0
        %v2412 = vadd.f32 %v2295, %v2402
        %v2413 = vadd.f32 %v2296, %v2404
        %v2414 = vadd.f32 %v2297, %v2408
        %v2415 = vadd.f32 %v2298, %v2410
        %s2416 = scalar_lea.vmem [#allocation2], 4352
        %v2417 = vld [vmem:[%s2416] sm:$0xff]
        %v2418 = vld [vmem:[%s2416 + $0x8] sm:$0xff]
        %v2419 = vld [vmem:[%s2416 + $0x10] sm:$0xff]
        %v2420 = vld [vmem:[%s2416 + $0x18] sm:$0xff]
        %v2421 = vld [vmem:[%s2416 + $0x20] sm:$0xff]
        %v2422 = vld [vmem:[%s2416 + $0x28] sm:$0xff]
        %v2423 = vld [vmem:[%s2416 + $0x30] sm:$0xff]
        %v2424 = vld [vmem:[%s2416 + $0x38] sm:$0xff]
        %v2425 = vld [vmem:[%s2416 + $0x40] sm:$0xff]
        %v2426 = vld [vmem:[%s2416 + $0x48] sm:$0xff]
        %v2427 = vld [vmem:[%s2416 + $0x50] sm:$0xff]
        %v2428 = vld [vmem:[%s2416 + $0x58] sm:$0xff]
        %v2429 = vld [vmem:[%s2416 + $0x60] sm:$0xff]
        %v2430 = vld [vmem:[%s2416 + $0x68] sm:$0xff]
        %v2431 = vld [vmem:[%s2416 + $0x70] sm:$0xff]
        %v2432 = vld [vmem:[%s2416 + $0x78] sm:$0xff]
        %v2433 = vld [vmem:[%s2416 + $0x80] sm:$0xff]
        %v2434 = vld [vmem:[%s2416 + $0x88] sm:$0xff]
        %v2435 = vld [vmem:[%s2416 + $0x90] sm:$0xff]
        %v2436 = vld [vmem:[%s2416 + $0x98] sm:$0xff]
        %v2437 = vld [vmem:[%s2416 + $0xa0] sm:$0xff]
        %v2438 = vld [vmem:[%s2416 + $0xa8] sm:$0xff]
        %v2439 = vld [vmem:[%s2416 + $0xb0] sm:$0xff]
        %v2440 = vld [vmem:[%s2416 + $0xb8] sm:$0xff]
        %v2441 = vld [vmem:[%s2416 + $0xc0] sm:$0xff]
        %v2442 = vld [vmem:[%s2416 + $0xc8] sm:$0xff]
        %v2443 = vld [vmem:[%s2416 + $0xd0] sm:$0xff]
        %v2444 = vld [vmem:[%s2416 + $0xd8] sm:$0xff]
        %v2445 = vld [vmem:[%s2416 + $0xe0] sm:$0xff]
        %v2446 = vld [vmem:[%s2416 + $0xe8] sm:$0xff]
        %v2447 = vld [vmem:[%s2416 + $0xf0] sm:$0xff]
        %v2448 = vld [vmem:[%s2416 + $0xf8] sm:$0xff]
        %v2449 = vrot.slane %v402, 6
        %v2450 = vsel %vm790, %v1505, %v2449
        %2452 = vmatprep.subr.mxu0 %v2418
        %2453 = vmatpush1.msra.mxu0 %v2417
        %2454 = vmatprep.subr.mxu0 %v2420
        %2455 = vmatpush1.msra.mxu0 %v2419
        %2456 = vmatprep.subr.mxu0 %v2422
        %2457 = vmatpush1.msra.mxu0 %v2421
        %2458 = vmatprep.subr.mxu0 %v2424
        %2459 = vmatpush1.msra.mxu0 %v2423
        %2460 = vmatprep.subr.mxu0 %v2426
        %2461 = vmatpush1.msra.mxu0 %v2425
        %2462 = vmatprep.subr.mxu0 %v2428
        %2463 = vmatpush1.msra.mxu0 %v2427
        %2464 = vmatprep.subr.mxu0 %v2430
        %2465 = vmatpush1.msra.mxu0 %v2429
        %2466 = vmatprep.subr.mxu0 %v2432
        %2467 = vmatpush1.msra.mxu0 %v2431
        %2468 = vmatprep.subr.mxu0 %v2434
        %2469 = vmatpush1.msra.mxu0 %v2433
        %2470 = vmatprep.subr.mxu0 %v2436
        %2471 = vmatpush1.msra.mxu0 %v2435
        %2472 = vmatprep.subr.mxu0 %v2438
        %2473 = vmatpush1.msra.mxu0 %v2437
        %2474 = vmatprep.subr.mxu0 %v2440
        %2475 = vmatpush1.msra.mxu0 %v2439
        %2476 = vmatprep.subr.mxu0 %v2442
        %2477 = vmatpush1.msra.mxu0 %v2441
        %2478 = vmatprep.subr.mxu0 %v2444
        %2479 = vmatpush1.msra.mxu0 %v2443
        %2480 = vmatprep.subr.mxu0 %v2446
        %2481 = vmatpush1.msra.mxu0 %v2445
        %2482 = vmatprep.subr.mxu0 %v2448
        %2483 = vmatpush1.msra.mxu0 %v2447
        %2484 = vmatprep.subr.mxu0 0.0
        %2485 = vmatpush1.msra.mxu0 0.0
        %2486 = vmatprep.subr.mxu0 0.0
        %2487 = vmatpush1.msra.mxu0 0.0
        %2488 = vmatprep.subr.mxu0 0.0
        %2489 = vmatpush1.msra.mxu0 0.0
        %2490 = vmatprep.subr.mxu0 0.0
        %2491 = vmatpush1.msra.mxu0 0.0
        %2492 = vmatprep.subr.mxu0 0.0
        %2493 = vmatpush1.msra.mxu0 0.0
        %2494 = vmatprep.subr.mxu0 0.0
        %2495 = vmatpush1.msra.mxu0 0.0
        %2496 = vmatprep.subr.mxu0 0.0
        %2497 = vmatpush1.msra.mxu0 0.0
        %2498 = vmatprep.subr.mxu0 0.0
        %2499 = vmatpush1.msra.mxu0 0.0
        %2500 = vmatprep.subr.mxu0 0.0
        %2501 = vmatpush1.msra.mxu0 0.0
        %2502 = vmatprep.subr.mxu0 0.0
        %2503 = vmatpush1.msra.mxu0 0.0
        %2504 = vmatprep.subr.mxu0 0.0
        %2505 = vmatpush1.msra.mxu0 0.0
        %2506 = vmatprep.subr.mxu0 0.0
        %2507 = vmatpush1.msra.mxu0 0.0
        %2508 = vmatprep.subr.mxu0 0.0
        %2509 = vmatpush1.msra.mxu0 0.0
        %2510 = vmatprep.subr.mxu0 0.0
        %2511 = vmatpush1.msra.mxu0 0.0
        %2512 = vmatprep.subr.mxu0 0.0
        %2513 = vmatpush1.msra.mxu0 0.0
        %2514 = vmatprep.subr.mxu0 0.0
        %2515 = vmatpush1.msra.mxu0 0.0
        %2516 = vmatprep.mubr.f32.mxu0 0.0
        %2517 = vmatmul.mubr.f32.gmra.mrb[0].mxu0 %v1506
        %v2518 = vpop.f32.mrb[0].mxu0
        %v2519 = vadd.f32 0.0, %v2518
        %v2520 = vpop.f32.mrb[0].mxu0
        %v2521 = vadd.f32 0.0, %v2520
        %2522 = vmatprep.mubr.f32.mxu0 0.0
        %2523 = vmatmul.mubr.f32.gmra.mrb[0].mxu0 %v2450
        %v2524 = vpop.f32.mrb[0].mxu0
        %v2525 = vadd.f32 0.0, %v2524
        %v2526 = vpop.f32.mrb[0].mxu0
        %v2527 = vadd.f32 0.0, %v2526
        %2528 = vdwg.mxu0
        %v2529 = vadd.f32 %v2412, %v2519
        %v2530 = vadd.f32 %v2413, %v2521
        %v2531 = vadd.f32 %v2414, %v2525
        %v2532 = vadd.f32 %v2415, %v2527
        %s2533 = scalar_lea.vmem [#allocation2], 4608
        %v2534 = vld [vmem:[%s2533] sm:$0xff]
        %v2535 = vld [vmem:[%s2533 + $0x8] sm:$0xff]
        %v2536 = vld [vmem:[%s2533 + $0x10] sm:$0xff]
        %v2537 = vld [vmem:[%s2533 + $0x18] sm:$0xff]
        %v2538 = vld [vmem:[%s2533 + $0x20] sm:$0xff]
        %v2539 = vld [vmem:[%s2533 + $0x28] sm:$0xff]
        %v2540 = vld [vmem:[%s2533 + $0x30] sm:$0xff]
        %v2541 = vld [vmem:[%s2533 + $0x38] sm:$0xff]
        %v2542 = vld [vmem:[%s2533 + $0x40] sm:$0xff]
        %v2543 = vld [vmem:[%s2533 + $0x48] sm:$0xff]
        %v2544 = vld [vmem:[%s2533 + $0x50] sm:$0xff]
        %v2545 = vld [vmem:[%s2533 + $0x58] sm:$0xff]
        %v2546 = vld [vmem:[%s2533 + $0x60] sm:$0xff]
        %v2547 = vld [vmem:[%s2533 + $0x68] sm:$0xff]
        %v2548 = vld [vmem:[%s2533 + $0x70] sm:$0xff]
        %v2549 = vld [vmem:[%s2533 + $0x78] sm:$0xff]
        %v2550 = vld [vmem:[%s2533 + $0x80] sm:$0xff]
        %v2551 = vld [vmem:[%s2533 + $0x88] sm:$0xff]
        %v2552 = vld [vmem:[%s2533 + $0x90] sm:$0xff]
        %v2553 = vld [vmem:[%s2533 + $0x98] sm:$0xff]
        %v2554 = vld [vmem:[%s2533 + $0xa0] sm:$0xff]
        %v2555 = vld [vmem:[%s2533 + $0xa8] sm:$0xff]
        %v2556 = vld [vmem:[%s2533 + $0xb0] sm:$0xff]
        %v2557 = vld [vmem:[%s2533 + $0xb8] sm:$0xff]
        %v2558 = vld [vmem:[%s2533 + $0xc0] sm:$0xff]
        %v2559 = vld [vmem:[%s2533 + $0xc8] sm:$0xff]
        %v2560 = vld [vmem:[%s2533 + $0xd0] sm:$0xff]
        %v2561 = vld [vmem:[%s2533 + $0xd8] sm:$0xff]
        %v2562 = vld [vmem:[%s2533 + $0xe0] sm:$0xff]
        %v2563 = vld [vmem:[%s2533 + $0xe8] sm:$0xff]
        %v2564 = vld [vmem:[%s2533 + $0xf0] sm:$0xff]
        %v2565 = vld [vmem:[%s2533 + $0xf8] sm:$0xff]
        %v2566 = vrot.slane %v402, 7
        %v2567 = vsel %vm1622, %v1626, %v2566
        %2569 = vmatprep.subr.mxu0 %v2535
        %2570 = vmatpush1.msra.mxu0 %v2534
        %2571 = vmatprep.subr.mxu0 %v2537
        %2572 = vmatpush1.msra.mxu0 %v2536
        %2573 = vmatprep.subr.mxu0 %v2539
        %2574 = vmatpush1.msra.mxu0 %v2538
        %2575 = vmatprep.subr.mxu0 %v2541
        %2576 = vmatpush1.msra.mxu0 %v2540
        %2577 = vmatprep.subr.mxu0 %v2543
        %2578 = vmatpush1.msra.mxu0 %v2542
        %2579 = vmatprep.subr.mxu0 %v2545
        %2580 = vmatpush1.msra.mxu0 %v2544
        %2581 = vmatprep.subr.mxu0 %v2547
        %2582 = vmatpush1.msra.mxu0 %v2546
        %2583 = vmatprep.subr.mxu0 %v2549
        %2584 = vmatpush1.msra.mxu0 %v2548
        %2585 = vmatprep.subr.mxu0 %v2551
        %2586 = vmatpush1.msra.mxu0 %v2550
        %2587 = vmatprep.subr.mxu0 %v2553
        %2588 = vmatpush1.msra.mxu0 %v2552
        %2589 = vmatprep.subr.mxu0 %v2555
        %2590 = vmatpush1.msra.mxu0 %v2554
        %2591 = vmatprep.subr.mxu0 %v2557
        %2592 = vmatpush1.msra.mxu0 %v2556
        %2593 = vmatprep.subr.mxu0 %v2559
        %2594 = vmatpush1.msra.mxu0 %v2558
        %2595 = vmatprep.subr.mxu0 %v2561
        %2596 = vmatpush1.msra.mxu0 %v2560
        %2597 = vmatprep.subr.mxu0 %v2563
        %2598 = vmatpush1.msra.mxu0 %v2562
        %2599 = vmatprep.subr.mxu0 %v2565
        %2600 = vmatpush1.msra.mxu0 %v2564
        %2601 = vmatprep.subr.mxu0 0.0
        %2602 = vmatpush1.msra.mxu0 0.0
        %2603 = vmatprep.subr.mxu0 0.0
        %2604 = vmatpush1.msra.mxu0 0.0
        %2605 = vmatprep.subr.mxu0 0.0
        %2606 = vmatpush1.msra.mxu0 0.0
        %2607 = vmatprep.subr.mxu0 0.0
        %2608 = vmatpush1.msra.mxu0 0.0
        %2609 = vmatprep.subr.mxu0 0.0
        %2610 = vmatpush1.msra.mxu0 0.0
        %2611 = vmatprep.subr.mxu0 0.0
        %2612 = vmatpush1.msra.mxu0 0.0
        %2613 = vmatprep.subr.mxu0 0.0
        %2614 = vmatpush1.msra.mxu0 0.0
        %2615 = vmatprep.subr.mxu0 0.0
        %2616 = vmatpush1.msra.mxu0 0.0
        %2617 = vmatprep.subr.mxu0 0.0
        %2618 = vmatpush1.msra.mxu0 0.0
        %2619 = vmatprep.subr.mxu0 0.0
        %2620 = vmatpush1.msra.mxu0 0.0
        %2621 = vmatprep.subr.mxu0 0.0
        %2622 = vmatpush1.msra.mxu0 0.0
        %2623 = vmatprep.subr.mxu0 0.0
        %2624 = vmatpush1.msra.mxu0 0.0
        %2625 = vmatprep.subr.mxu0 0.0
        %2626 = vmatpush1.msra.mxu0 0.0
        %2627 = vmatprep.subr.mxu0 0.0
        %2628 = vmatpush1.msra.mxu0 0.0
        %2629 = vmatprep.subr.mxu0 0.0
        %2630 = vmatpush1.msra.mxu0 0.0
        %2631 = vmatprep.subr.mxu0 0.0
        %2632 = vmatpush1.msra.mxu0 0.0
        %2633 = vmatprep.mubr.f32.mxu0 0.0
        %2634 = vmatmul.mubr.f32.gmra.mrb[0].mxu0 %v1627
        %v2635 = vpop.f32.mrb[0].mxu0
        %v2636 = vadd.f32 0.0, %v2635
        %v2637 = vpop.f32.mrb[0].mxu0
        %v2638 = vadd.f32 0.0, %v2637
        %2639 = vmatprep.mubr.f32.mxu0 0.0
        %2640 = vmatmul.mubr.f32.gmra.mrb[0].mxu0 %v2567
        %v2641 = vpop.f32.mrb[0].mxu0
        %v2642 = vadd.f32 0.0, %v2641
        %v2643 = vpop.f32.mrb[0].mxu0
        %v2644 = vadd.f32 0.0, %v2643
        %2645 = vdwg.mxu0
        %v2646 = vadd.f32 %v2529, %v2636
        %v2647 = vadd.f32 %v2530, %v2638
        %v2648 = vadd.f32 %v2531, %v2642
        %v2649 = vadd.f32 %v2532, %v2644
        %s2650 = scalar_lea.vmem [#allocation2], 4864
        %v2651 = vld [vmem:[%s2650] sm:$0xff]
        %v2652 = vld [vmem:[%s2650 + $0x8] sm:$0xff]
        %v2653 = vld [vmem:[%s2650 + $0x10] sm:$0xff]
        %v2654 = vld [vmem:[%s2650 + $0x18] sm:$0xff]
        %v2655 = vld [vmem:[%s2650 + $0x20] sm:$0xff]
        %v2656 = vld [vmem:[%s2650 + $0x28] sm:$0xff]
        %v2657 = vld [vmem:[%s2650 + $0x30] sm:$0xff]
        %v2658 = vld [vmem:[%s2650 + $0x38] sm:$0xff]
        %v2659 = vld [vmem:[%s2650 + $0x40] sm:$0xff]
        %v2660 = vld [vmem:[%s2650 + $0x48] sm:$0xff]
        %v2661 = vld [vmem:[%s2650 + $0x50] sm:$0xff]
        %v2662 = vld [vmem:[%s2650 + $0x58] sm:$0xff]
        %v2663 = vld [vmem:[%s2650 + $0x60] sm:$0xff]
        %v2664 = vld [vmem:[%s2650 + $0x68] sm:$0xff]
        %v2665 = vld [vmem:[%s2650 + $0x70] sm:$0xff]
        %v2666 = vld [vmem:[%s2650 + $0x78] sm:$0xff]
        %v2667 = vld [vmem:[%s2650 + $0x80] sm:$0xff]
        %v2668 = vld [vmem:[%s2650 + $0x88] sm:$0xff]
        %v2669 = vld [vmem:[%s2650 + $0x90] sm:$0xff]
        %v2670 = vld [vmem:[%s2650 + $0x98] sm:$0xff]
        %v2671 = vld [vmem:[%s2650 + $0xa0] sm:$0xff]
        %v2672 = vld [vmem:[%s2650 + $0xa8] sm:$0xff]
        %v2673 = vld [vmem:[%s2650 + $0xb0] sm:$0xff]
        %v2674 = vld [vmem:[%s2650 + $0xb8] sm:$0xff]
        %v2675 = vld [vmem:[%s2650 + $0xc0] sm:$0xff]
        %v2676 = vld [vmem:[%s2650 + $0xc8] sm:$0xff]
        %v2677 = vld [vmem:[%s2650 + $0xd0] sm:$0xff]
        %v2678 = vld [vmem:[%s2650 + $0xd8] sm:$0xff]
        %v2679 = vld [vmem:[%s2650 + $0xe0] sm:$0xff]
        %v2680 = vld [vmem:[%s2650 + $0xe8] sm:$0xff]
        %v2681 = vld [vmem:[%s2650 + $0xf0] sm:$0xff]
        %v2682 = vld [vmem:[%s2650 + $0xf8] sm:$0xff]
        %2683 = vmatprep.subr.mxu0 %v2652
        %2684 = vmatpush1.msra.mxu0 %v2651
        %2685 = vmatprep.subr.mxu0 %v2654
        %2686 = vmatpush1.msra.mxu0 %v2653
        %2687 = vmatprep.subr.mxu0 %v2656
        %2688 = vmatpush1.msra.mxu0 %v2655
        %2689 = vmatprep.subr.mxu0 %v2658
        %2690 = vmatpush1.msra.mxu0 %v2657
        %2691 = vmatprep.subr.mxu0 %v2660
        %2692 = vmatpush1.msra.mxu0 %v2659
        %2693 = vmatprep.subr.mxu0 %v2662
        %2694 = vmatpush1.msra.mxu0 %v2661
        %2695 = vmatprep.subr.mxu0 %v2664
        %2696 = vmatpush1.msra.mxu0 %v2663
        %2697 = vmatprep.subr.mxu0 %v2666
        %2698 = vmatpush1.msra.mxu0 %v2665
        %2699 = vmatprep.subr.mxu0 %v2668
        %2700 = vmatpush1.msra.mxu0 %v2667
        %2701 = vmatprep.subr.mxu0 %v2670
        %2702 = vmatpush1.msra.mxu0 %v2669
        %2703 = vmatprep.subr.mxu0 %v2672
        %2704 = vmatpush1.msra.mxu0 %v2671
        %2705 = vmatprep.subr.mxu0 %v2674
        %2706 = vmatpush1.msra.mxu0 %v2673
        %2707 = vmatprep.subr.mxu0 %v2676
        %2708 = vmatpush1.msra.mxu0 %v2675
        %2709 = vmatprep.subr.mxu0 %v2678
        %2710 = vmatpush1.msra.mxu0 %v2677
        %2711 = vmatprep.subr.mxu0 %v2680
        %2712 = vmatpush1.msra.mxu0 %v2679
        %2713 = vmatprep.subr.mxu0 %v2682
        %2714 = vmatpush1.msra.mxu0 %v2681
        %2715 = vmatprep.subr.mxu0 0.0
        %2716 = vmatpush1.msra.mxu0 0.0
        %2717 = vmatprep.subr.mxu0 0.0
        %2718 = vmatpush1.msra.mxu0 0.0
        %2719 = vmatprep.subr.mxu0 0.0
        %2720 = vmatpush1.msra.mxu0 0.0
        %2721 = vmatprep.subr.mxu0 0.0
        %2722 = vmatpush1.msra.mxu0 0.0
        %2723 = vmatprep.subr.mxu0 0.0
        %2724 = vmatpush1.msra.mxu0 0.0
        %2725 = vmatprep.subr.mxu0 0.0
        %2726 = vmatpush1.msra.mxu0 0.0
        %2727 = vmatprep.subr.mxu0 0.0
        %2728 = vmatpush1.msra.mxu0 0.0
        %2729 = vmatprep.subr.mxu0 0.0
        %2730 = vmatpush1.msra.mxu0 0.0
        %2731 = vmatprep.subr.mxu0 0.0
        %2732 = vmatpush1.msra.mxu0 0.0
        %2733 = vmatprep.subr.mxu0 0.0
        %2734 = vmatpush1.msra.mxu0 0.0
        %2735 = vmatprep.subr.mxu0 0.0
        %2736 = vmatpush1.msra.mxu0 0.0
        %2737 = vmatprep.subr.mxu0 0.0
        %2738 = vmatpush1.msra.mxu0 0.0
        %2739 = vmatprep.subr.mxu0 0.0
        %2740 = vmatpush1.msra.mxu0 0.0
        %2741 = vmatprep.subr.mxu0 0.0
        %2742 = vmatpush1.msra.mxu0 0.0
        %2743 = vmatprep.subr.mxu0 0.0
        %2744 = vmatpush1.msra.mxu0 0.0
        %2745 = vmatprep.subr.mxu0 0.0
        %2746 = vmatpush1.msra.mxu0 0.0
        %2747 = vmatprep.mubr.f32.mxu0 0.0
        %2748 = vmatmul.mubr.f32.gmra.mrb[0].mxu0 %v401
        %v2749 = vpop.f32.mrb[0].mxu0
        %v2750 = vadd.f32 0.0, %v2749
        %v2751 = vpop.f32.mrb[0].mxu0
        %v2752 = vadd.f32 0.0, %v2751
        %2753 = vmatprep.mubr.f32.mxu0 0.0
        %2754 = vmatmul.mubr.f32.gmra.mrb[0].mxu0 %v402
        %v2755 = vpop.f32.mrb[0].mxu0
        %v2756 = vadd.f32 0.0, %v2755
        %v2757 = vpop.f32.mrb[0].mxu0
        %v2758 = vadd.f32 0.0, %v2757
        %2759 = vdwg.mxu0
        %v2760 = vadd.f32 %v2646, %v2750
        %v2761 = vadd.f32 %v2647, %v2752
        %v2762 = vadd.f32 %v2648, %v2756
        %v2763 = vadd.f32 %v2649, %v2758
        %s2764 = scalar_lea.vmem [#allocation2], 5120
        %v2765 = vld [vmem:[%s2764] sm:$0xff]
        %v2766 = vld [vmem:[%s2764 + $0x8] sm:$0xff]
        %v2767 = vld [vmem:[%s2764 + $0x10] sm:$0xff]
        %v2768 = vld [vmem:[%s2764 + $0x18] sm:$0xff]
        %v2769 = vld [vmem:[%s2764 + $0x20] sm:$0xff]
        %v2770 = vld [vmem:[%s2764 + $0x28] sm:$0xff]
        %v2771 = vld [vmem:[%s2764 + $0x30] sm:$0xff]
        %v2772 = vld [vmem:[%s2764 + $0x38] sm:$0xff]
        %v2773 = vld [vmem:[%s2764 + $0x40] sm:$0xff]
        %v2774 = vld [vmem:[%s2764 + $0x48] sm:$0xff]
        %v2775 = vld [vmem:[%s2764 + $0x50] sm:$0xff]
        %v2776 = vld [vmem:[%s2764 + $0x58] sm:$0xff]
        %v2777 = vld [vmem:[%s2764 + $0x60] sm:$0xff]
        %v2778 = vld [vmem:[%s2764 + $0x68] sm:$0xff]
        %v2779 = vld [vmem:[%s2764 + $0x70] sm:$0xff]
        %v2780 = vld [vmem:[%s2764 + $0x78] sm:$0xff]
        %v2781 = vld [vmem:[%s2764 + $0x80] sm:$0xff]
        %v2782 = vld [vmem:[%s2764 + $0x88] sm:$0xff]
        %v2783 = vld [vmem:[%s2764 + $0x90] sm:$0xff]
        %v2784 = vld [vmem:[%s2764 + $0x98] sm:$0xff]
        %v2785 = vld [vmem:[%s2764 + $0xa0] sm:$0xff]
        %v2786 = vld [vmem:[%s2764 + $0xa8] sm:$0xff]
        %v2787 = vld [vmem:[%s2764 + $0xb0] sm:$0xff]
        %v2788 = vld [vmem:[%s2764 + $0xb8] sm:$0xff]
        %v2789 = vld [vmem:[%s2764 + $0xc0] sm:$0xff]
        %v2790 = vld [vmem:[%s2764 + $0xc8] sm:$0xff]
        %v2791 = vld [vmem:[%s2764 + $0xd0] sm:$0xff]
        %v2792 = vld [vmem:[%s2764 + $0xd8] sm:$0xff]
        %v2793 = vld [vmem:[%s2764 + $0xe0] sm:$0xff]
        %v2794 = vld [vmem:[%s2764 + $0xe8] sm:$0xff]
        %v2795 = vld [vmem:[%s2764 + $0xf0] sm:$0xff]
        %v2796 = vld [vmem:[%s2764 + $0xf8] sm:$0xff]
        %v2798 = vrot.slane %v403, 2
        %v2799 = vsel %vm473, %v1981, %v2798
        %2801 = vmatprep.subr.mxu0 %v2766
        %2802 = vmatpush1.msra.mxu0 %v2765
        %2803 = vmatprep.subr.mxu0 %v2768
        %2804 = vmatpush1.msra.mxu0 %v2767
        %2805 = vmatprep.subr.mxu0 %v2770
        %2806 = vmatpush1.msra.mxu0 %v2769
        %2807 = vmatprep.subr.mxu0 %v2772
        %2808 = vmatpush1.msra.mxu0 %v2771
        %2809 = vmatprep.subr.mxu0 %v2774
        %2810 = vmatpush1.msra.mxu0 %v2773
        %2811 = vmatprep.subr.mxu0 %v2776
        %2812 = vmatpush1.msra.mxu0 %v2775
        %2813 = vmatprep.subr.mxu0 %v2778
        %2814 = vmatpush1.msra.mxu0 %v2777
        %2815 = vmatprep.subr.mxu0 %v2780
        %2816 = vmatpush1.msra.mxu0 %v2779
        %2817 = vmatprep.subr.mxu0 %v2782
        %2818 = vmatpush1.msra.mxu0 %v2781
        %2819 = vmatprep.subr.mxu0 %v2784
        %2820 = vmatpush1.msra.mxu0 %v2783
        %2821 = vmatprep.subr.mxu0 %v2786
        %2822 = vmatpush1.msra.mxu0 %v2785
        %2823 = vmatprep.subr.mxu0 %v2788
        %2824 = vmatpush1.msra.mxu0 %v2787
        %2825 = vmatprep.subr.mxu0 %v2790
        %2826 = vmatpush1.msra.mxu0 %v2789
        %2827 = vmatprep.subr.mxu0 %v2792
        %2828 = vmatpush1.msra.mxu0 %v2791
        %2829 = vmatprep.subr.mxu0 %v2794
        %2830 = vmatpush1.msra.mxu0 %v2793
        %2831 = vmatprep.subr.mxu0 %v2796
        %2832 = vmatpush1.msra.mxu0 %v2795
        %2833 = vmatprep.subr.mxu0 0.0
        %2834 = vmatpush1.msra.mxu0 0.0
        %2835 = vmatprep.subr.mxu0 0.0
        %2836 = vmatpush1.msra.mxu0 0.0
        %2837 = vmatprep.subr.mxu0 0.0
        %2838 = vmatpush1.msra.mxu0 0.0
        %2839 = vmatprep.subr.mxu0 0.0
        %2840 = vmatpush1.msra.mxu0 0.0
        %2841 = vmatprep.subr.mxu0 0.0
        %2842 = vmatpush1.msra.mxu0 0.0
        %2843 = vmatprep.subr.mxu0 0.0
        %2844 = vmatpush1.msra.mxu0 0.0
        %2845 = vmatprep.subr.mxu0 0.0
        %2846 = vmatpush1.msra.mxu0 0.0
        %2847 = vmatprep.subr.mxu0 0.0
        %2848 = vmatpush1.msra.mxu0 0.0
        %2849 = vmatprep.subr.mxu0 0.0
        %2850 = vmatpush1.msra.mxu0 0.0
        %2851 = vmatprep.subr.mxu0 0.0
        %2852 = vmatpush1.msra.mxu0 0.0
        %2853 = vmatprep.subr.mxu0 0.0
        %2854 = vmatpush1.msra.mxu0 0.0
        %2855 = vmatprep.subr.mxu0 0.0
        %2856 = vmatpush1.msra.mxu0 0.0
        %2857 = vmatprep.subr.mxu0 0.0
        %2858 = vmatpush1.msra.mxu0 0.0
        %2859 = vmatprep.subr.mxu0 0.0
        %2860 = vmatpush1.msra.mxu0 0.0
        %2861 = vmatprep.subr.mxu0 0.0
        %2862 = vmatpush1.msra.mxu0 0.0
        %2863 = vmatprep.subr.mxu0 0.0
        %2864 = vmatpush1.msra.mxu0 0.0
        %2865 = vmatprep.mubr.f32.mxu0 0.0
        %2866 = vmatmul.mubr.f32.gmra.mrb[0].mxu0 %v1982
        %v2867 = vpop.f32.mrb[0].mxu0
        %v2868 = vadd.f32 0.0, %v2867
        %v2869 = vpop.f32.mrb[0].mxu0
        %v2870 = vadd.f32 0.0, %v2869
        %2871 = vmatprep.mubr.f32.mxu0 0.0
        %2872 = vmatmul.mubr.f32.gmra.mrb[0].mxu0 %v2799
        %v2873 = vpop.f32.mrb[0].mxu0
        %v2874 = vadd.f32 0.0, %v2873
        %v2875 = vpop.f32.mrb[0].mxu0
        %v2876 = vadd.f32 0.0, %v2875
        %2877 = vdwg.mxu0
        %v2878 = vadd.f32 %v2760, %v2868
        %v2879 = vadd.f32 %v2761, %v2870
        %v2880 = vadd.f32 %v2762, %v2874
        %v2881 = vadd.f32 %v2763, %v2876
        %s2882 = scalar_lea.vmem [#allocation2], 5376
        %v2883 = vld [vmem:[%s2882] sm:$0xff]
        %v2884 = vld [vmem:[%s2882 + $0x8] sm:$0xff]
        %v2885 = vld [vmem:[%s2882 + $0x10] sm:$0xff]
        %v2886 = vld [vmem:[%s2882 + $0x18] sm:$0xff]
        %v2887 = vld [vmem:[%s2882 + $0x20] sm:$0xff]
        %v2888 = vld [vmem:[%s2882 + $0x28] sm:$0xff]
        %v2889 = vld [vmem:[%s2882 + $0x30] sm:$0xff]
        %v2890 = vld [vmem:[%s2882 + $0x38] sm:$0xff]
        %v2891 = vld [vmem:[%s2882 + $0x40] sm:$0xff]
        %v2892 = vld [vmem:[%s2882 + $0x48] sm:$0xff]
        %v2893 = vld [vmem:[%s2882 + $0x50] sm:$0xff]
        %v2894 = vld [vmem:[%s2882 + $0x58] sm:$0xff]
        %v2895 = vld [vmem:[%s2882 + $0x60] sm:$0xff]
        %v2896 = vld [vmem:[%s2882 + $0x68] sm:$0xff]
        %v2897 = vld [vmem:[%s2882 + $0x70] sm:$0xff]
        %v2898 = vld [vmem:[%s2882 + $0x78] sm:$0xff]
        %v2899 = vld [vmem:[%s2882 + $0x80] sm:$0xff]
        %v2900 = vld [vmem:[%s2882 + $0x88] sm:$0xff]
        %v2901 = vld [vmem:[%s2882 + $0x90] sm:$0xff]
        %v2902 = vld [vmem:[%s2882 + $0x98] sm:$0xff]
        %v2903 = vld [vmem:[%s2882 + $0xa0] sm:$0xff]
        %v2904 = vld [vmem:[%s2882 + $0xa8] sm:$0xff]
        %v2905 = vld [vmem:[%s2882 + $0xb0] sm:$0xff]
        %v2906 = vld [vmem:[%s2882 + $0xb8] sm:$0xff]
        %v2907 = vld [vmem:[%s2882 + $0xc0] sm:$0xff]
        %v2908 = vld [vmem:[%s2882 + $0xc8] sm:$0xff]
        %v2909 = vld [vmem:[%s2882 + $0xd0] sm:$0xff]
        %v2910 = vld [vmem:[%s2882 + $0xd8] sm:$0xff]
        %v2911 = vld [vmem:[%s2882 + $0xe0] sm:$0xff]
        %v2912 = vld [vmem:[%s2882 + $0xe8] sm:$0xff]
        %v2913 = vld [vmem:[%s2882 + $0xf0] sm:$0xff]
        %v2914 = vld [vmem:[%s2882 + $0xf8] sm:$0xff]
        %v2915 = vrot.slane %v403, 4
        %v2916 = vsel %vm668, %v2215, %v2915
        %2918 = vmatprep.subr.mxu0 %v2884
        %2919 = vmatpush1.msra.mxu0 %v2883
        %2920 = vmatprep.subr.mxu0 %v2886
        %2921 = vmatpush1.msra.mxu0 %v2885
        %2922 = vmatprep.subr.mxu0 %v2888
        %2923 = vmatpush1.msra.mxu0 %v2887
        %2924 = vmatprep.subr.mxu0 %v2890
        %2925 = vmatpush1.msra.mxu0 %v2889
        %2926 = vmatprep.subr.mxu0 %v2892
        %2927 = vmatpush1.msra.mxu0 %v2891
        %2928 = vmatprep.subr.mxu0 %v2894
        %2929 = vmatpush1.msra.mxu0 %v2893
        %2930 = vmatprep.subr.mxu0 %v2896
        %2931 = vmatpush1.msra.mxu0 %v2895
        %2932 = vmatprep.subr.mxu0 %v2898
        %2933 = vmatpush1.msra.mxu0 %v2897
        %2934 = vmatprep.subr.mxu0 %v2900
        %2935 = vmatpush1.msra.mxu0 %v2899
        %2936 = vmatprep.subr.mxu0 %v2902
        %2937 = vmatpush1.msra.mxu0 %v2901
        %2938 = vmatprep.subr.mxu0 %v2904
        %2939 = vmatpush1.msra.mxu0 %v2903
        %2940 = vmatprep.subr.mxu0 %v2906
        %2941 = vmatpush1.msra.mxu0 %v2905
        %2942 = vmatprep.subr.mxu0 %v2908
        %2943 = vmatpush1.msra.mxu0 %v2907
        %2944 = vmatprep.subr.mxu0 %v2910
        %2945 = vmatpush1.msra.mxu0 %v2909
        %2946 = vmatprep.subr.mxu0 %v2912
        %2947 = vmatpush1.msra.mxu0 %v2911
        %2948 = vmatprep.subr.mxu0 %v2914
        %2949 = vmatpush1.msra.mxu0 %v2913
        %2950 = vmatprep.subr.mxu0 0.0
        %2951 = vmatpush1.msra.mxu0 0.0
        %2952 = vmatprep.subr.mxu0 0.0
        %2953 = vmatpush1.msra.mxu0 0.0
        %2954 = vmatprep.subr.mxu0 0.0
        %2955 = vmatpush1.msra.mxu0 0.0
        %2956 = vmatprep.subr.mxu0 0.0
        %2957 = vmatpush1.msra.mxu0 0.0
        %2958 = vmatprep.subr.mxu0 0.0
        %2959 = vmatpush1.msra.mxu0 0.0
        %2960 = vmatprep.subr.mxu0 0.0
        %2961 = vmatpush1.msra.mxu0 0.0
        %2962 = vmatprep.subr.mxu0 0.0
        %2963 = vmatpush1.msra.mxu0 0.0
        %2964 = vmatprep.subr.mxu0 0.0
        %2965 = vmatpush1.msra.mxu0 0.0
        %2966 = vmatprep.subr.mxu0 0.0
        %2967 = vmatpush1.msra.mxu0 0.0
        %2968 = vmatprep.subr.mxu0 0.0
        %2969 = vmatpush1.msra.mxu0 0.0
        %2970 = vmatprep.subr.mxu0 0.0
        %2971 = vmatpush1.msra.mxu0 0.0
        %2972 = vmatprep.subr.mxu0 0.0
        %2973 = vmatpush1.msra.mxu0 0.0
        %2974 = vmatprep.subr.mxu0 0.0
        %2975 = vmatpush1.msra.mxu0 0.0
        %2976 = vmatprep.subr.mxu0 0.0
        %2977 = vmatpush1.msra.mxu0 0.0
        %2978 = vmatprep.subr.mxu0 0.0
        %2979 = vmatpush1.msra.mxu0 0.0
        %2980 = vmatprep.subr.mxu0 0.0
        %2981 = vmatpush1.msra.mxu0 0.0
        %2982 = vmatprep.mubr.f32.mxu0 0.0
        %2983 = vmatmul.mubr.f32.gmra.mrb[0].mxu0 %v2216
        %v2984 = vpop.f32.mrb[0].mxu0
        %v2985 = vadd.f32 0.0, %v2984
        %v2986 = vpop.f32.mrb[0].mxu0
        %v2987 = vadd.f32 0.0, %v2986
        %2988 = vmatprep.mubr.f32.mxu0 0.0
        %2989 = vmatmul.mubr.f32.gmra.mrb[0].mxu0 %v2916
        %v2990 = vpop.f32.mrb[0].mxu0
        %v2991 = vadd.f32 0.0, %v2990
        %v2992 = vpop.f32.mrb[0].mxu0
        %v2993 = vadd.f32 0.0, %v2992
        %2994 = vdwg.mxu0
        %v2995 = vadd.f32 %v2878, %v2985
        %v2996 = vadd.f32 %v2879, %v2987
        %v2997 = vadd.f32 %v2880, %v2991
        %v2998 = vadd.f32 %v2881, %v2993
        %s2999 = scalar_lea.vmem [#allocation2], 5632
        %v3000 = vld [vmem:[%s2999] sm:$0xff]
        %v3001 = vld [vmem:[%s2999 + $0x8] sm:$0xff]
        %v3002 = vld [vmem:[%s2999 + $0x10] sm:$0xff]
        %v3003 = vld [vmem:[%s2999 + $0x18] sm:$0xff]
        %v3004 = vld [vmem:[%s2999 + $0x20] sm:$0xff]
        %v3005 = vld [vmem:[%s2999 + $0x28] sm:$0xff]
        %v3006 = vld [vmem:[%s2999 + $0x30] sm:$0xff]
        %v3007 = vld [vmem:[%s2999 + $0x38] sm:$0xff]
        %v3008 = vld [vmem:[%s2999 + $0x40] sm:$0xff]
        %v3009 = vld [vmem:[%s2999 + $0x48] sm:$0xff]
        %v3010 = vld [vmem:[%s2999 + $0x50] sm:$0xff]
        %v3011 = vld [vmem:[%s2999 + $0x58] sm:$0xff]
        %v3012 = vld [vmem:[%s2999 + $0x60] sm:$0xff]
        %v3013 = vld [vmem:[%s2999 + $0x68] sm:$0xff]
        %v3014 = vld [vmem:[%s2999 + $0x70] sm:$0xff]
        %v3015 = vld [vmem:[%s2999 + $0x78] sm:$0xff]
        %v3016 = vld [vmem:[%s2999 + $0x80] sm:$0xff]
        %v3017 = vld [vmem:[%s2999 + $0x88] sm:$0xff]
        %v3018 = vld [vmem:[%s2999 + $0x90] sm:$0xff]
        %v3019 = vld [vmem:[%s2999 + $0x98] sm:$0xff]
        %v3020 = vld [vmem:[%s2999 + $0xa0] sm:$0xff]
        %v3021 = vld [vmem:[%s2999 + $0xa8] sm:$0xff]
        %v3022 = vld [vmem:[%s2999 + $0xb0] sm:$0xff]
        %v3023 = vld [vmem:[%s2999 + $0xb8] sm:$0xff]
        %v3024 = vld [vmem:[%s2999 + $0xc0] sm:$0xff]
        %v3025 = vld [vmem:[%s2999 + $0xc8] sm:$0xff]
        %v3026 = vld [vmem:[%s2999 + $0xd0] sm:$0xff]
        %v3027 = vld [vmem:[%s2999 + $0xd8] sm:$0xff]
        %v3028 = vld [vmem:[%s2999 + $0xe0] sm:$0xff]
        %v3029 = vld [vmem:[%s2999 + $0xe8] sm:$0xff]
        %v3030 = vld [vmem:[%s2999 + $0xf0] sm:$0xff]
        %v3031 = vld [vmem:[%s2999 + $0xf8] sm:$0xff]
        %v3032 = vrot.slane %v403, 6
        %v3033 = vsel %vm790, %v2449, %v3032
        %3035 = vmatprep.subr.mxu0 %v3001
        %3036 = vmatpush1.msra.mxu0 %v3000
        %3037 = vmatprep.subr.mxu0 %v3003
        %3038 = vmatpush1.msra.mxu0 %v3002
        %3039 = vmatprep.subr.mxu0 %v3005
        %3040 = vmatpush1.msra.mxu0 %v3004
        %3041 = vmatprep.subr.mxu0 %v3007
        %3042 = vmatpush1.msra.mxu0 %v3006
        %3043 = vmatprep.subr.mxu0 %v3009
        %3044 = vmatpush1.msra.mxu0 %v3008
        %3045 = vmatprep.subr.mxu0 %v3011
        %3046 = vmatpush1.msra.mxu0 %v3010
        %3047 = vmatprep.subr.mxu0 %v3013
        %3048 = vmatpush1.msra.mxu0 %v3012
        %3049 = vmatprep.subr.mxu0 %v3015
        %3050 = vmatpush1.msra.mxu0 %v3014
        %3051 = vmatprep.subr.mxu0 %v3017
        %3052 = vmatpush1.msra.mxu0 %v3016
        %3053 = vmatprep.subr.mxu0 %v3019
        %3054 = vmatpush1.msra.mxu0 %v3018
        %3055 = vmatprep.subr.mxu0 %v3021
        %3056 = vmatpush1.msra.mxu0 %v3020
        %3057 = vmatprep.subr.mxu0 %v3023
        %3058 = vmatpush1.msra.mxu0 %v3022
        %3059 = vmatprep.subr.mxu0 %v3025
        %3060 = vmatpush1.msra.mxu0 %v3024
        %3061 = vmatprep.subr.mxu0 %v3027
        %3062 = vmatpush1.msra.mxu0 %v3026
        %3063 = vmatprep.subr.mxu0 %v3029
        %3064 = vmatpush1.msra.mxu0 %v3028
        %3065 = vmatprep.subr.mxu0 %v3031
        %3066 = vmatpush1.msra.mxu0 %v3030
        %3067 = vmatprep.subr.mxu0 0.0
        %3068 = vmatpush1.msra.mxu0 0.0
        %3069 = vmatprep.subr.mxu0 0.0
        %3070 = vmatpush1.msra.mxu0 0.0
        %3071 = vmatprep.subr.mxu0 0.0
        %3072 = vmatpush1.msra.mxu0 0.0
        %3073 = vmatprep.subr.mxu0 0.0
        %3074 = vmatpush1.msra.mxu0 0.0
        %3075 = vmatprep.subr.mxu0 0.0
        %3076 = vmatpush1.msra.mxu0 0.0
        %3077 = vmatprep.subr.mxu0 0.0
        %3078 = vmatpush1.msra.mxu0 0.0
        %3079 = vmatprep.subr.mxu0 0.0
        %3080 = vmatpush1.msra.mxu0 0.0
        %3081 = vmatprep.subr.mxu0 0.0
        %3082 = vmatpush1.msra.mxu0 0.0
        %3083 = vmatprep.subr.mxu0 0.0
        %3084 = vmatpush1.msra.mxu0 0.0
        %3085 = vmatprep.subr.mxu0 0.0
        %3086 = vmatpush1.msra.mxu0 0.0
        %3087 = vmatprep.subr.mxu0 0.0
        %3088 = vmatpush1.msra.mxu0 0.0
        %3089 = vmatprep.subr.mxu0 0.0
        %3090 = vmatpush1.msra.mxu0 0.0
        %3091 = vmatprep.subr.mxu0 0.0
        %3092 = vmatpush1.msra.mxu0 0.0
        %3093 = vmatprep.subr.mxu0 0.0
        %3094 = vmatpush1.msra.mxu0 0.0
        %3095 = vmatprep.subr.mxu0 0.0
        %3096 = vmatpush1.msra.mxu0 0.0
        %3097 = vmatprep.subr.mxu0 0.0
        %3098 = vmatpush1.msra.mxu0 0.0
        %3099 = vmatprep.mubr.f32.mxu0 0.0
        %3100 = vmatmul.mubr.f32.gmra.mrb[0].mxu0 %v2450
        %v3101 = vpop.f32.mrb[0].mxu0
        %v3102 = vadd.f32 0.0, %v3101
        %v3103 = vpop.f32.mrb[0].mxu0
        %v3104 = vadd.f32 0.0, %v3103
        %3105 = vmatprep.mubr.f32.mxu0 0.0
        %3106 = vmatmul.mubr.f32.gmra.mrb[0].mxu0 %v3033
        %v3107 = vpop.f32.mrb[0].mxu0
        %v3108 = vadd.f32 0.0, %v3107
        %v3109 = vpop.f32.mrb[0].mxu0
        %v3110 = vadd.f32 0.0, %v3109
        %3111 = vdwg.mxu0
        %v3112 = vadd.f32 %v2995, %v3102
        %v3113 = vadd.f32 %v2996, %v3104
        %v3114 = vadd.f32 %v2997, %v3108
        %v3115 = vadd.f32 %v2998, %v3110
        %s3116 = scalar_lea.vmem [#allocation2], 5888
        %v3117 = vld [vmem:[%s3116] sm:$0xff]
        %v3118 = vld [vmem:[%s3116 + $0x8] sm:$0xff]
        %v3119 = vld [vmem:[%s3116 + $0x10] sm:$0xff]
        %v3120 = vld [vmem:[%s3116 + $0x18] sm:$0xff]
        %v3121 = vld [vmem:[%s3116 + $0x20] sm:$0xff]
        %v3122 = vld [vmem:[%s3116 + $0x28] sm:$0xff]
        %v3123 = vld [vmem:[%s3116 + $0x30] sm:$0xff]
        %v3124 = vld [vmem:[%s3116 + $0x38] sm:$0xff]
        %v3125 = vld [vmem:[%s3116 + $0x40] sm:$0xff]
        %v3126 = vld [vmem:[%s3116 + $0x48] sm:$0xff]
        %v3127 = vld [vmem:[%s3116 + $0x50] sm:$0xff]
        %v3128 = vld [vmem:[%s3116 + $0x58] sm:$0xff]
        %v3129 = vld [vmem:[%s3116 + $0x60] sm:$0xff]
        %v3130 = vld [vmem:[%s3116 + $0x68] sm:$0xff]
        %v3131 = vld [vmem:[%s3116 + $0x70] sm:$0xff]
        %v3132 = vld [vmem:[%s3116 + $0x78] sm:$0xff]
        %v3133 = vld [vmem:[%s3116 + $0x80] sm:$0xff]
        %v3134 = vld [vmem:[%s3116 + $0x88] sm:$0xff]
        %v3135 = vld [vmem:[%s3116 + $0x90] sm:$0xff]
        %v3136 = vld [vmem:[%s3116 + $0x98] sm:$0xff]
        %v3137 = vld [vmem:[%s3116 + $0xa0] sm:$0xff]
        %v3138 = vld [vmem:[%s3116 + $0xa8] sm:$0xff]
        %v3139 = vld [vmem:[%s3116 + $0xb0] sm:$0xff]
        %v3140 = vld [vmem:[%s3116 + $0xb8] sm:$0xff]
        %v3141 = vld [vmem:[%s3116 + $0xc0] sm:$0xff]
        %v3142 = vld [vmem:[%s3116 + $0xc8] sm:$0xff]
        %v3143 = vld [vmem:[%s3116 + $0xd0] sm:$0xff]
        %v3144 = vld [vmem:[%s3116 + $0xd8] sm:$0xff]
        %v3145 = vld [vmem:[%s3116 + $0xe0] sm:$0xff]
        %v3146 = vld [vmem:[%s3116 + $0xe8] sm:$0xff]
        %v3147 = vld [vmem:[%s3116 + $0xf0] sm:$0xff]
        %v3148 = vld [vmem:[%s3116 + $0xf8] sm:$0xff]
        %3149 = vmatprep.subr.mxu0 %v3118
        %3150 = vmatpush1.msra.mxu0 %v3117
        %3151 = vmatprep.subr.mxu0 %v3120
        %3152 = vmatpush1.msra.mxu0 %v3119
        %3153 = vmatprep.subr.mxu0 %v3122
        %3154 = vmatpush1.msra.mxu0 %v3121
        %3155 = vmatprep.subr.mxu0 %v3124
        %3156 = vmatpush1.msra.mxu0 %v3123
        %3157 = vmatprep.subr.mxu0 %v3126
        %3158 = vmatpush1.msra.mxu0 %v3125
        %3159 = vmatprep.subr.mxu0 %v3128
        %3160 = vmatpush1.msra.mxu0 %v3127
        %3161 = vmatprep.subr.mxu0 %v3130
        %3162 = vmatpush1.msra.mxu0 %v3129
        %3163 = vmatprep.subr.mxu0 %v3132
        %3164 = vmatpush1.msra.mxu0 %v3131
        %3165 = vmatprep.subr.mxu0 %v3134
        %3166 = vmatpush1.msra.mxu0 %v3133
        %3167 = vmatprep.subr.mxu0 %v3136
        %3168 = vmatpush1.msra.mxu0 %v3135
        %3169 = vmatprep.subr.mxu0 %v3138
        %3170 = vmatpush1.msra.mxu0 %v3137
        %3171 = vmatprep.subr.mxu0 %v3140
        %3172 = vmatpush1.msra.mxu0 %v3139
        %3173 = vmatprep.subr.mxu0 %v3142
        %3174 = vmatpush1.msra.mxu0 %v3141
        %3175 = vmatprep.subr.mxu0 %v3144
        %3176 = vmatpush1.msra.mxu0 %v3143
        %3177 = vmatprep.subr.mxu0 %v3146
        %3178 = vmatpush1.msra.mxu0 %v3145
        %3179 = vmatprep.subr.mxu0 %v3148
        %3180 = vmatpush1.msra.mxu0 %v3147
        %3181 = vmatprep.subr.mxu0 0.0
        %3182 = vmatpush1.msra.mxu0 0.0
        %3183 = vmatprep.subr.mxu0 0.0
        %3184 = vmatpush1.msra.mxu0 0.0
        %3185 = vmatprep.subr.mxu0 0.0
        %3186 = vmatpush1.msra.mxu0 0.0
        %3187 = vmatprep.subr.mxu0 0.0
        %3188 = vmatpush1.msra.mxu0 0.0
        %3189 = vmatprep.subr.mxu0 0.0
        %3190 = vmatpush1.msra.mxu0 0.0
        %3191 = vmatprep.subr.mxu0 0.0
        %3192 = vmatpush1.msra.mxu0 0.0
        %3193 = vmatprep.subr.mxu0 0.0
        %3194 = vmatpush1.msra.mxu0 0.0
        %3195 = vmatprep.subr.mxu0 0.0
        %3196 = vmatpush1.msra.mxu0 0.0
        %3197 = vmatprep.subr.mxu0 0.0
        %3198 = vmatpush1.msra.mxu0 0.0
        %3199 = vmatprep.subr.mxu0 0.0
        %3200 = vmatpush1.msra.mxu0 0.0
        %3201 = vmatprep.subr.mxu0 0.0
        %3202 = vmatpush1.msra.mxu0 0.0
        %3203 = vmatprep.subr.mxu0 0.0
        %3204 = vmatpush1.msra.mxu0 0.0
        %3205 = vmatprep.subr.mxu0 0.0
        %3206 = vmatpush1.msra.mxu0 0.0
        %3207 = vmatprep.subr.mxu0 0.0
        %3208 = vmatpush1.msra.mxu0 0.0
        %3209 = vmatprep.subr.mxu0 0.0
        %3210 = vmatpush1.msra.mxu0 0.0
        %3211 = vmatprep.subr.mxu0 0.0
        %3212 = vmatpush1.msra.mxu0 0.0
        %3213 = vmatprep.mubr.f32.mxu0 0.0
        %3214 = vmatmul.mubr.f32.gmra.mrb[0].mxu0 %v402
        %v3215 = vpop.f32.mrb[0].mxu0
        %v3216 = vadd.f32 0.0, %v3215
        %v3217 = vpop.f32.mrb[0].mxu0
        %v3218 = vadd.f32 0.0, %v3217
        %3219 = vmatprep.mubr.f32.mxu0 0.0
        %3220 = vmatmul.mubr.f32.gmra.mrb[0].mxu0 %v403
        %v3221 = vpop.f32.mrb[0].mxu0
        %v3222 = vadd.f32 0.0, %v3221
        %v3223 = vpop.f32.mrb[0].mxu0
        %v3224 = vadd.f32 0.0, %v3223
        %3225 = vdwg.mxu0
        %v3226 = vadd.f32 %v3112, %v3216
        %v3227 = vadd.f32 %v3113, %v3218
        %v3228 = vadd.f32 %v3114, %v3222
        %v3229 = vadd.f32 %v3115, %v3224
        %s3230 = scalar_lea.vmem [#allocation2], 6144
        %v3231 = vld [vmem:[%s3230] sm:$0xff]
        %v3232 = vld [vmem:[%s3230 + $0x8] sm:$0xff]
        %v3233 = vld [vmem:[%s3230 + $0x10] sm:$0xff]
        %v3234 = vld [vmem:[%s3230 + $0x18] sm:$0xff]
        %v3235 = vld [vmem:[%s3230 + $0x20] sm:$0xff]
        %v3236 = vld [vmem:[%s3230 + $0x28] sm:$0xff]
        %v3237 = vld [vmem:[%s3230 + $0x30] sm:$0xff]
        %v3238 = vld [vmem:[%s3230 + $0x38] sm:$0xff]
        %v3239 = vld [vmem:[%s3230 + $0x40] sm:$0xff]
        %v3240 = vld [vmem:[%s3230 + $0x48] sm:$0xff]
        %v3241 = vld [vmem:[%s3230 + $0x50] sm:$0xff]
        %v3242 = vld [vmem:[%s3230 + $0x58] sm:$0xff]
        %v3243 = vld [vmem:[%s3230 + $0x60] sm:$0xff]
        %v3244 = vld [vmem:[%s3230 + $0x68] sm:$0xff]
        %v3245 = vld [vmem:[%s3230 + $0x70] sm:$0xff]
        %v3246 = vld [vmem:[%s3230 + $0x78] sm:$0xff]
        %v3247 = vld [vmem:[%s3230 + $0x80] sm:$0xff]
        %v3248 = vld [vmem:[%s3230 + $0x88] sm:$0xff]
        %v3249 = vld [vmem:[%s3230 + $0x90] sm:$0xff]
        %v3250 = vld [vmem:[%s3230 + $0x98] sm:$0xff]
        %v3251 = vld [vmem:[%s3230 + $0xa0] sm:$0xff]
        %v3252 = vld [vmem:[%s3230 + $0xa8] sm:$0xff]
        %v3253 = vld [vmem:[%s3230 + $0xb0] sm:$0xff]
        %v3254 = vld [vmem:[%s3230 + $0xb8] sm:$0xff]
        %v3255 = vld [vmem:[%s3230 + $0xc0] sm:$0xff]
        %v3256 = vld [vmem:[%s3230 + $0xc8] sm:$0xff]
        %v3257 = vld [vmem:[%s3230 + $0xd0] sm:$0xff]
        %v3258 = vld [vmem:[%s3230 + $0xd8] sm:$0xff]
        %v3259 = vld [vmem:[%s3230 + $0xe0] sm:$0xff]
        %v3260 = vld [vmem:[%s3230 + $0xe8] sm:$0xff]
        %v3261 = vld [vmem:[%s3230 + $0xf0] sm:$0xff]
        %v3262 = vld [vmem:[%s3230 + $0xf8] sm:$0xff]
        %v3264 = vrot.slane %v404, 2
        %v3265 = vsel %vm473, %v2798, %v3264
        %3267 = vmatprep.subr.mxu0 %v3232
        %3268 = vmatpush1.msra.mxu0 %v3231
        %3269 = vmatprep.subr.mxu0 %v3234
        %3270 = vmatpush1.msra.mxu0 %v3233
        %3271 = vmatprep.subr.mxu0 %v3236
        %3272 = vmatpush1.msra.mxu0 %v3235
        %3273 = vmatprep.subr.mxu0 %v3238
        %3274 = vmatpush1.msra.mxu0 %v3237
        %3275 = vmatprep.subr.mxu0 %v3240
        %3276 = vmatpush1.msra.mxu0 %v3239
        %3277 = vmatprep.subr.mxu0 %v3242
        %3278 = vmatpush1.msra.mxu0 %v3241
        %3279 = vmatprep.subr.mxu0 %v3244
        %3280 = vmatpush1.msra.mxu0 %v3243
        %3281 = vmatprep.subr.mxu0 %v3246
        %3282 = vmatpush1.msra.mxu0 %v3245
        %3283 = vmatprep.subr.mxu0 %v3248
        %3284 = vmatpush1.msra.mxu0 %v3247
        %3285 = vmatprep.subr.mxu0 %v3250
        %3286 = vmatpush1.msra.mxu0 %v3249
        %3287 = vmatprep.subr.mxu0 %v3252
        %3288 = vmatpush1.msra.mxu0 %v3251
        %3289 = vmatprep.subr.mxu0 %v3254
        %3290 = vmatpush1.msra.mxu0 %v3253
        %3291 = vmatprep.subr.mxu0 %v3256
        %3292 = vmatpush1.msra.mxu0 %v3255
        %3293 = vmatprep.subr.mxu0 %v3258
        %3294 = vmatpush1.msra.mxu0 %v3257
        %3295 = vmatprep.subr.mxu0 %v3260
        %3296 = vmatpush1.msra.mxu0 %v3259
        %3297 = vmatprep.subr.mxu0 %v3262
        %3298 = vmatpush1.msra.mxu0 %v3261
        %3299 = vmatprep.subr.mxu0 0.0
        %3300 = vmatpush1.msra.mxu0 0.0
        %3301 = vmatprep.subr.mxu0 0.0
        %3302 = vmatpush1.msra.mxu0 0.0
        %3303 = vmatprep.subr.mxu0 0.0
        %3304 = vmatpush1.msra.mxu0 0.0
        %3305 = vmatprep.subr.mxu0 0.0
        %3306 = vmatpush1.msra.mxu0 0.0
        %3307 = vmatprep.subr.mxu0 0.0
        %3308 = vmatpush1.msra.mxu0 0.0
        %3309 = vmatprep.subr.mxu0 0.0
        %3310 = vmatpush1.msra.mxu0 0.0
        %3311 = vmatprep.subr.mxu0 0.0
        %3312 = vmatpush1.msra.mxu0 0.0
        %3313 = vmatprep.subr.mxu0 0.0
        %3314 = vmatpush1.msra.mxu0 0.0
        %3315 = vmatprep.subr.mxu0 0.0
        %3316 = vmatpush1.msra.mxu0 0.0
        %3317 = vmatprep.subr.mxu0 0.0
        %3318 = vmatpush1.msra.mxu0 0.0
        %3319 = vmatprep.subr.mxu0 0.0
        %3320 = vmatpush1.msra.mxu0 0.0
        %3321 = vmatprep.subr.mxu0 0.0
        %3322 = vmatpush1.msra.mxu0 0.0
        %3323 = vmatprep.subr.mxu0 0.0
        %3324 = vmatpush1.msra.mxu0 0.0
        %3325 = vmatprep.subr.mxu0 0.0
        %3326 = vmatpush1.msra.mxu0 0.0
        %3327 = vmatprep.subr.mxu0 0.0
        %3328 = vmatpush1.msra.mxu0 0.0
        %3329 = vmatprep.subr.mxu0 0.0
        %3330 = vmatpush1.msra.mxu0 0.0
        %3331 = vmatprep.mubr.f32.mxu0 0.0
        %3332 = vmatmul.mubr.f32.gmra.mrb[0].mxu0 %v2799
        %v3333 = vpop.f32.mrb[0].mxu0
        %v3334 = vadd.f32 0.0, %v3333
        %v3335 = vpop.f32.mrb[0].mxu0
        %v3336 = vadd.f32 0.0, %v3335
        %3337 = vmatprep.mubr.f32.mxu0 0.0
        %3338 = vmatmul.mubr.f32.gmra.mrb[0].mxu0 %v3265
        %v3339 = vpop.f32.mrb[0].mxu0
        %v3340 = vadd.f32 0.0, %v3339
        %v3341 = vpop.f32.mrb[0].mxu0
        %v3342 = vadd.f32 0.0, %v3341
        %3343 = vdwg.mxu0
        %v3344 = vadd.f32 %v3226, %v3334
        %v3345 = vadd.f32 %v3227, %v3336
        %v3346 = vadd.f32 %v3228, %v3340
        %v3347 = vadd.f32 %v3229, %v3342
        %v3348 = vld [vmem:[#allocation4] sm:$0x3]
        %v3350 = vlaneseq
        %v3351 = vshrl.u32 %v3350, 7
        %v3352 = vsub.s32 0, %v3351
        %v3353 = vrot.slane %v3348, %v3352
        %v3354 = vlaneseq
        %v3355 = vshrl.u32 %v3354, 7
        %v3356 = vsub.s32 1, %v3355
        %v3357 = vrot.slane %v3348, %v3356
        %v3360 = vadd.f32 %v3344, %v3353
        %v3361 = vadd.f32 %v3345, %v3357
        %v3362 = vadd.f32 %v3346, %v3353
        %v3363 = vadd.f32 %v3347, %v3357
        %vm3364 = vcmp.ge.f32.partialorder %v3360, 0.0
        %vm3365 = vcmp.ge.f32.partialorder %v3361, 0.0
        %vm3366 = vcmp.ge.f32.partialorder %v3362, 0.0
        %vm3367 = vcmp.ge.f32.partialorder %v3363, 0.0
        %v3368 = vmul.f32 %v3360, 0.01
        %v3369 = vmul.f32 %v3361, 0.01
        %v3370 = vmul.f32 %v3362, 0.01
        %v3371 = vmul.f32 %v3363, 0.01
        %v3372 = vsel %vm3364, %v3360, %v3368
        %v3373 = vsel %vm3365, %v3361, %v3369
        %v3374 = vsel %vm3366, %v3362, %v3370
        %v3375 = vsel %vm3367, %v3363, %v3371
        %v3376 = vld [vmem:[%s3] sm:$0xff]
        %v3377 = vld [vmem:[%s3 + $0x8] sm:$0xff]
        %v3378 = vld [vmem:[%s3 + $0x10] sm:$0xff]
        %v3379 = vld [vmem:[%s3 + $0x18] sm:$0xff]
        %v3380 = vld [vmem:[%s3 + $0x20] sm:$0xff]
        %v3381 = vld [vmem:[%s3 + $0x28] sm:$0xff]
        %v3382 = vld [vmem:[%s3 + $0x30] sm:$0xff]
        %v3383 = vld [vmem:[%s3 + $0x38] sm:$0xff]
        %v3384 = vld [vmem:[%s3 + $0x40] sm:$0xff]
        %v3385 = vld [vmem:[%s3 + $0x48] sm:$0xff]
        %v3386 = vld [vmem:[%s3 + $0x50] sm:$0xff]
        %v3387 = vld [vmem:[%s3 + $0x58] sm:$0xff]
        %v3388 = vld [vmem:[%s3 + $0x60] sm:$0xff]
        %v3389 = vld [vmem:[%s3 + $0x68] sm:$0xff]
        %v3390 = vld [vmem:[%s3 + $0x70] sm:$0xff]
        %v3391 = vld [vmem:[%s3 + $0x78] sm:$0xff]
        %v3392 = vld [vmem:[%s3 + $0x80] sm:$0xff]
        %v3393 = vld [vmem:[%s3 + $0x88] sm:$0xff]
        %v3394 = vld [vmem:[%s3 + $0x90] sm:$0xff]
        %v3395 = vld [vmem:[%s3 + $0x98] sm:$0xff]
        %v3396 = vld [vmem:[%s3 + $0xa0] sm:$0xff]
        %v3397 = vld [vmem:[%s3 + $0xa8] sm:$0xff]
        %v3398 = vld [vmem:[%s3 + $0xb0] sm:$0xff]
        %v3399 = vld [vmem:[%s3 + $0xb8] sm:$0xff]
        %v3400 = vld [vmem:[%s3 + $0xc0] sm:$0xff]
        %v3401 = vld [vmem:[%s3 + $0xc8] sm:$0xff]
        %v3402 = vld [vmem:[%s3 + $0xd0] sm:$0xff]
        %v3403 = vld [vmem:[%s3 + $0xd8] sm:$0xff]
        %v3404 = vld [vmem:[%s3 + $0xe0] sm:$0xff]
        %v3405 = vld [vmem:[%s3 + $0xe8] sm:$0xff]
        %v3406 = vld [vmem:[%s3 + $0xf0] sm:$0xff]
        %v3407 = vld [vmem:[%s3 + $0xf8] sm:$0xff]
        %v3408 = vld [vmem:[#allocation6] sm:$0x1]
        %v3410 = vlaneseq
        %v3411 = vshrl.u32 %v3410, 7
        %v3412 = vsub.s32 0, %v3411
        %v3413 = vrot.slane %v3408, %v3412
        %3415 = vmatprep.subr.mxu0 0.0
        %3416 = vmatpush1.msra.mxu0 %v3376
        %3417 = vmatprep.subr.mxu0 0.0
        %3418 = vmatpush1.msra.mxu0 %v3377
        %3419 = vmatprep.subr.mxu0 0.0
        %3420 = vmatpush1.msra.mxu0 %v3378
        %3421 = vmatprep.subr.mxu0 0.0
        %3422 = vmatpush1.msra.mxu0 %v3379
        %3423 = vmatprep.subr.mxu0 0.0
        %3424 = vmatpush1.msra.mxu0 %v3380
        %3425 = vmatprep.subr.mxu0 0.0
        %3426 = vmatpush1.msra.mxu0 %v3381
        %3427 = vmatprep.subr.mxu0 0.0
        %3428 = vmatpush1.msra.mxu0 %v3382
        %3429 = vmatprep.subr.mxu0 0.0
        %3430 = vmatpush1.msra.mxu0 %v3383
        %3431 = vmatprep.subr.mxu0 0.0
        %3432 = vmatpush1.msra.mxu0 %v3384
        %3433 = vmatprep.subr.mxu0 0.0
        %3434 = vmatpush1.msra.mxu0 %v3385
        %3435 = vmatprep.subr.mxu0 0.0
        %3436 = vmatpush1.msra.mxu0 %v3386
        %3437 = vmatprep.subr.mxu0 0.0
        %3438 = vmatpush1.msra.mxu0 %v3387
        %3439 = vmatprep.subr.mxu0 0.0
        %3440 = vmatpush1.msra.mxu0 %v3388
        %3441 = vmatprep.subr.mxu0 0.0
        %3442 = vmatpush1.msra.mxu0 %v3389
        %3443 = vmatprep.subr.mxu0 0.0
        %3444 = vmatpush1.msra.mxu0 %v3390
        %3445 = vmatprep.subr.mxu0 0.0
        %3446 = vmatpush1.msra.mxu0 %v3391
        %3447 = vmatprep.subr.mxu0 0.0
        %3448 = vmatpush1.msra.mxu0 %v3392
        %3449 = vmatprep.subr.mxu0 0.0
        %3450 = vmatpush1.msra.mxu0 %v3393
        %3451 = vmatprep.subr.mxu0 0.0
        %3452 = vmatpush1.msra.mxu0 %v3394
        %3453 = vmatprep.subr.mxu0 0.0
        %3454 = vmatpush1.msra.mxu0 %v3395
        %3455 = vmatprep.subr.mxu0 0.0
        %3456 = vmatpush1.msra.mxu0 %v3396
        %3457 = vmatprep.subr.mxu0 0.0
        %3458 = vmatpush1.msra.mxu0 %v3397
        %3459 = vmatprep.subr.mxu0 0.0
        %3460 = vmatpush1.msra.mxu0 %v3398
        %3461 = vmatprep.subr.mxu0 0.0
        %3462 = vmatpush1.msra.mxu0 %v3399
        %3463 = vmatprep.subr.mxu0 0.0
        %3464 = vmatpush1.msra.mxu0 %v3400
        %3465 = vmatprep.subr.mxu0 0.0
        %3466 = vmatpush1.msra.mxu0 %v3401
        %3467 = vmatprep.subr.mxu0 0.0
        %3468 = vmatpush1.msra.mxu0 %v3402
        %3469 = vmatprep.subr.mxu0 0.0
        %3470 = vmatpush1.msra.mxu0 %v3403
        %3471 = vmatprep.subr.mxu0 0.0
        %3472 = vmatpush1.msra.mxu0 %v3404
        %3473 = vmatprep.subr.mxu0 0.0
        %3474 = vmatpush1.msra.mxu0 %v3405
        %3475 = vmatprep.subr.mxu0 0.0
        %3476 = vmatpush1.msra.mxu0 %v3406
        %3477 = vmatprep.subr.mxu0 0.0
        %3478 = vmatpush1.msra.mxu0 %v3407
        %3479 = vmatprep.mubr.f32.mxu0 %v3373
        %3480 = vmatmul.mubr.f32.gmra.mrb[0].mxu0 %v3372
        %v3481 = vpop.f32.mrb[0].mxu0
        %v3482 = vadd.f32 %v3413, %v3481
        %v3483 = vpop.f32.mrb[0].mxu0
        %3484 = vmatprep.mubr.f32.mxu0 %v3375
        %3485 = vmatmul.mubr.f32.gmra.mrb[0].mxu0 %v3374
        %v3486 = vpop.f32.mrb[0].mxu0
        %v3487 = vadd.f32 %v3413, %v3486
        %v3488 = vpop.f32.mrb[0].mxu0
        %3489 = vdwg.mxu0
        %vm3490 = vcmp.ge.f32.partialorder %v3482, 0.0
        %vm3491 = vcmp.ge.f32.partialorder %v3487, 0.0
        %v3492 = vmul.f32 %v3482, 0.01
        %v3493 = vmul.f32 %v3487, 0.01
        %v3494 = vsel %vm3490, %v3482, %v3492
        %v3495 = vsel %vm3491, %v3487, %v3493
        %v3496 = vld [vmem:[%s5] sm:$0xff]
        %v3497 = vld [vmem:[%s5 + $0x8] sm:$0xff]
        %v3498 = vld [vmem:[%s5 + $0x10] sm:$0xff]
        %v3499 = vld [vmem:[%s5 + $0x18] sm:$0xff]
        %v3500 = vld [vmem:[%s5 + $0x20] sm:$0xff]
        %v3501 = vld [vmem:[%s5 + $0x28] sm:$0xff]
        %v3502 = vld [vmem:[%s5 + $0x30] sm:$0xff]
        %v3503 = vld [vmem:[%s5 + $0x38] sm:$0xff]
        %v3504 = vld [vmem:[#allocation7] sm:$0x1]
        %v3506 = vlaneseq
        %v3507 = vshrl.u32 %v3506, 7
        %v3508 = vsub.s32 0, %v3507
        %v3509 = vrot.slane %v3504, %v3508
        %vm3511 = vcmask 523264
        %v3513 = vsel %vm3511, %v3494, 0
        %v3516 = vsel %vm3511, %v3495, 0
        %3518 = vmatprep.subr.mxu0 0.0
        %3519 = vmatpush1.msra.mxu0 %v3496
        %3520 = vmatprep.subr.mxu0 0.0
        %3521 = vmatpush1.msra.mxu0 %v3497
        %3522 = vmatprep.subr.mxu0 0.0
        %3523 = vmatpush1.msra.mxu0 %v3498
        %3524 = vmatprep.subr.mxu0 0.0
        %3525 = vmatpush1.msra.mxu0 %v3499
        %3526 = vmatprep.subr.mxu0 0.0
        %3527 = vmatpush1.msra.mxu0 %v3500
        %3528 = vmatprep.subr.mxu0 0.0
        %3529 = vmatpush1.msra.mxu0 %v3501
        %3530 = vmatprep.subr.mxu0 0.0
        %3531 = vmatpush1.msra.mxu0 %v3502
        %3532 = vmatprep.subr.mxu0 0.0
        %3533 = vmatpush1.msra.mxu0 %v3503
        %3534 = vmatprep.subr.mxu0 0.0
        %3535 = vmatpush1.msra.mxu0 0.0
        %3536 = vmatprep.subr.mxu0 0.0
        %3537 = vmatpush1.msra.mxu0 0.0
        %3538 = vmatprep.subr.mxu0 0.0
        %3539 = vmatpush1.msra.mxu0 0.0
        %3540 = vmatprep.subr.mxu0 0.0
        %3541 = vmatpush1.msra.mxu0 0.0
        %3542 = vmatprep.subr.mxu0 0.0
        %3543 = vmatpush1.msra.mxu0 0.0
        %3544 = vmatprep.subr.mxu0 0.0
        %3545 = vmatpush1.msra.mxu0 0.0
        %3546 = vmatprep.subr.mxu0 0.0
        %3547 = vmatpush1.msra.mxu0 0.0
        %3548 = vmatprep.subr.mxu0 0.0
        %3549 = vmatpush1.msra.mxu0 0.0
        %3550 = vmatprep.subr.mxu0 0.0
        %3551 = vmatpush1.msra.mxu0 0.0
        %3552 = vmatprep.subr.mxu0 0.0
        %3553 = vmatpush1.msra.mxu0 0.0
        %3554 = vmatprep.subr.mxu0 0.0
        %3555 = vmatpush1.msra.mxu0 0.0
        %3556 = vmatprep.subr.mxu0 0.0
        %3557 = vmatpush1.msra.mxu0 0.0
        %3558 = vmatprep.subr.mxu0 0.0
        %3559 = vmatpush1.msra.mxu0 0.0
        %3560 = vmatprep.subr.mxu0 0.0
        %3561 = vmatpush1.msra.mxu0 0.0
        %3562 = vmatprep.subr.mxu0 0.0
        %3563 = vmatpush1.msra.mxu0 0.0
        %3564 = vmatprep.subr.mxu0 0.0
        %3565 = vmatpush1.msra.mxu0 0.0
        %3566 = vmatprep.subr.mxu0 0.0
        %3567 = vmatpush1.msra.mxu0 0.0
        %3568 = vmatprep.subr.mxu0 0.0
        %3569 = vmatpush1.msra.mxu0 0.0
        %3570 = vmatprep.subr.mxu0 0.0
        %3571 = vmatpush1.msra.mxu0 0.0
        %3572 = vmatprep.subr.mxu0 0.0
        %3573 = vmatpush1.msra.mxu0 0.0
        %3574 = vmatprep.subr.mxu0 0.0
        %3575 = vmatpush1.msra.mxu0 0.0
        %3576 = vmatprep.subr.mxu0 0.0
        %3577 = vmatpush1.msra.mxu0 0.0
        %3578 = vmatprep.subr.mxu0 0.0
        %3579 = vmatpush1.msra.mxu0 0.0
        %3580 = vmatprep.subr.mxu0 0.0
        %3581 = vmatpush1.msra.mxu0 0.0
        %3582 = vmatprep.mubr.f32.mxu0 0.0
        %3583 = vmatmul.mubr.f32.gmra.mrb[0].mxu0 %v3513
        %v3584 = vpop.f32.mrb[0].mxu0
        %v3585 = vadd.f32 %v3509, %v3584
        %v3586 = vpop.f32.mrb[0].mxu0
        %3587 = vmatprep.mubr.f32.mxu0 0.0
        %3588 = vmatmul.mubr.f32.gmra.mrb[0].mxu0 %v3516
        %v3589 = vpop.f32.mrb[0].mxu0
        %v3590 = vadd.f32 %v3509, %v3589
        %v3591 = vpop.f32.mrb[0].mxu0
        %3592 = vdwg.mxu0
        %vm3593 = vcmp.ge.f32.partialorder %v3585, 0.0
        %vm3594 = vcmp.ge.f32.partialorder %v3590, 0.0
        %v3595 = vmul.f32 %v3585, 0.01
        %v3596 = vmul.f32 %v3590, 0.01
        %v3597 = vsel %vm3593, %v3585, %v3595
        %v3598 = vsel %vm3594, %v3590, %v3596
        %v3599 = vld [vmem:[%s7] sm:$0xff]
        %v3600 = vld [vmem:[%s7 + $0x8] sm:$0xff]
        %v3601 = vld [vmem:[%s7 + $0x10] sm:$0xff]
        %v3602 = vld [vmem:[%s7 + $0x18] sm:$0xff]
        %v3603 = vld [vmem:[#allocation9] sm:$0x1]
        %v3605 = vlaneseq
        %v3606 = vshrl.u32 %v3605, 7
        %v3607 = vsub.s32 0, %v3606
        %v3608 = vrot.slane %v3603, %v3607
        %vm3610 = vcmask 261120
        %v3612 = vsel %vm3610, %v3597, 0
        %v3615 = vsel %vm3610, %v3598, 0
        %3617 = vmatprep.subr.mxu0 0.0
        %3618 = vmatpush1.msra.mxu0 %v3599
        %3619 = vmatprep.subr.mxu0 0.0
        %3620 = vmatpush1.msra.mxu0 %v3600
        %3621 = vmatprep.subr.mxu0 0.0
        %3622 = vmatpush1.msra.mxu0 %v3601
        %3623 = vmatprep.subr.mxu0 0.0
        %3624 = vmatpush1.msra.mxu0 %v3602
        %3625 = vmatprep.subr.mxu0 0.0
        %3626 = vmatpush1.msra.mxu0 0.0
        %3627 = vmatprep.subr.mxu0 0.0
        %3628 = vmatpush1.msra.mxu0 0.0
        %3629 = vmatprep.subr.mxu0 0.0
        %3630 = vmatpush1.msra.mxu0 0.0
        %3631 = vmatprep.subr.mxu0 0.0
        %3632 = vmatpush1.msra.mxu0 0.0
        %3633 = vmatprep.subr.mxu0 0.0
        %3634 = vmatpush1.msra.mxu0 0.0
        %3635 = vmatprep.subr.mxu0 0.0
        %3636 = vmatpush1.msra.mxu0 0.0
        %3637 = vmatprep.subr.mxu0 0.0
        %3638 = vmatpush1.msra.mxu0 0.0
        %3639 = vmatprep.subr.mxu0 0.0
        %3640 = vmatpush1.msra.mxu0 0.0
        %3641 = vmatprep.subr.mxu0 0.0
        %3642 = vmatpush1.msra.mxu0 0.0
        %3643 = vmatprep.subr.mxu0 0.0
        %3644 = vmatpush1.msra.mxu0 0.0
        %3645 = vmatprep.subr.mxu0 0.0
        %3646 = vmatpush1.msra.mxu0 0.0
        %3647 = vmatprep.subr.mxu0 0.0
        %3648 = vmatpush1.msra.mxu0 0.0
        %3649 = vmatprep.subr.mxu0 0.0
        %3650 = vmatpush1.msra.mxu0 0.0
        %3651 = vmatprep.subr.mxu0 0.0
        %3652 = vmatpush1.msra.mxu0 0.0
        %3653 = vmatprep.subr.mxu0 0.0
        %3654 = vmatpush1.msra.mxu0 0.0
        %3655 = vmatprep.subr.mxu0 0.0
        %3656 = vmatpush1.msra.mxu0 0.0
        %3657 = vmatprep.subr.mxu0 0.0
        %3658 = vmatpush1.msra.mxu0 0.0
        %3659 = vmatprep.subr.mxu0 0.0
        %3660 = vmatpush1.msra.mxu0 0.0
        %3661 = vmatprep.subr.mxu0 0.0
        %3662 = vmatpush1.msra.mxu0 0.0
        %3663 = vmatprep.subr.mxu0 0.0
        %3664 = vmatpush1.msra.mxu0 0.0
        %3665 = vmatprep.subr.mxu0 0.0
        %3666 = vmatpush1.msra.mxu0 0.0
        %3667 = vmatprep.subr.mxu0 0.0
        %3668 = vmatpush1.msra.mxu0 0.0
        %3669 = vmatprep.subr.mxu0 0.0
        %3670 = vmatpush1.msra.mxu0 0.0
        %3671 = vmatprep.subr.mxu0 0.0
        %3672 = vmatpush1.msra.mxu0 0.0
        %3673 = vmatprep.subr.mxu0 0.0
        %3674 = vmatpush1.msra.mxu0 0.0
        %3675 = vmatprep.subr.mxu0 0.0
        %3676 = vmatpush1.msra.mxu0 0.0
        %3677 = vmatprep.subr.mxu0 0.0
        %3678 = vmatpush1.msra.mxu0 0.0
        %3679 = vmatprep.subr.mxu0 0.0
        %3680 = vmatpush1.msra.mxu0 0.0
        %3681 = vmatprep.mubr.f32.mxu0 0.0
        %3682 = vmatmul.mubr.f32.gmra.mrb[0].mxu0 %v3612
        %v3683 = vpop.f32.mrb[0].mxu0
        %v3684 = vadd.f32 %v3608, %v3683
        %v3685 = vpop.f32.mrb[0].mxu0
        %3686 = vmatprep.mubr.f32.mxu0 0.0
        %3687 = vmatmul.mubr.f32.gmra.mrb[0].mxu0 %v3615
        %v3688 = vpop.f32.mrb[0].mxu0
        %v3689 = vadd.f32 %v3608, %v3688
        %v3690 = vpop.f32.mrb[0].mxu0
        %3691 = vdwg.mxu0
        %v3692 = vxor.u32 %v3684, 2147483648
        %v3693 = vxor.u32 %v3689, 2147483648
        %v3694 = vmul.f32 %v3692, 1.442695
        %v3695 = vpow.pop %v3694
        %v3696 = vmul.f32 %v3693, 1.442695
        %v3697 = vpow.pop %v3696
        %v3698 = vadd.f32 %v3695, 1.0
        %v3699 = vadd.f32 %v3697, 1.0
        %v3700 = vrcp.pop %v3698
        %v3701 = vmul.f32 1.0, %v3700
        %v3702 = vrcp.pop %v3699
        %v3703 = vmul.f32 1.0, %v3702
        %vm3704 = vcmask 64512
        %3705 = vst.msk [vmem:[%s397] sm:$0xff] %vm3704, %v3701
        %3706 = vst.msk [vmem:[%s397 + $0x8] sm:$0xff] %vm3704, %v3703
        %p3707 = scmp.lt.s32.totalorder %s23, 1
        %s3708 = scalar_select %p3707, %s23, 1
        %s3709 = smul.addr %s3708, 2
        %s3710 = smul.addr %s3709, 8
        %s3711 = scalar_lea.vmem %s9, %s3710
        // Predicated region
        $region77: #{tpu_custom_call.1} parent=55 // pred_check
          %p3712 = pneg %p235
        $region78: #{tpu_custom_call.1} parent=55 // pred_check_branch
          %3714 = sbr.rel (%p3712) target = $region80
        $region79: #{tpu_custom_call.1} parent=55 // pred_region
          _
        $region80: #{tpu_custom_call.1} parent=55 // pred_fallthru
          _
      $region56: #{tpu_custom_call.1} parent=5 // pred_fallthru
        _
      %p3715 = scmp.le.s32.totalorder 2, %s18
      // Predicated region
      $region81: #{tpu_custom_call.1} parent=5 // pred_check
        %p3716 = pneg %p3715
      $region82: #{tpu_custom_call.1} parent=5 // pred_check_branch
        %3718 = sbr.rel (%p3716) target = $region84
      $region83: #{tpu_custom_call.1} parent=5 // pred_region
        %s3719 = ssub.s32 %s18, 2
        // Predicated region
        $region85: #{tpu_custom_call.1} parent=83 // pred_check
          %p3720 = pneg %p241
        $region86: #{tpu_custom_call.1} parent=83 // pred_check_branch
          %3722 = sbr.rel (%p3720) target = $region88
        $region87: #{tpu_custom_call.1} parent=83 // pred_region
          %p3723 = scmp.lt.s32.totalorder %s24, 1
          %s3724 = scalar_select %p3723, %s24, 1
          %s3725 = smul.addr %s3724, 2
          %s3726 = smul.addr %s3725, 8
          %s3727 = scalar_lea.vmem %s9, %s3726
        $region88: #{tpu_custom_call.1} parent=83 // pred_fallthru
          _
      $region84: #{tpu_custom_call.1} parent=5 // pred_fallthru
        _
    $region6: #{tpu_custom_call.1} parent=1 // loop_footer
      %s22 = sadd.s32 1, %s18
    $region7: #{tpu_custom_call.1} parent=1 // loop_footer_branch
      %17 = sbr.rel target = $region3
    $region8: #{tpu_custom_call.1} parent=1 // loop_exit
      _
    %3728 = vsyncpa [#allocation3], 1
    %s3729 = scalar_lea.sflag [#allocation3], 1
    %3730 = vsyncpa %s3729, 1
    %3731 = vsyncpa [#allocation5], 1
    %3732 = vsyncpa [#allocation8], 1

</llo_original>
